<compile_context>
chip_gen: v6e
topology: v6e:2x2x1
jax: 0.10.0
libtpu: 0.0.40
codegen_flags: <defaults>
</compile_context>

<pallas_src>
import functools

import jax
import jax.numpy as jnp
from jax.experimental import pallas as pl
from jax.experimental.pallas import tpu as pltpu

EPS = 1e-5          # nn.LayerNorm default eps
LANE = 128          # TPU lane width -> feature axes padded to a multiple of this


def _tpu_generation():
    try:
        kind = jax.devices()[0].device_kind.lower()
    except Exception:
        return 6
    if "7" in kind:
        return 7
    for g in (6, 5, 4, 3, 2):
        if f"v{g}" in kind:
            return g
    return 6


_GEN = _tpu_generation()
# MXU-friendly node-row tile: v6e/v7x have a 256-wide MXU, v5e is 128-wide.
TM = 256 if _GEN >= 6 else 128
# VMEM ceiling with headroom under the physical size (64 MiB on v7x, 128 MiB on v5e/v6e).
_VMEM_CAP = (56 << 20) if _GEN >= 7 else (104 << 20)


def _round_up(n, m):
    return ((n + m - 1) // m) * m


def _pad_to(a, shape):
    out = jnp.zeros(shape, a.dtype)
    return out.at[tuple(slice(0, s) for s in a.shape)].set(a)


def _vmem_limit(need_bytes):
    return int(min(max(int(need_bytes) + (4 << 20), 32 << 20), _VMEM_CAP))


# ---------------- kernel-side math (traced inside Pallas) ----------------

def _mlp_ln(x, w, b, gamma, beta, h_actual):
    """LayerNorm(SiLU(x @ w + b)); statistics over the first `h_actual` (real) lanes."""
    h = jnp.dot(x, w, preferred_element_type=jnp.float32) + b
    h = h * jax.nn.sigmoid(h)                                   # SiLU
    hp = h.shape[-1]
    inv_n = 1.0 / float(h_actual)
    if h_actual == hp:                                          # lane-aligned: no mask needed
        mu = jnp.sum(h, axis=-1, keepdims=True) * inv_n
        d = h - mu
        var = jnp.sum(d * d, axis=-1, keepdims=True) * inv_n
    else:                                                       # (1, hp) mask, broadcast over rows
        lane = jax.lax.broadcasted_iota(jnp.int32, (1, hp), 1)
        mask = (lane < h_actual).astype(h.dtype)
        mu = jnp.sum(h * mask, axis=-1, keepdims=True) * inv_n
        d = (h - mu) * mask
        var = jnp.sum(d * d, axis=-1, keepdims=True) * inv_n    # biased var (PyTorch LN)
    hn = (h - mu) * jax.lax.rsqrt(var + EPS)
    # gamma/beta are zero-padded beyond h_actual -> padded lanes come out exactly 0
    return hn * gamma + beta


def _embed_kernel(x_ref, w_ref, b_ref, g_ref, be_ref, o_ref, *, h_actual):
    o_ref[...] = _mlp_ln(x_ref[...], w_ref[...], b_ref[...], g_ref[...],
                         be_ref[...], h_actual).astype(o_ref.dtype)


def _gnn_layers_kernel(h0_ref, a_ref, invd_ref, w_ref, b_ref, g_ref, be_ref,
                       h_ref, m_s, *, tm, h_actual):
    """Fused GNN stack.  grid = (num_layers, 2, num_row_tiles).

    h_ref : (n_pad, hp) f32 OUTPUT block with a constant index map -> node features stay
            resident in VMEM across all layers, flushed to HBM once after the last step.
    m_s   : (n_pad, hp) bf16 scratch holding the current layer's messages
            m = LayerNorm(SiLU(h @ W_l + b_l)).
    phase 0: build m for one TM-row tile of nodes.
    phase 1: mean aggregation + residual for one TM-row tile:
            h[rows] <- (A[rows, :] @ m) * (1/deg[rows]) + h[rows]
    """
    l = pl.program_id(0)
    p = pl.program_id(1)
    i = pl.program_id(2)
    row = pl.multiple_of(i * tm, tm)

    @pl.when((l == 0) & (p == 0) & (i == 0))
    def _():
        h_ref[...] = h0_ref[...]                     # seed node features once

    @pl.when(p == 0)
    def _():                                         # message phase (one row tile)
        m_s[pl.ds(row, tm), :] = _mlp_ln(
            h_ref[pl.ds(row, tm), :], w_ref[...], b_ref[...],
            g_ref[...], be_ref[...], h_actual).astype(m_s.dtype)

    @pl.when(p == 1)
    def _():                                         # aggregation + residual (one row tile)
        a_tile = a_ref[pl.ds(row, tm), :]            # bf16: bf16 x bf16 MXU matmul
        agg = jnp.dot(a_tile, m_s[...], preferred_element_type=jnp.float32)
        h_ref[pl.ds(row, tm), :] = (agg * invd_ref[pl.ds(row, tm), :]
                                    + h_ref[pl.ds(row, tm), :])


# ---------------- Pallas wrappers ----------------

def _initial_embedding(x_p, w_p, b_p, g_p, be_p, h_actual):
    n_pad, dp = x_p.shape
    hp = w_p.shape[1]
    resident = pl.Buffered(1)                        # constant-index blocks: single buffer
    need = (2 * TM * dp * 4 + dp * hp * 4 + 3 * 8 * hp * 4
            + 2 * TM * hp * 4 + 6 * TM * hp * 4)
    return pl.pallas_call(
        functools.partial(_embed_kernel, h_actual=h_actual),
        out_shape=jax.ShapeDtypeStruct((n_pad, hp), jnp.float32),
        grid_spec=pltpu.PrefetchScalarGridSpec(
            num_scalar_prefetch=0,
            grid=(n_pad // TM,),
            in_specs=[
                pl.BlockSpec((TM, dp), lambda i: (i, 0)),
                pl.BlockSpec((dp, hp), lambda i: (0, 0), pipeline_mode=resident),
                pl.BlockSpec((1, hp), lambda i: (0, 0), pipeline_mode=resident),
                pl.BlockSpec((1, hp), lambda i: (0, 0), pipeline_mode=resident),
                pl.BlockSpec((1, hp), lambda i: (0, 0), pipeline_mode=resident),
            ],
            out_specs=pl.BlockSpec((TM, hp), lambda i: (i, 0)),
        ),
        compiler_params=pltpu.CompilerParams(
            dimension_semantics=("parallel",),
            vmem_limit_bytes=_vmem_limit(need)),
    )(x_p, w_p, b_p, g_p, be_p)


def _gnn_layers(h0, a_bf16, inv_deg, ws, bs, gs, bes, h_actual):
    n_pad, hp = h0.shape
    num_layers = ws.shape[0]
    resident = pl.Buffered(1)                        # constant-index blocks: single buffer
    need = (n_pad * hp * 4                           # h0 (single-buffered)
            + n_pad * n_pad * 2                      # adjacency bf16 (single-buffered)
            + n_pad * LANE * 4                       # 1/deg (lane-padded)
            + 2 * n_pad * hp * 4                     # resident output h
            + n_pad * hp * 2                         # bf16 message scratch
            + 2 * (hp * hp + 3 * 8 * hp) * 4         # per-layer params (double-buffered)
            + TM * n_pad * 2 + 8 * TM * hp * 4)      # A row tile + mlp/agg temporaries
    return pl.pallas_call(
        functools.partial(_gnn_layers_kernel, tm=TM, h_actual=h_actual),
        out_shape=jax.ShapeDtypeStruct((n_pad, hp), jnp.float32),
        grid_spec=pltpu.PrefetchScalarGridSpec(
            num_scalar_prefetch=0,
            grid=(num_layers, 2, n_pad // TM),
            in_specs=[
                pl.BlockSpec((n_pad, hp), lambda l, p, i: (0, 0),
                             pipeline_mode=resident),                  # h0 (resident)
                pl.BlockSpec((n_pad, n_pad), lambda l, p, i: (0, 0),
                             pipeline_mode=resident),                  # A bf16 (1 DMA)
                pl.BlockSpec((n_pad, 1), lambda l, p, i: (0, 0),
                             pipeline_mode=resident),                  # 1/deg (resident)
                pl.BlockSpec((pl.Squeezed(), hp, hp), lambda l, p, i: (l, 0, 0)),  # W_l
                pl.BlockSpec((pl.Squeezed(), 1, hp), lambda l, p, i: (l, 0, 0)),   # b_l
                pl.BlockSpec((pl.Squeezed(), 1, hp), lambda l, p, i: (l, 0, 0)),   # gamma_l
                pl.BlockSpec((pl.Squeezed(), 1, hp), lambda l, p, i: (l, 0, 0)),   # beta_l
            ],
            # Constant index map -> node-feature state is the resident output; single HBM
            # writeback after the last grid step.
            out_specs=pl.BlockSpec((n_pad, hp), lambda l, p, i: (0, 0)),
            scratch_shapes=[pltpu.VMEM((n_pad, hp), jnp.bfloat16)],    # bf16 messages
        ),
        compiler_params=pltpu.CompilerParams(
            dimension_semantics=("arbitrary", "arbitrary", "arbitrary"),
            vmem_limit_bytes=_vmem_limit(need)),
    )(h0, a_bf16, inv_deg, ws, bs, gs, bes)


@jax.jit
def gnn_encoder_forward(x, edge_index, params):
    n, d = x.shape
    w0, b0, g0, be0 = params["init"]
    h = w0.shape[1]
    hp = _round_up(h, LANE)
    dp = _round_up(d, LANE)
    n_pad = _round_up(n, TM)

    # ---- initial embedding (own kernel: different input width) ----
    h0 = _initial_embedding(
        _pad_to(x, (n_pad, dp)),
        _pad_to(w0, (dp, hp)),
        _pad_to(b0, (1, hp)),
        _pad_to(g0, (1, hp)),
        _pad_to(be0, (1, hp)),
        h)

    layers = params["layers"]
    if not layers:
        return h0[:n, :h]

    # ---- dense mean-aggregation operands (plain-JAX glue: data-dependent scatter) ----
    src, tgt = edge_index[0], edge_index[1]
    counts = jnp.zeros((n_pad, n_pad), jnp.float32).at[tgt, src].add(1.0)
    deg = jnp.sum(counts, axis=1, keepdims=True)
    inv_deg = 1.0 / jnp.maximum(deg, 1.0)        # f32; applied after the matmul (exact mean)
    a_bf16 = counts.astype(jnp.bfloat16)         # small integer counts (<=256): exact in bf16

    # ---- stacked, lane-padded per-layer parameters ----
    ws = jnp.stack([_pad_to(w, (hp, hp)) for (w, _, _, _) in layers])
    bs = jnp.stack([_pad_to(b, (1, hp)) for (_, b, _, _) in layers])
    gs = jnp.stack([_pad_to(g, (1, hp)) for (_, _, g, _) in layers])
    bes = jnp.stack([_pad_to(be, (1, hp)) for (_, _, _, be) in layers])

    out = _gnn_layers(h0, a_bf16, inv_deg, ws, bs, gs, bes, h)
    return out[:n, :h]


# ---------------- pure-JAX reference (correctness check) ----------------

def reference_forward(x, edge_index, params):
    n = x.shape[0]
    src, tgt = edge_index[0], edge_index[1]
    adj = jnp.zeros((n, n), jnp.float32).at[tgt, src].add(1.0)
    deg = jnp.sum(adj, axis=1, keepdims=True)
    adj = adj / jnp.maximum(deg, 1.0)

    def mlp_ln(z, w, b, g, be):
        hh = jnp.dot(z, w, preferred_element_type=jnp.float32) + b
        hh = hh * jax.nn.sigmoid(hh)
        mu = jnp.mean(hh, axis=-1, keepdims=True)
        var = jnp.mean(jnp.square(hh - mu), axis=-1, keepdims=True)
        return (hh - mu) / jnp.sqrt(var + EPS) * g + be

    w0, b0, g0, be0 = params["init"]
    hcur = mlp_ln(x, w0, b0, g0, be0)
    for (w, b, g, be) in params["layers"]:
        hcur = adj @ mlp_ln(hcur, w, b, g, be) + hcur
    return hcur


# ---------------- main ----------------

if __name__ == "__main__":
    N, IN_DIM, HIDDEN, NUM_LAYERS, E = 16, 8, 32, 3, 48

    key = jax.random.PRNGKey(0)
    keys = jax.random.split(key, 16)

    x = jax.random.normal(keys[0], (N, IN_DIM), jnp.float32)
    src = jax.random.randint(keys[1], (E,), 0, N)
    tgt = jax.random.randint(keys[2], (E,), 0, N)
    edge_index = jnp.stack([src, tgt])  # [2, E], row 0 = source, row 1 = target

    def linear_params(k, din, dout):
        k1, k2 = jax.random.split(k)
        lim = 1.0 / (din ** 0.5)
        w = jax.random.uniform(k1, (din, dout), jnp.float32, -lim, lim)  # stored (in, out)
        b = jax.random.uniform(k2, (1, dout), jnp.float32, -lim, lim)
        return w, b

    params = {}
    w0, b0 = linear_params(keys[3], IN_DIM, HIDDEN)
    params["init"] = (w0, b0, jnp.ones((1, HIDDEN), jnp.float32),
                      jnp.zeros((1, HIDDEN), jnp.float32))
    params["layers"] = []
    for i in range(NUM_LAYERS - 1):
        w, b = linear_params(keys[4 + i], HIDDEN, HIDDEN)
        params["layers"].append((w, b, jnp.ones((1, HIDDEN), jnp.float32),
                                 jnp.zeros((1, HIDDEN), jnp.float32)))

    out = gnn_encoder_forward(x, edge_index, params)
    out = jax.block_until_ready(out)

    ref = reference_forward(x, edge_index, params)
    assert out.shape == (N, HIDDEN)
    max_err = float(jnp.max(jnp.abs(out - ref)))
    # Messages ride the bf16 MXU path per the perf review -> bf16-appropriate tolerance
    # against the pure-f32 reference.
    assert jnp.allclose(out, ref, atol=2e-2, rtol=2e-2), (
        f"Pallas output mismatch vs reference (max abs diff {max_err})")

    print("KERNEL_OK")
</pallas_src>

<mosaic_0001>
module attributes {stable_mosaic.version = 11 : i64} {
  func.func private @main(%arg0: i32) attributes {dimension_semantics = [#tpu.dimension_semantics<core_parallel>], iteration_bounds = array<i64: 2>, tpu.core_type = #tpu.core_type<sc_scalar_subcore>, window_params = []} {
    return
  }
}

module attributes {stable_mosaic.version = 11 : i64} {
  func.func private @main(%arg0: i32) attributes {dimension_semantics = [#tpu.dimension_semantics<core_parallel>], iteration_bounds = array<i64: 2>, tpu.core_type = #tpu.core_type<sc_scalar_subcore>, window_params = []} {
    return
  }
}

module attributes {stable_mosaic.version = 11 : i64} {
  func.func @_embed_kernel(%arg0: i32, %arg1: memref<256x128xf32, #tpu.memory_space<vmem>>, %arg2: memref<128x128xf32, #tpu.memory_space<vmem>>, %arg3: memref<1x128xf32, #tpu.memory_space<vmem>>, %arg4: memref<1x128xf32, #tpu.memory_space<vmem>>, %arg5: memref<1x128xf32, #tpu.memory_space<vmem>>, %arg6: memref<256x128xf32, #tpu.memory_space<vmem>>) attributes {dimension_semantics = [#tpu.dimension_semantics<parallel>], iteration_bounds = array<i64: 1>, scalar_prefetch = 0 : i64, scratch_operands = 0 : i64, tpu.core_type = #tpu.core_type<tc>, window_params = [{transform_indices = @transform_0, window_bounds = array<i64: 256, 128>}, {pipeline_mode = #tpu.pipeline_mode<synchronous>, transform_indices = @transform_1, window_bounds = array<i64: 128, 128>}, {pipeline_mode = #tpu.pipeline_mode<synchronous>, transform_indices = @transform_2, window_bounds = array<i64: 1, 128>}, {pipeline_mode = #tpu.pipeline_mode<synchronous>, transform_indices = @transform_3, window_bounds = array<i64: 1, 128>}, {pipeline_mode = #tpu.pipeline_mode<synchronous>, transform_indices = @transform_4, window_bounds = array<i64: 1, 128>}, {transform_indices = @transform_5, window_bounds = array<i64: 256, 128>}]} {
    %c0 = arith.constant 0 : index
    %c0_0 = arith.constant 0 : index
    %0 = vector.load %arg1[%c0, %c0_0] : memref<256x128xf32, #tpu.memory_space<vmem>>, vector<256x128xf32>
    %c0_1 = arith.constant 0 : index
    %c0_2 = arith.constant 0 : index
    %1 = vector.load %arg2[%c0_1, %c0_2] : memref<128x128xf32, #tpu.memory_space<vmem>>, vector<128x128xf32>
    %c0_3 = arith.constant 0 : index
    %c0_4 = arith.constant 0 : index
    %2 = vector.load %arg3[%c0_3, %c0_4] : memref<1x128xf32, #tpu.memory_space<vmem>>, vector<1x128xf32>
    %c0_5 = arith.constant 0 : index
    %c0_6 = arith.constant 0 : index
    %3 = vector.load %arg4[%c0_5, %c0_6] : memref<1x128xf32, #tpu.memory_space<vmem>>, vector<1x128xf32>
    %c0_7 = arith.constant 0 : index
    %c0_8 = arith.constant 0 : index
    %4 = vector.load %arg5[%c0_7, %c0_8] : memref<1x128xf32, #tpu.memory_space<vmem>>, vector<1x128xf32>
    %cst = arith.constant dense<0.000000e+00> : vector<256x128xf32>
    %5 = tpu.matmul %0, %1, %cst {dimension_numbers = #tpu.dot_dimension_numbers<[1], [0], [0], [1], [0, 0, 1, 1], [], []>} : vector<256x128xf32>, vector<128x128xf32>, vector<256x128xf32> -> vector<256x128xf32>
    %6 = vector.broadcast %2 : vector<1x128xf32> to vector<256x128xf32>
    %7 = arith.addf %5, %6 : vector<256x128xf32>
    %8 = arith.negf %7 : vector<256x128xf32>
    %9 = math.exp %8 : vector<256x128xf32>
    %cst_9 = arith.constant 1.000000e+00 : f32
    %10 = vector.broadcast %cst_9 : f32 to vector<256x128xf32>
    %11 = arith.addf %10, %9 : vector<256x128xf32>
    %12 = arith.divf %10, %11 : vector<256x128xf32>
    %13 = arith.mulf %7, %12 : vector<256x128xf32>
    %14 = tpu.iota {dimensions = array<i32: 1>} : vector<1x128xi32>
    %c32_i32 = arith.constant 32 : i32
    %15 = vector.broadcast %c32_i32 : i32 to vector<1x128xi32>
    %16 = arith.cmpi slt, %14, %15 : vector<1x128xi32>
    %17 = arith.extui %16 : vector<1x128xi1> to vector<1x128xi32>
    %18 = arith.sitofp %17 : vector<1x128xi32> to vector<1x128xf32>
    %19 = vector.broadcast %18 : vector<1x128xf32> to vector<256x128xf32>
    %20 = arith.mulf %13, %19 : vector<256x128xf32>
    %cst_10 = arith.constant dense<0.000000e+00> : vector<256xf32>
    %21 = vector.multi_reduction <add>, %20, %cst_10 [1] : vector<256x128xf32> to vector<256xf32>
    %22 = vector.shape_cast %21 : vector<256xf32> to vector<256x1xf32>
    %cst_11 = arith.constant 3.125000e-02 : f32
    %23 = vector.broadcast %cst_11 : f32 to vector<256x1xf32>
    %24 = arith.mulf %22, %23 : vector<256x1xf32>
    %25 = vector.broadcast %24 : vector<256x1xf32> to vector<256x128xf32>
    %26 = arith.subf %13, %25 : vector<256x128xf32>
    %27 = vector.broadcast %18 : vector<1x128xf32> to vector<256x128xf32>
    %28 = arith.mulf %26, %27 : vector<256x128xf32>
    %29 = arith.mulf %28, %28 : vector<256x128xf32>
    %cst_12 = arith.constant dense<0.000000e+00> : vector<256xf32>
    %30 = vector.multi_reduction <add>, %29, %cst_12 [1] : vector<256x128xf32> to vector<256xf32>
    %31 = vector.shape_cast %30 : vector<256xf32> to vector<256x1xf32>
    %cst_13 = arith.constant 3.125000e-02 : f32
    %32 = vector.broadcast %cst_13 : f32 to vector<256x1xf32>
    %33 = arith.mulf %31, %32 : vector<256x1xf32>
    %34 = vector.broadcast %24 : vector<256x1xf32> to vector<256x128xf32>
    %35 = arith.subf %13, %34 : vector<256x128xf32>
    %cst_14 = arith.constant 9.99999974E-6 : f32
    %36 = vector.broadcast %cst_14 : f32 to vector<256x1xf32>
    %37 = arith.addf %33, %36 : vector<256x1xf32>
    %38 = math.rsqrt %37 : vector<256x1xf32>
    %39 = vector.broadcast %38 : vector<256x1xf32> to vector<256x128xf32>
    %40 = arith.mulf %35, %39 : vector<256x128xf32>
    %41 = vector.broadcast %3 : vector<1x128xf32> to vector<256x128xf32>
    %42 = arith.mulf %40, %41 : vector<256x128xf32>
    %43 = vector.broadcast %4 : vector<1x128xf32> to vector<256x128xf32>
    %44 = arith.addf %42, %43 : vector<256x128xf32>
    %c0_15 = arith.constant 0 : index
    %c0_16 = arith.constant 0 : index
    %45 = vector.load %arg6[%c0_15, %c0_16] : memref<256x128xf32, #tpu.memory_space<vmem>>, vector<256x128xf32>
    tpu.vector_store %arg6[%c0_15, %c0_16], %44 {strides = array<i32>} : memref<256x128xf32, #tpu.memory_space<vmem>>, vector<256x128xf32>,
    return
  }
  func.func @transform_0(%arg0: i32) -> (i32, i32) {
    %c0_i32 = arith.constant 0 : i32
    %c0_i32_0 = arith.constant 0 : i32
    return %arg0, %c0_i32 : i32, i32
  }
  func.func @transform_1(%arg0: i32) -> (i32, i32) {
    %c0_i32 = arith.constant 0 : i32
    %c0_i32_0 = arith.constant 0 : i32
    %c0_i32_1 = arith.constant 0 : i32
    return %c0_i32, %c0_i32_0 : i32, i32
  }
  func.func @transform_2(%arg0: i32) -> (i32, i32) {
    %c0_i32 = arith.constant 0 : i32
    %c0_i32_0 = arith.constant 0 : i32
    %c0_i32_1 = arith.constant 0 : i32
    return %c0_i32, %c0_i32_0 : i32, i32
  }
  func.func @transform_3(%arg0: i32) -> (i32, i32) {
    %c0_i32 = arith.constant 0 : i32
    %c0_i32_0 = arith.constant 0 : i32
    %c0_i32_1 = arith.constant 0 : i32
    return %c0_i32, %c0_i32_0 : i32, i32
  }
  func.func @transform_4(%arg0: i32) -> (i32, i32) {
    %c0_i32 = arith.constant 0 : i32
    %c0_i32_0 = arith.constant 0 : i32
    %c0_i32_1 = arith.constant 0 : i32
    return %c0_i32, %c0_i32_0 : i32, i32
  }
  func.func @transform_5(%arg0: i32) -> (i32, i32) {
    %c0_i32 = arith.constant 0 : i32
    %c0_i32_0 = arith.constant 0 : i32
    return %arg0, %c0_i32 : i32, i32
  }
}

module attributes {stable_mosaic.version = 11 : i64} {
  func.func @_gnn_layers_kernel(%arg0: i32, %arg1: i32, %arg2: i32, %arg3: memref<256x128xf32, #tpu.memory_space<vmem>>, %arg4: memref<256x256xbf16, #tpu.memory_space<vmem>>, %arg5: memref<256x1xf32, #tpu.memory_space<vmem>>, %arg6: memref<1x128x128xf32, #tpu.memory_space<vmem>>, %arg7: memref<1x1x128xf32, #tpu.memory_space<vmem>>, %arg8: memref<1x1x128xf32, #tpu.memory_space<vmem>>, %arg9: memref<1x1x128xf32, #tpu.memory_space<vmem>>, %arg10: memref<256x128xf32, #tpu.memory_space<vmem>>, %arg11: memref<256x128xbf16, #tpu.memory_space<vmem>>) attributes {dimension_semantics = [#tpu.dimension_semantics<arbitrary>, #tpu.dimension_semantics<arbitrary>, #tpu.dimension_semantics<arbitrary>], iteration_bounds = array<i64: 2, 2, 1>, scalar_prefetch = 0 : i64, scratch_operands = 1 : i64, tpu.core_type = #tpu.core_type<tc>, window_params = [{pipeline_mode = #tpu.pipeline_mode<synchronous>, transform_indices = @transform_0, window_bounds = array<i64: 256, 128>}, {pipeline_mode = #tpu.pipeline_mode<synchronous>, transform_indices = @transform_1, window_bounds = array<i64: 256, 256>}, {pipeline_mode = #tpu.pipeline_mode<synchronous>, transform_indices = @transform_2, window_bounds = array<i64: 256, 1>}, {transform_indices = @transform_3, window_bounds = array<i64: 1, 128, 128>}, {transform_indices = @transform_4, window_bounds = array<i64: 1, 1, 128>}, {transform_indices = @transform_5, window_bounds = array<i64: 1, 1, 128>}, {transform_indices = @transform_6, window_bounds = array<i64: 1, 1, 128>}, {pipeline_mode = #tpu.pipeline_mode<synchronous>, transform_indices = @transform_7, window_bounds = array<i64: 256, 128>}]} {
    %c256_i32 = arith.constant 256 : i32
    %0 = arith.muli %arg2, %c256_i32 : i32
    %1 = tpu.assume_multiple %0, 256 : i32
    %c0_i32 = arith.constant 0 : i32
    %2 = arith.cmpi eq, %arg0, %c0_i32 : i32
    %c0_i32_0 = arith.constant 0 : i32
    %3 = arith.cmpi eq, %arg1, %c0_i32_0 : i32
    %4 = arith.andi %2, %3 : i1
    %c0_i32_1 = arith.constant 0 : i32
    %5 = arith.cmpi eq, %arg2, %c0_i32_1 : i32
    %6 = arith.andi %4, %5 : i1
    %7 = arith.extui %6 : i1 to i32
    %c0_i32_2 = arith.constant 0 : i32
    %8 = arith.cmpi ne, %7, %c0_i32_2 : i32
    scf.if %8 {
      %c0 = arith.constant 0 : index
      %c0_6 = arith.constant 0 : index
      %15 = vector.load %arg3[%c0, %c0_6] : memref<256x128xf32, #tpu.memory_space<vmem>>, vector<256x128xf32>
      %c0_7 = arith.constant 0 : index
      %c0_8 = arith.constant 0 : index
      %16 = vector.load %arg10[%c0_7, %c0_8] : memref<256x128xf32, #tpu.memory_space<vmem>>, vector<256x128xf32>
      tpu.vector_store %arg10[%c0_7, %c0_8], %15 {strides = array<i32>} : memref<256x128xf32, #tpu.memory_space<vmem>>, vector<256x128xf32>,
    } else {
    }
    %c0_i32_3 = arith.constant 0 : i32
    %9 = arith.cmpi eq, %arg1, %c0_i32_3 : i32
    %10 = arith.extui %9 : i1 to i32
    %c0_i32_4 = arith.constant 0 : i32
    %11 = arith.cmpi ne, %10, %c0_i32_4 : i32
    scf.if %11 {
      %15 = arith.index_cast %1 : i32 to index
      %c0 = arith.constant 0 : index
      %16 = vector.load %arg10[%15, %c0] : memref<256x128xf32, #tpu.memory_space<vmem>>, vector<256x128xf32>
      %c0_6 = arith.constant 0 : index
      %c0_7 = arith.constant 0 : index
      %c0_8 = arith.constant 0 : index
      %17 = vector.load %arg6[%c0_6, %c0_7, %c0_8] : memref<1x128x128xf32, #tpu.memory_space<vmem>>, vector<1x128x128xf32>
      %18 = vector.shape_cast %17 : vector<1x128x128xf32> to vector<128x128xf32>
      %c0_9 = arith.constant 0 : index
      %c0_10 = arith.constant 0 : index
      %c0_11 = arith.constant 0 : index
      %19 = vector.load %arg7[%c0_9, %c0_10, %c0_11] : memref<1x1x128xf32, #tpu.memory_space<vmem>>, vector<1x1x128xf32>
      %20 = vector.shape_cast %19 : vector<1x1x128xf32> to vector<1x128xf32>
      %c0_12 = arith.constant 0 : index
      %c0_13 = arith.constant 0 : index
      %c0_14 = arith.constant 0 : index
      %21 = vector.load %arg8[%c0_12, %c0_13, %c0_14] : memref<1x1x128xf32, #tpu.memory_space<vmem>>, vector<1x1x128xf32>
      %22 = vector.shape_cast %21 : vector<1x1x128xf32> to vector<1x128xf32>
      %c0_15 = arith.constant 0 : index
      %c0_16 = arith.constant 0 : index
      %c0_17 = arith.constant 0 : index
      %23 = vector.load %arg9[%c0_15, %c0_16, %c0_17] : memref<1x1x128xf32, #tpu.memory_space<vmem>>, vector<1x1x128xf32>
      %24 = vector.shape_cast %23 : vector<1x1x128xf32> to vector<1x128xf32>
      %cst = arith.constant dense<0.000000e+00> : vector<256x128xf32>
      %25 = tpu.matmul %16, %18, %cst {dimension_numbers = #tpu.dot_dimension_numbers<[1], [0], [0], [1], [0, 0, 1, 1], [], []>} : vector<256x128xf32>, vector<128x128xf32>, vector<256x128xf32> -> vector<256x128xf32>
      %26 = vector.broadcast %20 : vector<1x128xf32> to vector<256x128xf32>
      %27 = arith.addf %25, %26 : vector<256x128xf32>
      %28 = arith.negf %27 : vector<256x128xf32>
      %29 = math.exp %28 : vector<256x128xf32>
      %cst_18 = arith.constant 1.000000e+00 : f32
      %30 = vector.broadcast %cst_18 : f32 to vector<256x128xf32>
      %31 = arith.addf %30, %29 : vector<256x128xf32>
      %32 = arith.divf %30, %31 : vector<256x128xf32>
      %33 = arith.mulf %27, %32 : vector<256x128xf32>
      %34 = tpu.iota {dimensions = array<i32: 1>} : vector<1x128xi32>
      %c32_i32 = arith.constant 32 : i32
      %35 = vector.broadcast %c32_i32 : i32 to vector<1x128xi32>
      %36 = arith.cmpi slt, %34, %35 : vector<1x128xi32>
      %37 = arith.extui %36 : vector<1x128xi1> to vector<1x128xi32>
      %38 = arith.sitofp %37 : vector<1x128xi32> to vector<1x128xf32>
      %39 = vector.broadcast %38 : vector<1x128xf32> to vector<256x128xf32>
      %40 = arith.mulf %33, %39 : vector<256x128xf32>
      %cst_19 = arith.constant dense<0.000000e+00> : vector<256xf32>
      %41 = vector.multi_reduction <add>, %40, %cst_19 [1] : vector<256x128xf32> to vector<256xf32>
      %42 = vector.shape_cast %41 : vector<256xf32> to vector<256x1xf32>
      %cst_20 = arith.constant 3.125000e-02 : f32
      %43 = vector.broadcast %cst_20 : f32 to vector<256x1xf32>
      %44 = arith.mulf %42, %43 : vector<256x1xf32>
      %45 = vector.broadcast %44 : vector<256x1xf32> to vector<256x128xf32>
      %46 = arith.subf %33, %45 : vector<256x128xf32>
      %47 = vector.broadcast %38 : vector<1x128xf32> to vector<256x128xf32>
      %48 = arith.mulf %46, %47 : vector<256x128xf32>
      %49 = arith.mulf %48, %48 : vector<256x128xf32>
      %cst_21 = arith.constant dense<0.000000e+00> : vector<256xf32>
      %50 = vector.multi_reduction <add>, %49, %cst_21 [1] : vector<256x128xf32> to vector<256xf32>
      %51 = vector.shape_cast %50 : vector<256xf32> to vector<256x1xf32>
      %cst_22 = arith.constant 3.125000e-02 : f32
      %52 = vector.broadcast %cst_22 : f32 to vector<256x1xf32>
      %53 = arith.mulf %51, %52 : vector<256x1xf32>
      %54 = vector.broadcast %44 : vector<256x1xf32> to vector<256x128xf32>
      %55 = arith.subf %33, %54 : vector<256x128xf32>
      %cst_23 = arith.constant 9.99999974E-6 : f32
      %56 = vector.broadcast %cst_23 : f32 to vector<256x1xf32>
      %57 = arith.addf %53, %56 : vector<256x1xf32>
      %58 = math.rsqrt %57 : vector<256x1xf32>
      %59 = vector.broadcast %58 : vector<256x1xf32> to vector<256x128xf32>
      %60 = arith.mulf %55, %59 : vector<256x128xf32>
      %61 = vector.broadcast %22 : vector<1x128xf32> to vector<256x128xf32>
      %62 = arith.mulf %60, %61 : vector<256x128xf32>
      %63 = vector.broadcast %24 : vector<1x128xf32> to vector<256x128xf32>
      %64 = arith.addf %62, %63 : vector<256x128xf32>
      %65 = arith.truncf %64 : vector<256x128xf32> to vector<256x128xbf16>
      %66 = arith.index_cast %1 : i32 to index
      %c0_24 = arith.constant 0 : index
      %67 = vector.load %arg11[%66, %c0_24] : memref<256x128xbf16, #tpu.memory_space<vmem>>, vector<256x128xbf16>
      tpu.vector_store %arg11[%66, %c0_24], %65 {strides = array<i32>} : memref<256x128xbf16, #tpu.memory_space<vmem>>, vector<256x128xbf16>,
    } else {
    }
    %c1_i32 = arith.constant 1 : i32
    %12 = arith.cmpi eq, %arg1, %c1_i32 : i32
    %13 = arith.extui %12 : i1 to i32
    %c0_i32_5 = arith.constant 0 : i32
    %14 = arith.cmpi ne, %13, %c0_i32_5 : i32
    scf.if %14 {
      %15 = arith.index_cast %1 : i32 to index
      %c0 = arith.constant 0 : index
      %16 = vector.load %arg4[%15, %c0] : memref<256x256xbf16, #tpu.memory_space<vmem>>, vector<256x256xbf16>
      %c0_6 = arith.constant 0 : index
      %c0_7 = arith.constant 0 : index
      %17 = vector.load %arg11[%c0_6, %c0_7] : memref<256x128xbf16, #tpu.memory_space<vmem>>, vector<256x128xbf16>
      %cst = arith.constant dense<0.000000e+00> : vector<256x128xf32>
      %18 = tpu.matmul %16, %17, %cst {dimension_numbers = #tpu.dot_dimension_numbers<[1], [0], [0], [1], [0, 0, 1, 1], [], []>} : vector<256x256xbf16>, vector<256x128xbf16>, vector<256x128xf32> -> vector<256x128xf32>
      %19 = arith.index_cast %1 : i32 to index
      %c0_8 = arith.constant 0 : index
      %20 = vector.load %arg5[%19, %c0_8] : memref<256x1xf32, #tpu.memory_space<vmem>>, vector<256x1xf32>
      %21 = vector.broadcast %20 : vector<256x1xf32> to vector<256x128xf32>
      %22 = arith.mulf %18, %21 : vector<256x128xf32>
      %23 = arith.index_cast %1 : i32 to index
      %c0_9 = arith.constant 0 : index
      %24 = vector.load %arg10[%23, %c0_9] : memref<256x128xf32, #tpu.memory_space<vmem>>, vector<256x128xf32>
      %25 = arith.addf %22, %24 : vector<256x128xf32>
      %26 = arith.index_cast %1 : i32 to index
      %c0_10 = arith.constant 0 : index
      %27 = vector.load %arg10[%26, %c0_10] : memref<256x128xf32, #tpu.memory_space<vmem>>, vector<256x128xf32>
      tpu.vector_store %arg10[%26, %c0_10], %25 {strides = array<i32>} : memref<256x128xf32, #tpu.memory_space<vmem>>, vector<256x128xf32>,
    } else {
    }
    return
  }
  func.func @transform_0(%arg0: i32, %arg1: i32, %arg2: i32) -> (i32, i32) {
    %c0_i32 = arith.constant 0 : i32
    %c0_i32_0 = arith.constant 0 : i32
    %c0_i32_1 = arith.constant 0 : i32
    return %c0_i32, %c0_i32_0 : i32, i32
  }
  func.func @transform_1(%arg0: i32, %arg1: i32, %arg2: i32) -> (i32, i32) {
    %c0_i32 = arith.constant 0 : i32
    %c0_i32_0 = arith.constant 0 : i32
    %c0_i32_1 = arith.constant 0 : i32
    return %c0_i32, %c0_i32_0 : i32, i32
  }
  func.func @transform_2(%arg0: i32, %arg1: i32, %arg2: i32) -> (i32, i32) {
    %c0_i32 = arith.constant 0 : i32
    %c0_i32_0 = arith.constant 0 : i32
    %c0_i32_1 = arith.constant 0 : i32
    return %c0_i32, %c0_i32_0 : i32, i32
  }
  func.func @transform_3(%arg0: i32, %arg1: i32, %arg2: i32) -> (i32, i32, i32) {
    %c0_i32 = arith.constant 0 : i32
    %c0_i32_0 = arith.constant 0 : i32
    %c0_i32_1 = arith.constant 0 : i32
    return %arg0, %c0_i32, %c0_i32_0 : i32, i32, i32
  }
  func.func @transform_4(%arg0: i32, %arg1: i32, %arg2: i32) -> (i32, i32, i32) {
    %c0_i32 = arith.constant 0 : i32
    %c0_i32_0 = arith.constant 0 : i32
    %c0_i32_1 = arith.constant 0 : i32
    return %arg0, %c0_i32, %c0_i32_0 : i32, i32, i32
  }
  func.func @transform_5(%arg0: i32, %arg1: i32, %arg2: i32) -> (i32, i32, i32) {
    %c0_i32 = arith.constant 0 : i32
    %c0_i32_0 = arith.constant 0 : i32
    %c0_i32_1 = arith.constant 0 : i32
    return %arg0, %c0_i32, %c0_i32_0 : i32, i32, i32
  }
  func.func @transform_6(%arg0: i32, %arg1: i32, %arg2: i32) -> (i32, i32, i32) {
    %c0_i32 = arith.constant 0 : i32
    %c0_i32_0 = arith.constant 0 : i32
    %c0_i32_1 = arith.constant 0 : i32
    return %arg0, %c0_i32, %c0_i32_0 : i32, i32, i32
  }
  func.func @transform_7(%arg0: i32, %arg1: i32, %arg2: i32) -> (i32, i32) {
    %c0_i32 = arith.constant 0 : i32
    %c0_i32_0 = arith.constant 0 : i32
    %c0_i32_1 = arith.constant 0 : i32
    return %c0_i32, %c0_i32_0 : i32, i32
  }
}

</mosaic_0001>

<llo_original>
// kernel: gnn_encoder_forward.2
$region0: #{gnn_encoder_forward.2}
  #allocation0 [shape = 'u32[]', space=smem, size = 0x4, offset = 0x4, fixed_abs, tag = 'smem constant byte address 0x4 - core index']
  #allocation1 [shape = 'u32[144,128]{1,0:T(1,128)}', space=vmem, size = 0x12000, scoped, tag = 'internal scratch']
  %s0 = inlined_call_operand.vmem [shape: f32[256,128], index: 0, kind: input, shape index: {}]
  %s1 = inlined_call_operand.vmem [shape: f32[128,128], index: 1, kind: input, shape index: {}]
  %s2 = inlined_call_operand.vmem [shape: f32[1,128], index: 2, kind: input, shape index: {}]
  %s3 = inlined_call_operand.vmem [shape: f32[1,128], index: 3, kind: input, shape index: {}]
  %s4 = inlined_call_operand.vmem [shape: f32[1,128], index: 4, kind: input, shape index: {}]
  %s5 = inlined_call_operand.vmem [shape: f32[256,128], index: 5, kind: output, shape index: {}]
  %s6 = sld [smem:[#allocation0]]
  $region30: #{gnn_encoder_forward.2} parent=0
    _
  %s8 = ssub.s32 1, %s6
  %s9 = scalar_select 0, %s8, %s6
  // Predicated region
  $region2: #{gnn_encoder_forward.2} parent=0 // pred_check
    _
  $region3: #{gnn_encoder_forward.2} parent=0 // pred_check_branch
    %11 = sbr.rel (0) target = $region5
  $region4: #{gnn_encoder_forward.2} parent=0 // pred_region
    _
  $region5: #{gnn_encoder_forward.2} parent=0 // pred_fallthru
    _
  // Predicated region
  $region6: #{gnn_encoder_forward.2} parent=0 // pred_check
    _
  $region7: #{gnn_encoder_forward.2} parent=0 // pred_check_branch
    %13 = sbr.rel (0) target = $region9
  $region8: #{gnn_encoder_forward.2} parent=0 // pred_region
    _
  $region9: #{gnn_encoder_forward.2} parent=0 // pred_fallthru
    _
  // Predicated region
  $region10: #{gnn_encoder_forward.2} parent=0 // pred_check
    _
  $region11: #{gnn_encoder_forward.2} parent=0 // pred_check_branch
    %15 = sbr.rel (0) target = $region13
  $region12: #{gnn_encoder_forward.2} parent=0 // pred_region
    _
  $region13: #{gnn_encoder_forward.2} parent=0 // pred_fallthru
    _
  // Predicated region
  $region14: #{gnn_encoder_forward.2} parent=0 // pred_check
    _
  $region15: #{gnn_encoder_forward.2} parent=0 // pred_check_branch
    %17 = sbr.rel (0) target = $region17
  $region16: #{gnn_encoder_forward.2} parent=0 // pred_region
    _
  $region17: #{gnn_encoder_forward.2} parent=0 // pred_fallthru
    _
  // Predicated region
  $region18: #{gnn_encoder_forward.2} parent=0 // pred_check
    _
  $region19: #{gnn_encoder_forward.2} parent=0 // pred_check_branch
    %19 = sbr.rel (0) target = $region21
  $region20: #{gnn_encoder_forward.2} parent=0 // pred_region
    _
  $region21: #{gnn_encoder_forward.2} parent=0 // pred_fallthru
    _
  %v20 = vld [vmem:[%s0] sm:$0xff]
  %v21 = vld [vmem:[%s0 + $0x8] sm:$0xff]
  %v22 = vld [vmem:[%s0 + $0x10] sm:$0xff]
  %v23 = vld [vmem:[%s0 + $0x18] sm:$0xff]
  %v24 = vld [vmem:[%s0 + $0x20] sm:$0xff]
  %v25 = vld [vmem:[%s0 + $0x28] sm:$0xff]
  %v26 = vld [vmem:[%s0 + $0x30] sm:$0xff]
  %v27 = vld [vmem:[%s0 + $0x38] sm:$0xff]
  %v28 = vld [vmem:[%s0 + $0x40] sm:$0xff]
  %v29 = vld [vmem:[%s0 + $0x48] sm:$0xff]
  %v30 = vld [vmem:[%s0 + $0x50] sm:$0xff]
  %v31 = vld [vmem:[%s0 + $0x58] sm:$0xff]
  %v32 = vld [vmem:[%s0 + $0x60] sm:$0xff]
  %v33 = vld [vmem:[%s0 + $0x68] sm:$0xff]
  %v34 = vld [vmem:[%s0 + $0x70] sm:$0xff]
  %v35 = vld [vmem:[%s0 + $0x78] sm:$0xff]
  %v36 = vld [vmem:[%s0 + $0x80] sm:$0xff]
  %v37 = vld [vmem:[%s0 + $0x88] sm:$0xff]
  %v38 = vld [vmem:[%s0 + $0x90] sm:$0xff]
  %v39 = vld [vmem:[%s0 + $0x98] sm:$0xff]
  %v40 = vld [vmem:[%s0 + $0xa0] sm:$0xff]
  %v41 = vld [vmem:[%s0 + $0xa8] sm:$0xff]
  %v42 = vld [vmem:[%s0 + $0xb0] sm:$0xff]
  %v43 = vld [vmem:[%s0 + $0xb8] sm:$0xff]
  %v44 = vld [vmem:[%s0 + $0xc0] sm:$0xff]
  %v45 = vld [vmem:[%s0 + $0xc8] sm:$0xff]
  %v46 = vld [vmem:[%s0 + $0xd0] sm:$0xff]
  %v47 = vld [vmem:[%s0 + $0xd8] sm:$0xff]
  %v48 = vld [vmem:[%s0 + $0xe0] sm:$0xff]
  %v49 = vld [vmem:[%s0 + $0xe8] sm:$0xff]
  %v50 = vld [vmem:[%s0 + $0xf0] sm:$0xff]
  %v51 = vld [vmem:[%s0 + $0xf8] sm:$0xff]
  %v52 = vld [vmem:[%s1] sm:$0xff]
  %v53 = vld [vmem:[%s1 + $0x8] sm:$0xff]
  %v54 = vld [vmem:[%s1 + $0x10] sm:$0xff]
  %v55 = vld [vmem:[%s1 + $0x18] sm:$0xff]
  %v56 = vld [vmem:[%s1 + $0x20] sm:$0xff]
  %v57 = vld [vmem:[%s1 + $0x28] sm:$0xff]
  %v58 = vld [vmem:[%s1 + $0x30] sm:$0xff]
  %v59 = vld [vmem:[%s1 + $0x38] sm:$0xff]
  %v60 = vld [vmem:[%s1 + $0x40] sm:$0xff]
  %v61 = vld [vmem:[%s1 + $0x48] sm:$0xff]
  %v62 = vld [vmem:[%s1 + $0x50] sm:$0xff]
  %v63 = vld [vmem:[%s1 + $0x58] sm:$0xff]
  %v64 = vld [vmem:[%s1 + $0x60] sm:$0xff]
  %v65 = vld [vmem:[%s1 + $0x68] sm:$0xff]
  %v66 = vld [vmem:[%s1 + $0x70] sm:$0xff]
  %v67 = vld [vmem:[%s1 + $0x78] sm:$0xff]
  %v68 = vld [vmem:[%s2] sm:$0x1]
  %v69 = vld [vmem:[%s3] sm:$0x1]
  %v70 = vld [vmem:[%s4] sm:$0x1]
  %v72 = vlaneseq
  %v73 = vshrl.u32 %v72, 7
  %v74 = vsub.s32 0, %v73
  %v75 = vrot.slane %v68, %v74
  %77 = vmatprep.subr.mxu0 0.0
  %78 = vmatpush1.msra.mxu0 %v67
  %79 = vmatprep.subr.mxu0 0.0
  %80 = vmatpush1.msra.mxu0 %v66
  %81 = vmatprep.subr.mxu0 0.0
  %82 = vmatpush1.msra.mxu0 %v65
  %83 = vmatprep.subr.mxu0 0.0
  %84 = vmatpush1.msra.mxu0 %v64
  %85 = vmatprep.subr.mxu0 0.0
  %86 = vmatpush1.msra.mxu0 %v63
  %87 = vmatprep.subr.mxu0 0.0
  %88 = vmatpush1.msra.mxu0 %v62
  %89 = vmatprep.subr.mxu0 0.0
  %90 = vmatpush1.msra.mxu0 %v61
  %91 = vmatprep.subr.mxu0 0.0
  %92 = vmatpush1.msra.mxu0 %v60
  %93 = vmatprep.subr.mxu0 0.0
  %94 = vmatpush1.msra.mxu0 %v59
  %95 = vmatprep.subr.mxu0 0.0
  %96 = vmatpush1.msra.mxu0 %v58
  %97 = vmatprep.subr.mxu0 0.0
  %98 = vmatpush1.msra.mxu0 %v57
  %99 = vmatprep.subr.mxu0 0.0
  %100 = vmatpush1.msra.mxu0 %v56
  %101 = vmatprep.subr.mxu0 0.0
  %102 = vmatpush1.msra.mxu0 %v55
  %103 = vmatprep.subr.mxu0 0.0
  %104 = vmatpush1.msra.mxu0 %v54
  %105 = vmatprep.subr.mxu0 0.0
  %106 = vmatpush1.msra.mxu0 %v53
  %107 = vmatprep.subr.mxu0 0.0
  %108 = vmatpush1.msra.mxu0 %v52
  %109 = vmatprep.subr.mxu0 0.0
  %110 = vmatpush2.msra.mxu0 0.0
  %111 = vmatprep.subr.mxu0 0.0
  %112 = vmatpush2.msra.mxu0 0.0
  %113 = vmatprep.subr.mxu0 0.0
  %114 = vmatpush2.msra.mxu0 0.0
  %115 = vmatprep.subr.mxu0 0.0
  %116 = vmatpush2.msra.mxu0 0.0
  %117 = vmatprep.subr.mxu0 0.0
  %118 = vmatpush2.msra.mxu0 0.0
  %119 = vmatprep.subr.mxu0 0.0
  %120 = vmatpush2.msra.mxu0 0.0
  %121 = vmatprep.subr.mxu0 0.0
  %122 = vmatpush2.msra.mxu0 0.0
  %123 = vmatprep.subr.mxu0 0.0
  %124 = vmatpush2.msra.mxu0 0.0
  %125 = vmatprep.subr.mxu0 0.0
  %126 = vmatpush2.msra.mxu0 0.0
  %127 = vmatprep.subr.mxu0 0.0
  %128 = vmatpush2.msra.mxu0 0.0
  %129 = vmatprep.subr.mxu0 0.0
  %130 = vmatpush2.msra.mxu0 0.0
  %131 = vmatprep.subr.mxu0 0.0
  %132 = vmatpush2.msra.mxu0 0.0
  %133 = vmatprep.subr.mxu0 0.0
  %134 = vmatpush2.msra.mxu0 0.0
  %135 = vmatprep.subr.mxu0 0.0
  %136 = vmatpush2.msra.mxu0 0.0
  %137 = vmatprep.subr.mxu0 0.0
  %138 = vmatpush2.msra.mxu0 0.0
  %139 = vmatprep.subr.mxu0 0.0
  %140 = vmatpush2.msra.mxu0 0.0
  %141 = vmatprep.mubr.f32.mxu0 0.0
  %142 = vmatmul.mubr.f32.gmra.mxu0 %v20
  %v143 = vpop.f32.mrf.mxu0
  %v144 = vadd.f32 %v75, %v143
  %v145 = vpop.f32.mrf.mxu0
  %146 = vmatprep.mubr.f32.mxu0 0.0
  %147 = vmatmul.mubr.f32.gmra.mxu0 %v21
  %v148 = vpop.f32.mrf.mxu0
  %v149 = vadd.f32 %v75, %v148
  %v150 = vpop.f32.mrf.mxu0
  %151 = vmatprep.mubr.f32.mxu0 0.0
  %152 = vmatmul.mubr.f32.gmra.mxu0 %v22
  %v153 = vpop.f32.mrf.mxu0
  %v154 = vadd.f32 %v75, %v153
  %v155 = vpop.f32.mrf.mxu0
  %156 = vmatprep.mubr.f32.mxu0 0.0
  %157 = vmatmul.mubr.f32.gmra.mxu0 %v23
  %v158 = vpop.f32.mrf.mxu0
  %v159 = vadd.f32 %v75, %v158
  %v160 = vpop.f32.mrf.mxu0
  %161 = vmatprep.mubr.f32.mxu0 0.0
  %162 = vmatmul.mubr.f32.gmra.mxu0 %v24
  %v163 = vpop.f32.mrf.mxu0
  %v164 = vadd.f32 %v75, %v163
  %v165 = vpop.f32.mrf.mxu0
  %166 = vmatprep.mubr.f32.mxu0 0.0
  %167 = vmatmul.mubr.f32.gmra.mxu0 %v25
  %v168 = vpop.f32.mrf.mxu0
  %v169 = vadd.f32 %v75, %v168
  %v170 = vpop.f32.mrf.mxu0
  %171 = vmatprep.mubr.f32.mxu0 0.0
  %172 = vmatmul.mubr.f32.gmra.mxu0 %v26
  %v173 = vpop.f32.mrf.mxu0
  %v174 = vadd.f32 %v75, %v173
  %v175 = vpop.f32.mrf.mxu0
  %176 = vmatprep.mubr.f32.mxu0 0.0
  %177 = vmatmul.mubr.f32.gmra.mxu0 %v27
  %v178 = vpop.f32.mrf.mxu0
  %v179 = vadd.f32 %v75, %v178
  %v180 = vpop.f32.mrf.mxu0
  %181 = vmatprep.mubr.f32.mxu0 0.0
  %182 = vmatmul.mubr.f32.gmra.mxu0 %v28
  %v183 = vpop.f32.mrf.mxu0
  %v184 = vadd.f32 %v75, %v183
  %v185 = vpop.f32.mrf.mxu0
  %186 = vmatprep.mubr.f32.mxu0 0.0
  %187 = vmatmul.mubr.f32.gmra.mxu0 %v29
  %v188 = vpop.f32.mrf.mxu0
  %v189 = vadd.f32 %v75, %v188
  %v190 = vpop.f32.mrf.mxu0
  %191 = vmatprep.mubr.f32.mxu0 0.0
  %192 = vmatmul.mubr.f32.gmra.mxu0 %v30
  %v193 = vpop.f32.mrf.mxu0
  %v194 = vadd.f32 %v75, %v193
  %v195 = vpop.f32.mrf.mxu0
  %196 = vmatprep.mubr.f32.mxu0 0.0
  %197 = vmatmul.mubr.f32.gmra.mxu0 %v31
  %v198 = vpop.f32.mrf.mxu0
  %v199 = vadd.f32 %v75, %v198
  %v200 = vpop.f32.mrf.mxu0
  %201 = vmatprep.mubr.f32.mxu0 0.0
  %202 = vmatmul.mubr.f32.gmra.mxu0 %v32
  %v203 = vpop.f32.mrf.mxu0
  %v204 = vadd.f32 %v75, %v203
  %v205 = vpop.f32.mrf.mxu0
  %206 = vmatprep.mubr.f32.mxu0 0.0
  %207 = vmatmul.mubr.f32.gmra.mxu0 %v33
  %v208 = vpop.f32.mrf.mxu0
  %v209 = vadd.f32 %v75, %v208
  %v210 = vpop.f32.mrf.mxu0
  %211 = vmatprep.mubr.f32.mxu0 0.0
  %212 = vmatmul.mubr.f32.gmra.mxu0 %v34
  %v213 = vpop.f32.mrf.mxu0
  %v214 = vadd.f32 %v75, %v213
  %v215 = vpop.f32.mrf.mxu0
  %216 = vmatprep.mubr.f32.mxu0 0.0
  %217 = vmatmul.mubr.f32.gmra.mxu0 %v35
  %v218 = vpop.f32.mrf.mxu0
  %v219 = vadd.f32 %v75, %v218
  %v220 = vpop.f32.mrf.mxu0
  %221 = vmatprep.mubr.f32.mxu0 0.0
  %222 = vmatmul.mubr.f32.gmra.mxu0 %v36
  %v223 = vpop.f32.mrf.mxu0
  %v224 = vadd.f32 %v75, %v223
  %v225 = vpop.f32.mrf.mxu0
  %226 = vmatprep.mubr.f32.mxu0 0.0
  %227 = vmatmul.mubr.f32.gmra.mxu0 %v37
  %v228 = vpop.f32.mrf.mxu0
  %v229 = vadd.f32 %v75, %v228
  %v230 = vpop.f32.mrf.mxu0
  %231 = vmatprep.mubr.f32.mxu0 0.0
  %232 = vmatmul.mubr.f32.gmra.mxu0 %v38
  %v233 = vpop.f32.mrf.mxu0
  %v234 = vadd.f32 %v75, %v233
  %v235 = vpop.f32.mrf.mxu0
  %236 = vmatprep.mubr.f32.mxu0 0.0
  %237 = vmatmul.mubr.f32.gmra.mxu0 %v39
  %v238 = vpop.f32.mrf.mxu0
  %v239 = vadd.f32 %v75, %v238
  %v240 = vpop.f32.mrf.mxu0
  %241 = vmatprep.mubr.f32.mxu0 0.0
  %242 = vmatmul.mubr.f32.gmra.mxu0 %v40
  %v243 = vpop.f32.mrf.mxu0
  %v244 = vadd.f32 %v75, %v243
  %v245 = vpop.f32.mrf.mxu0
  %246 = vmatprep.mubr.f32.mxu0 0.0
  %247 = vmatmul.mubr.f32.gmra.mxu0 %v41
  %v248 = vpop.f32.mrf.mxu0
  %v249 = vadd.f32 %v75, %v248
  %v250 = vpop.f32.mrf.mxu0
  %251 = vmatprep.mubr.f32.mxu0 0.0
  %252 = vmatmul.mubr.f32.gmra.mxu0 %v42
  %v253 = vpop.f32.mrf.mxu0
  %v254 = vadd.f32 %v75, %v253
  %v255 = vpop.f32.mrf.mxu0
  %256 = vmatprep.mubr.f32.mxu0 0.0
  %257 = vmatmul.mubr.f32.gmra.mxu0 %v43
  %v258 = vpop.f32.mrf.mxu0
  %v259 = vadd.f32 %v75, %v258
  %v260 = vpop.f32.mrf.mxu0
  %261 = vmatprep.mubr.f32.mxu0 0.0
  %262 = vmatmul.mubr.f32.gmra.mxu0 %v44
  %v263 = vpop.f32.mrf.mxu0
  %v264 = vadd.f32 %v75, %v263
  %v265 = vpop.f32.mrf.mxu0
  %266 = vmatprep.mubr.f32.mxu0 0.0
  %267 = vmatmul.mubr.f32.gmra.mxu0 %v45
  %v268 = vpop.f32.mrf.mxu0
  %v269 = vadd.f32 %v75, %v268
  %v270 = vpop.f32.mrf.mxu0
  %271 = vmatprep.mubr.f32.mxu0 0.0
  %272 = vmatmul.mubr.f32.gmra.mxu0 %v46
  %v273 = vpop.f32.mrf.mxu0
  %v274 = vadd.f32 %v75, %v273
  %v275 = vpop.f32.mrf.mxu0
  %276 = vmatprep.mubr.f32.mxu0 0.0
  %277 = vmatmul.mubr.f32.gmra.mxu0 %v47
  %v278 = vpop.f32.mrf.mxu0
  %v279 = vadd.f32 %v75, %v278
  %v280 = vpop.f32.mrf.mxu0
  %281 = vmatprep.mubr.f32.mxu0 0.0
  %282 = vmatmul.mubr.f32.gmra.mxu0 %v48
  %v283 = vpop.f32.mrf.mxu0
  %v284 = vadd.f32 %v75, %v283
  %v285 = vpop.f32.mrf.mxu0
  %286 = vmatprep.mubr.f32.mxu0 0.0
  %287 = vmatmul.mubr.f32.gmra.mxu0 %v49
  %v288 = vpop.f32.mrf.mxu0
  %v289 = vadd.f32 %v75, %v288
  %v290 = vpop.f32.mrf.mxu0
  %291 = vmatprep.mubr.f32.mxu0 0.0
  %292 = vmatmul.mubr.f32.gmra.mxu0 %v50
  %v293 = vpop.f32.mrf.mxu0
  %v294 = vadd.f32 %v75, %v293
  %v295 = vpop.f32.mrf.mxu0
  %296 = vmatprep.mubr.f32.mxu0 0.0
  %297 = vmatmul.mubr.f32.gmra.mxu0 %v51
  %v298 = vpop.f32.mrf.mxu0
  %v299 = vadd.f32 %v75, %v298
  %v300 = vpop.f32.mrf.mxu0
  %301 = vdwg.mxu0
  %v302 = vxor.u32 %v144, 2147483648
  %v303 = vxor.u32 %v149, 2147483648
  %v304 = vxor.u32 %v154, 2147483648
  %v305 = vxor.u32 %v159, 2147483648
  %v306 = vxor.u32 %v164, 2147483648
  %v307 = vxor.u32 %v169, 2147483648
  %v308 = vxor.u32 %v174, 2147483648
  %v309 = vxor.u32 %v179, 2147483648
  %v310 = vxor.u32 %v184, 2147483648
  %v311 = vxor.u32 %v189, 2147483648
  %v312 = vxor.u32 %v194, 2147483648
  %v313 = vxor.u32 %v199, 2147483648
  %v314 = vxor.u32 %v204, 2147483648
  %v315 = vxor.u32 %v209, 2147483648
  %v316 = vxor.u32 %v214, 2147483648
  %v317 = vxor.u32 %v219, 2147483648
  %v318 = vxor.u32 %v224, 2147483648
  %v319 = vxor.u32 %v229, 2147483648
  %v320 = vxor.u32 %v234, 2147483648
  %v321 = vxor.u32 %v239, 2147483648
  %v322 = vxor.u32 %v244, 2147483648
  %v323 = vxor.u32 %v249, 2147483648
  %v324 = vxor.u32 %v254, 2147483648
  %v325 = vxor.u32 %v259, 2147483648
  %v326 = vxor.u32 %v264, 2147483648
  %v327 = vxor.u32 %v269, 2147483648
  %v328 = vxor.u32 %v274, 2147483648
  %v329 = vxor.u32 %v279, 2147483648
  %v330 = vxor.u32 %v284, 2147483648
  %v331 = vxor.u32 %v289, 2147483648
  %v332 = vxor.u32 %v294, 2147483648
  %v333 = vxor.u32 %v299, 2147483648
  %v334 = vmul.f32 %v302, 1.442695
  %v335 = vpow.pop %v334
  %v336 = vmul.f32 %v303, 1.442695
  %v337 = vpow.pop %v336
  %v338 = vmul.f32 %v304, 1.442695
  %v339 = vpow.pop %v338
  %v340 = vmul.f32 %v305, 1.442695
  %v341 = vpow.pop %v340
  %v342 = vmul.f32 %v306, 1.442695
  %v343 = vpow.pop %v342
  %v344 = vmul.f32 %v307, 1.442695
  %v345 = vpow.pop %v344
  %v346 = vmul.f32 %v308, 1.442695
  %v347 = vpow.pop %v346
  %v348 = vmul.f32 %v309, 1.442695
  %v349 = vpow.pop %v348
  %v350 = vmul.f32 %v310, 1.442695
  %v351 = vpow.pop %v350
  %v352 = vmul.f32 %v311, 1.442695
  %v353 = vpow.pop %v352
  %v354 = vmul.f32 %v312, 1.442695
  %v355 = vpow.pop %v354
  %v356 = vmul.f32 %v313, 1.442695
  %v357 = vpow.pop %v356
  %v358 = vmul.f32 %v314, 1.442695
  %v359 = vpow.pop %v358
  %v360 = vmul.f32 %v315, 1.442695
  %v361 = vpow.pop %v360
  %v362 = vmul.f32 %v316, 1.442695
  %v363 = vpow.pop %v362
  %v364 = vmul.f32 %v317, 1.442695
  %v365 = vpow.pop %v364
  %v366 = vmul.f32 %v318, 1.442695
  %v367 = vpow.pop %v366
  %v368 = vmul.f32 %v319, 1.442695
  %v369 = vpow.pop %v368
  %v370 = vmul.f32 %v320, 1.442695
  %v371 = vpow.pop %v370
  %v372 = vmul.f32 %v321, 1.442695
  %v373 = vpow.pop %v372
  %v374 = vmul.f32 %v322, 1.442695
  %v375 = vpow.pop %v374
  %v376 = vmul.f32 %v323, 1.442695
  %v377 = vpow.pop %v376
  %v378 = vmul.f32 %v324, 1.442695
  %v379 = vpow.pop %v378
  %v380 = vmul.f32 %v325, 1.442695
  %v381 = vpow.pop %v380
  %v382 = vmul.f32 %v326, 1.442695
  %v383 = vpow.pop %v382
  %v384 = vmul.f32 %v327, 1.442695
  %v385 = vpow.pop %v384
  %v386 = vmul.f32 %v328, 1.442695
  %v387 = vpow.pop %v386
  %v388 = vmul.f32 %v329, 1.442695
  %v389 = vpow.pop %v388
  %v390 = vmul.f32 %v330, 1.442695
  %v391 = vpow.pop %v390
  %v392 = vmul.f32 %v331, 1.442695
  %v393 = vpow.pop %v392
  %v394 = vmul.f32 %v332, 1.442695
  %v395 = vpow.pop %v394
  %v396 = vmul.f32 %v333, 1.442695
  %v397 = vpow.pop %v396
  %v398 = vadd.f32 %v335, 1.0
  %v399 = vadd.f32 %v337, 1.0
  %v400 = vadd.f32 %v339, 1.0
  %v401 = vadd.f32 %v341, 1.0
  %v402 = vadd.f32 %v343, 1.0
  %v403 = vadd.f32 %v345, 1.0
  %v404 = vadd.f32 %v347, 1.0
  %v405 = vadd.f32 %v349, 1.0
  %v406 = vadd.f32 %v351, 1.0
  %v407 = vadd.f32 %v353, 1.0
  %v408 = vadd.f32 %v355, 1.0
  %v409 = vadd.f32 %v357, 1.0
  %v410 = vadd.f32 %v359, 1.0
  %v411 = vadd.f32 %v361, 1.0
  %v412 = vadd.f32 %v363, 1.0
  %v413 = vadd.f32 %v365, 1.0
  %v414 = vadd.f32 %v367, 1.0
  %v415 = vadd.f32 %v369, 1.0
  %v416 = vadd.f32 %v371, 1.0
  %v417 = vadd.f32 %v373, 1.0
  %v418 = vadd.f32 %v375, 1.0
  %v419 = vadd.f32 %v377, 1.0
  %v420 = vadd.f32 %v379, 1.0
  %v421 = vadd.f32 %v381, 1.0
  %v422 = vadd.f32 %v383, 1.0
  %v423 = vadd.f32 %v385, 1.0
  %v424 = vadd.f32 %v387, 1.0
  %v425 = vadd.f32 %v389, 1.0
  %v426 = vadd.f32 %v391, 1.0
  %v427 = vadd.f32 %v393, 1.0
  %v428 = vadd.f32 %v395, 1.0
  %v429 = vadd.f32 %v397, 1.0
  %v430 = vrcp.pop %v398
  %v431 = vmul.f32 1.0, %v430
  %v432 = vrcp.pop %v399
  %v433 = vmul.f32 1.0, %v432
  %v434 = vrcp.pop %v400
  %v435 = vmul.f32 1.0, %v434
  %v436 = vrcp.pop %v401
  %v437 = vmul.f32 1.0, %v436
  %v438 = vrcp.pop %v402
  %v439 = vmul.f32 1.0, %v438
  %v440 = vrcp.pop %v403
  %v441 = vmul.f32 1.0, %v440
  %v442 = vrcp.pop %v404
  %v443 = vmul.f32 1.0, %v442
  %v444 = vrcp.pop %v405
  %v445 = vmul.f32 1.0, %v444
  %v446 = vrcp.pop %v406
  %v447 = vmul.f32 1.0, %v446
  %v448 = vrcp.pop %v407
  %v449 = vmul.f32 1.0, %v448
  %v450 = vrcp.pop %v408
  %v451 = vmul.f32 1.0, %v450
  %v452 = vrcp.pop %v409
  %v453 = vmul.f32 1.0, %v452
  %v454 = vrcp.pop %v410
  %v455 = vmul.f32 1.0, %v454
  %v456 = vrcp.pop %v411
  %v457 = vmul.f32 1.0, %v456
  %v458 = vrcp.pop %v412
  %v459 = vmul.f32 1.0, %v458
  %v460 = vrcp.pop %v413
  %v461 = vmul.f32 1.0, %v460
  %v462 = vrcp.pop %v414
  %v463 = vmul.f32 1.0, %v462
  %v464 = vrcp.pop %v415
  %v465 = vmul.f32 1.0, %v464
  %v466 = vrcp.pop %v416
  %v467 = vmul.f32 1.0, %v466
  %v468 = vrcp.pop %v417
  %v469 = vmul.f32 1.0, %v468
  %v470 = vrcp.pop %v418
  %v471 = vmul.f32 1.0, %v470
  %v472 = vrcp.pop %v419
  %v473 = vmul.f32 1.0, %v472
  %v474 = vrcp.pop %v420
  %v475 = vmul.f32 1.0, %v474
  %v476 = vrcp.pop %v421
  %v477 = vmul.f32 1.0, %v476
  %v478 = vrcp.pop %v422
  %v479 = vmul.f32 1.0, %v478
  %v480 = vrcp.pop %v423
  %v481 = vmul.f32 1.0, %v480
  %v482 = vrcp.pop %v424
  %v483 = vmul.f32 1.0, %v482
  %v484 = vrcp.pop %v425
  %v485 = vmul.f32 1.0, %v484
  %v486 = vrcp.pop %v426
  %v487 = vmul.f32 1.0, %v486
  %v488 = vrcp.pop %v427
  %v489 = vmul.f32 1.0, %v488
  %v490 = vrcp.pop %v428
  %v491 = vmul.f32 1.0, %v490
  %v492 = vrcp.pop %v429
  %v493 = vmul.f32 1.0, %v492
  %v494 = vmul.f32 %v144, %v431
  %v495 = vmul.f32 %v149, %v433
  %v496 = vmul.f32 %v154, %v435
  %v497 = vmul.f32 %v159, %v437
  %v498 = vmul.f32 %v164, %v439
  %v499 = vmul.f32 %v169, %v441
  %v500 = vmul.f32 %v174, %v443
  %v501 = vmul.f32 %v179, %v445
  %v502 = vmul.f32 %v184, %v447
  %v503 = vmul.f32 %v189, %v449
  %v504 = vmul.f32 %v194, %v451
  %v505 = vmul.f32 %v199, %v453
  %v506 = vmul.f32 %v204, %v455
  %v507 = vmul.f32 %v209, %v457
  %v508 = vmul.f32 %v214, %v459
  %v509 = vmul.f32 %v219, %v461
  %v510 = vmul.f32 %v224, %v463
  %v511 = vmul.f32 %v229, %v465
  %v512 = vmul.f32 %v234, %v467
  %v513 = vmul.f32 %v239, %v469
  %v514 = vmul.f32 %v244, %v471
  %v515 = vmul.f32 %v249, %v473
  %v516 = vmul.f32 %v254, %v475
  %v517 = vmul.f32 %v259, %v477
  %v518 = vmul.f32 %v264, %v479
  %v519 = vmul.f32 %v269, %v481
  %v520 = vmul.f32 %v274, %v483
  %v521 = vmul.f32 %v279, %v485
  %v522 = vmul.f32 %v284, %v487
  %v523 = vmul.f32 %v289, %v489
  %v524 = vmul.f32 %v294, %v491
  %v525 = vmul.f32 %v299, %v493
  %v526 = vlaneseq
  %v527 = vand.u32 %v526, 127
  %vm528 = vcmp.lt.s32.totalorder %v527, 32
  %v529 = vsel %vm528, 1, 0
  %v530 = vcvt.s32.f32 %v529
  %v531 = vmul.f32 %v494, %v530
  %v532 = vmul.f32 %v495, %v530
  %v533 = vmul.f32 %v496, %v530
  %v534 = vmul.f32 %v497, %v530
  %v535 = vmul.f32 %v498, %v530
  %v536 = vmul.f32 %v499, %v530
  %v537 = vmul.f32 %v500, %v530
  %v538 = vmul.f32 %v501, %v530
  %v539 = vmul.f32 %v502, %v530
  %v540 = vmul.f32 %v503, %v530
  %v541 = vmul.f32 %v504, %v530
  %v542 = vmul.f32 %v505, %v530
  %v543 = vmul.f32 %v506, %v530
  %v544 = vmul.f32 %v507, %v530
  %v545 = vmul.f32 %v508, %v530
  %v546 = vmul.f32 %v509, %v530
  %v547 = vmul.f32 %v510, %v530
  %v548 = vmul.f32 %v511, %v530
  %v549 = vmul.f32 %v512, %v530
  %v550 = vmul.f32 %v513, %v530
  %v551 = vmul.f32 %v514, %v530
  %v552 = vmul.f32 %v515, %v530
  %v553 = vmul.f32 %v516, %v530
  %v554 = vmul.f32 %v517, %v530
  %v555 = vmul.f32 %v518, %v530
  %v556 = vmul.f32 %v519, %v530
  %v557 = vmul.f32 %v520, %v530
  %v558 = vmul.f32 %v521, %v530
  %v559 = vmul.f32 %v522, %v530
  %v560 = vmul.f32 %v523, %v530
  %v561 = vmul.f32 %v524, %v530
  %v562 = vmul.f32 %v525, %v530
  %563 = vadd.xlane.f32.xlu0 %v531
  %v564 = vpop.xlane.xlu0 %563
  %565 = vadd.xlane.f32.xlu0 %v532
  %v566 = vpop.xlane.xlu0 %565
  %567 = vadd.xlane.f32.xlu0 %v533
  %v568 = vpop.xlane.xlu0 %567
  %569 = vadd.xlane.f32.xlu0 %v534
  %v570 = vpop.xlane.xlu0 %569
  %571 = vadd.xlane.f32.xlu0 %v535
  %v572 = vpop.xlane.xlu0 %571
  %573 = vadd.xlane.f32.xlu0 %v536
  %v574 = vpop.xlane.xlu0 %573
  %575 = vadd.xlane.f32.xlu0 %v537
  %v576 = vpop.xlane.xlu0 %575
  %577 = vadd.xlane.f32.xlu0 %v538
  %v578 = vpop.xlane.xlu0 %577
  %579 = vadd.xlane.f32.xlu0 %v539
  %v580 = vpop.xlane.xlu0 %579
  %581 = vadd.xlane.f32.xlu0 %v540
  %v582 = vpop.xlane.xlu0 %581
  %583 = vadd.xlane.f32.xlu0 %v541
  %v584 = vpop.xlane.xlu0 %583
  %585 = vadd.xlane.f32.xlu0 %v542
  %v586 = vpop.xlane.xlu0 %585
  %587 = vadd.xlane.f32.xlu0 %v543
  %v588 = vpop.xlane.xlu0 %587
  %589 = vadd.xlane.f32.xlu0 %v544
  %v590 = vpop.xlane.xlu0 %589
  %591 = vadd.xlane.f32.xlu0 %v545
  %v592 = vpop.xlane.xlu0 %591
  %593 = vadd.xlane.f32.xlu0 %v546
  %v594 = vpop.xlane.xlu0 %593
  %595 = vadd.xlane.f32.xlu0 %v547
  %v596 = vpop.xlane.xlu0 %595
  %597 = vadd.xlane.f32.xlu0 %v548
  %v598 = vpop.xlane.xlu0 %597
  %599 = vadd.xlane.f32.xlu0 %v549
  %v600 = vpop.xlane.xlu0 %599
  %601 = vadd.xlane.f32.xlu0 %v550
  %v602 = vpop.xlane.xlu0 %601
  %603 = vadd.xlane.f32.xlu0 %v551
  %v604 = vpop.xlane.xlu0 %603
  %605 = vadd.xlane.f32.xlu0 %v552
  %v606 = vpop.xlane.xlu0 %605
  %607 = vadd.xlane.f32.xlu0 %v553
  %v608 = vpop.xlane.xlu0 %607
  %609 = vadd.xlane.f32.xlu0 %v554
  %v610 = vpop.xlane.xlu0 %609
  %611 = vadd.xlane.f32.xlu0 %v555
  %v612 = vpop.xlane.xlu0 %611
  %613 = vadd.xlane.f32.xlu0 %v556
  %v614 = vpop.xlane.xlu0 %613
  %615 = vadd.xlane.f32.xlu0 %v557
  %v616 = vpop.xlane.xlu0 %615
  %617 = vadd.xlane.f32.xlu0 %v558
  %v618 = vpop.xlane.xlu0 %617
  %619 = vadd.xlane.f32.xlu0 %v559
  %v620 = vpop.xlane.xlu0 %619
  %621 = vadd.xlane.f32.xlu0 %v560
  %v622 = vpop.xlane.xlu0 %621
  %623 = vadd.xlane.f32.xlu0 %v561
  %v624 = vpop.xlane.xlu0 %623
  %625 = vadd.xlane.f32.xlu0 %v562
  %v626 = vpop.xlane.xlu0 %625
  %v627 = vmul.f32 %v564, 0.03125
  %v628 = vmul.f32 %v566, 0.03125
  %v629 = vmul.f32 %v568, 0.03125
  %v630 = vmul.f32 %v570, 0.03125
  %v631 = vmul.f32 %v572, 0.03125
  %v632 = vmul.f32 %v574, 0.03125
  %v633 = vmul.f32 %v576, 0.03125
  %v634 = vmul.f32 %v578, 0.03125
  %v635 = vmul.f32 %v580, 0.03125
  %v636 = vmul.f32 %v582, 0.03125
  %v637 = vmul.f32 %v584, 0.03125
  %v638 = vmul.f32 %v586, 0.03125
  %v639 = vmul.f32 %v588, 0.03125
  %v640 = vmul.f32 %v590, 0.03125
  %v641 = vmul.f32 %v592, 0.03125
  %v642 = vmul.f32 %v594, 0.03125
  %v643 = vmul.f32 %v596, 0.03125
  %v644 = vmul.f32 %v598, 0.03125
  %v645 = vmul.f32 %v600, 0.03125
  %v646 = vmul.f32 %v602, 0.03125
  %v647 = vmul.f32 %v604, 0.03125
  %v648 = vmul.f32 %v606, 0.03125
  %v649 = vmul.f32 %v608, 0.03125
  %v650 = vmul.f32 %v610, 0.03125
  %v651 = vmul.f32 %v612, 0.03125
  %v652 = vmul.f32 %v614, 0.03125
  %v653 = vmul.f32 %v616, 0.03125
  %v654 = vmul.f32 %v618, 0.03125
  %v655 = vmul.f32 %v620, 0.03125
  %v656 = vmul.f32 %v622, 0.03125
  %v657 = vmul.f32 %v624, 0.03125
  %v658 = vmul.f32 %v626, 0.03125
  %v659 = vsub.f32 %v494, %v627
  %v660 = vsub.f32 %v495, %v628
  %v661 = vsub.f32 %v496, %v629
  %v662 = vsub.f32 %v497, %v630
  %v663 = vsub.f32 %v498, %v631
  %v664 = vsub.f32 %v499, %v632
  %v665 = vsub.f32 %v500, %v633
  %v666 = vsub.f32 %v501, %v634
  %v667 = vsub.f32 %v502, %v635
  %v668 = vsub.f32 %v503, %v636
  %v669 = vsub.f32 %v504, %v637
  %v670 = vsub.f32 %v505, %v638
  %v671 = vsub.f32 %v506, %v639
  %v672 = vsub.f32 %v507, %v640
  %v673 = vsub.f32 %v508, %v641
  %v674 = vsub.f32 %v509, %v642
  %v675 = vsub.f32 %v510, %v643
  %v676 = vsub.f32 %v511, %v644
  %v677 = vsub.f32 %v512, %v645
  %v678 = vsub.f32 %v513, %v646
  %v679 = vsub.f32 %v514, %v647
  %v680 = vsub.f32 %v515, %v648
  %v681 = vsub.f32 %v516, %v649
  %v682 = vsub.f32 %v517, %v650
  %v683 = vsub.f32 %v518, %v651
  %v684 = vsub.f32 %v519, %v652
  %v685 = vsub.f32 %v520, %v653
  %v686 = vsub.f32 %v521, %v654
  %v687 = vsub.f32 %v522, %v655
  %v688 = vsub.f32 %v523, %v656
  %v689 = vsub.f32 %v524, %v657
  %v690 = vsub.f32 %v525, %v658
  %v691 = vmul.f32 %v659, %v530
  %v692 = vmul.f32 %v660, %v530
  %v693 = vmul.f32 %v661, %v530
  %v694 = vmul.f32 %v662, %v530
  %v695 = vmul.f32 %v663, %v530
  %v696 = vmul.f32 %v664, %v530
  %v697 = vmul.f32 %v665, %v530
  %v698 = vmul.f32 %v666, %v530
  %v699 = vmul.f32 %v667, %v530
  %v700 = vmul.f32 %v668, %v530
  %v701 = vmul.f32 %v669, %v530
  %v702 = vmul.f32 %v670, %v530
  %v703 = vmul.f32 %v671, %v530
  %v704 = vmul.f32 %v672, %v530
  %v705 = vmul.f32 %v673, %v530
  %v706 = vmul.f32 %v674, %v530
  %v707 = vmul.f32 %v675, %v530
  %v708 = vmul.f32 %v676, %v530
  %v709 = vmul.f32 %v677, %v530
  %v710 = vmul.f32 %v678, %v530
  %v711 = vmul.f32 %v679, %v530
  %v712 = vmul.f32 %v680, %v530
  %v713 = vmul.f32 %v681, %v530
  %v714 = vmul.f32 %v682, %v530
  %v715 = vmul.f32 %v683, %v530
  %v716 = vmul.f32 %v684, %v530
  %v717 = vmul.f32 %v685, %v530
  %v718 = vmul.f32 %v686, %v530
  %v719 = vmul.f32 %v687, %v530
  %v720 = vmul.f32 %v688, %v530
  %v721 = vmul.f32 %v689, %v530
  %v722 = vmul.f32 %v690, %v530
  %v723 = vmul.f32 %v691, %v691
  %v724 = vmul.f32 %v692, %v692
  %v725 = vmul.f32 %v693, %v693
  %v726 = vmul.f32 %v694, %v694
  %v727 = vmul.f32 %v695, %v695
  %v728 = vmul.f32 %v696, %v696
  %v729 = vmul.f32 %v697, %v697
  %v730 = vmul.f32 %v698, %v698
  %v731 = vmul.f32 %v699, %v699
  %v732 = vmul.f32 %v700, %v700
  %v733 = vmul.f32 %v701, %v701
  %v734 = vmul.f32 %v702, %v702
  %v735 = vmul.f32 %v703, %v703
  %v736 = vmul.f32 %v704, %v704
  %v737 = vmul.f32 %v705, %v705
  %v738 = vmul.f32 %v706, %v706
  %v739 = vmul.f32 %v707, %v707
  %v740 = vmul.f32 %v708, %v708
  %v741 = vmul.f32 %v709, %v709
  %v742 = vmul.f32 %v710, %v710
  %v743 = vmul.f32 %v711, %v711
  %v744 = vmul.f32 %v712, %v712
  %v745 = vmul.f32 %v713, %v713
  %v746 = vmul.f32 %v714, %v714
  %v747 = vmul.f32 %v715, %v715
  %v748 = vmul.f32 %v716, %v716
  %v749 = vmul.f32 %v717, %v717
  %v750 = vmul.f32 %v718, %v718
  %v751 = vmul.f32 %v719, %v719
  %v752 = vmul.f32 %v720, %v720
  %v753 = vmul.f32 %v721, %v721
  %v754 = vmul.f32 %v722, %v722
  %755 = vadd.xlane.f32.xlu0 %v723
  %v756 = vpop.xlane.xlu0 %755
  %757 = vadd.xlane.f32.xlu0 %v724
  %v758 = vpop.xlane.xlu0 %757
  %759 = vadd.xlane.f32.xlu0 %v725
  %v760 = vpop.xlane.xlu0 %759
  %761 = vadd.xlane.f32.xlu0 %v726
  %v762 = vpop.xlane.xlu0 %761
  %763 = vadd.xlane.f32.xlu0 %v727
  %v764 = vpop.xlane.xlu0 %763
  %765 = vadd.xlane.f32.xlu0 %v728
  %v766 = vpop.xlane.xlu0 %765
  %767 = vadd.xlane.f32.xlu0 %v729
  %v768 = vpop.xlane.xlu0 %767
  %769 = vadd.xlane.f32.xlu0 %v730
  %v770 = vpop.xlane.xlu0 %769
  %771 = vadd.xlane.f32.xlu0 %v731
  %v772 = vpop.xlane.xlu0 %771
  %773 = vadd.xlane.f32.xlu0 %v732
  %v774 = vpop.xlane.xlu0 %773
  %775 = vadd.xlane.f32.xlu0 %v733
  %v776 = vpop.xlane.xlu0 %775
  %777 = vadd.xlane.f32.xlu0 %v734
  %v778 = vpop.xlane.xlu0 %777
  %779 = vadd.xlane.f32.xlu0 %v735
  %v780 = vpop.xlane.xlu0 %779
  %781 = vadd.xlane.f32.xlu0 %v736
  %v782 = vpop.xlane.xlu0 %781
  %783 = vadd.xlane.f32.xlu0 %v737
  %v784 = vpop.xlane.xlu0 %783
  %785 = vadd.xlane.f32.xlu0 %v738
  %v786 = vpop.xlane.xlu0 %785
  %787 = vadd.xlane.f32.xlu0 %v739
  %v788 = vpop.xlane.xlu0 %787
  %789 = vadd.xlane.f32.xlu0 %v740
  %v790 = vpop.xlane.xlu0 %789
  %791 = vadd.xlane.f32.xlu0 %v741
  %v792 = vpop.xlane.xlu0 %791
  %793 = vadd.xlane.f32.xlu0 %v742
  %v794 = vpop.xlane.xlu0 %793
  %795 = vadd.xlane.f32.xlu0 %v743
  %v796 = vpop.xlane.xlu0 %795
  %797 = vadd.xlane.f32.xlu0 %v744
  %v798 = vpop.xlane.xlu0 %797
  %799 = vadd.xlane.f32.xlu0 %v745
  %v800 = vpop.xlane.xlu0 %799
  %801 = vadd.xlane.f32.xlu0 %v746
  %v802 = vpop.xlane.xlu0 %801
  %803 = vadd.xlane.f32.xlu0 %v747
  %v804 = vpop.xlane.xlu0 %803
  %805 = vadd.xlane.f32.xlu0 %v748
  %v806 = vpop.xlane.xlu0 %805
  %807 = vadd.xlane.f32.xlu0 %v749
  %v808 = vpop.xlane.xlu0 %807
  %809 = vadd.xlane.f32.xlu0 %v750
  %v810 = vpop.xlane.xlu0 %809
  %811 = vadd.xlane.f32.xlu0 %v751
  %v812 = vpop.xlane.xlu0 %811
  %813 = vadd.xlane.f32.xlu0 %v752
  %v814 = vpop.xlane.xlu0 %813
  %815 = vadd.xlane.f32.xlu0 %v753
  %v816 = vpop.xlane.xlu0 %815
  %817 = vadd.xlane.f32.xlu0 %v754
  %v818 = vpop.xlane.xlu0 %817
  %v819 = vmul.f32 %v756, 0.03125
  %v820 = vmul.f32 %v758, 0.03125
  %v821 = vmul.f32 %v760, 0.03125
  %v822 = vmul.f32 %v762, 0.03125
  %v823 = vmul.f32 %v764, 0.03125
  %v824 = vmul.f32 %v766, 0.03125
  %v825 = vmul.f32 %v768, 0.03125
  %v826 = vmul.f32 %v770, 0.03125
  %v827 = vmul.f32 %v772, 0.03125
  %v828 = vmul.f32 %v774, 0.03125
  %v829 = vmul.f32 %v776, 0.03125
  %v830 = vmul.f32 %v778, 0.03125
  %v831 = vmul.f32 %v780, 0.03125
  %v832 = vmul.f32 %v782, 0.03125
  %v833 = vmul.f32 %v784, 0.03125
  %v834 = vmul.f32 %v786, 0.03125
  %v835 = vmul.f32 %v788, 0.03125
  %v836 = vmul.f32 %v790, 0.03125
  %v837 = vmul.f32 %v792, 0.03125
  %v838 = vmul.f32 %v794, 0.03125
  %v839 = vmul.f32 %v796, 0.03125
  %v840 = vmul.f32 %v798, 0.03125
  %v841 = vmul.f32 %v800, 0.03125
  %v842 = vmul.f32 %v802, 0.03125
  %v843 = vmul.f32 %v804, 0.03125
  %v844 = vmul.f32 %v806, 0.03125
  %v845 = vmul.f32 %v808, 0.03125
  %v846 = vmul.f32 %v810, 0.03125
  %v847 = vmul.f32 %v812, 0.03125
  %v848 = vmul.f32 %v814, 0.03125
  %v849 = vmul.f32 %v816, 0.03125
  %v850 = vmul.f32 %v818, 0.03125
  %v851 = vadd.f32 %v819, 1e-05
  %v852 = vadd.f32 %v820, 1e-05
  %v853 = vadd.f32 %v821, 1e-05
  %v854 = vadd.f32 %v822, 1e-05
  %v855 = vadd.f32 %v823, 1e-05
  %v856 = vadd.f32 %v824, 1e-05
  %v857 = vadd.f32 %v825, 1e-05
  %v858 = vadd.f32 %v826, 1e-05
  %v859 = vadd.f32 %v827, 1e-05
  %v860 = vadd.f32 %v828, 1e-05
  %v861 = vadd.f32 %v829, 1e-05
  %v862 = vadd.f32 %v830, 1e-05
  %v863 = vadd.f32 %v831, 1e-05
  %v864 = vadd.f32 %v832, 1e-05
  %v865 = vadd.f32 %v833, 1e-05
  %v866 = vadd.f32 %v834, 1e-05
  %v867 = vadd.f32 %v835, 1e-05
  %v868 = vadd.f32 %v836, 1e-05
  %v869 = vadd.f32 %v837, 1e-05
  %v870 = vadd.f32 %v838, 1e-05
  %v871 = vadd.f32 %v839, 1e-05
  %v872 = vadd.f32 %v840, 1e-05
  %v873 = vadd.f32 %v841, 1e-05
  %v874 = vadd.f32 %v842, 1e-05
  %v875 = vadd.f32 %v843, 1e-05
  %v876 = vadd.f32 %v844, 1e-05
  %v877 = vadd.f32 %v845, 1e-05
  %v878 = vadd.f32 %v846, 1e-05
  %v879 = vadd.f32 %v847, 1e-05
  %v880 = vadd.f32 %v848, 1e-05
  %v881 = vadd.f32 %v849, 1e-05
  %v882 = vadd.f32 %v850, 1e-05
  %v883 = vrsqrt.pop %v851
  %v884 = vrsqrt.pop %v852
  %v885 = vrsqrt.pop %v853
  %v886 = vrsqrt.pop %v854
  %v887 = vrsqrt.pop %v855
  %v888 = vrsqrt.pop %v856
  %v889 = vrsqrt.pop %v857
  %v890 = vrsqrt.pop %v858
  %v891 = vrsqrt.pop %v859
  %v892 = vrsqrt.pop %v860
  %v893 = vrsqrt.pop %v861
  %v894 = vrsqrt.pop %v862
  %v895 = vrsqrt.pop %v863
  %v896 = vrsqrt.pop %v864
  %v897 = vrsqrt.pop %v865
  %v898 = vrsqrt.pop %v866
  %v899 = vrsqrt.pop %v867
  %v900 = vrsqrt.pop %v868
  %v901 = vrsqrt.pop %v869
  %v902 = vrsqrt.pop %v870
  %v903 = vrsqrt.pop %v871
  %v904 = vrsqrt.pop %v872
  %v905 = vrsqrt.pop %v873
  %v906 = vrsqrt.pop %v874
  %v907 = vrsqrt.pop %v875
  %v908 = vrsqrt.pop %v876
  %v909 = vrsqrt.pop %v877
  %v910 = vrsqrt.pop %v878
  %v911 = vrsqrt.pop %v879
  %v912 = vrsqrt.pop %v880
  %v913 = vrsqrt.pop %v881
  %v914 = vrsqrt.pop %v882
  %v915 = vmul.f32 %v659, %v883
  %v916 = vmul.f32 %v660, %v884
  %v917 = vmul.f32 %v661, %v885
  %v918 = vmul.f32 %v662, %v886
  %v919 = vmul.f32 %v663, %v887
  %v920 = vmul.f32 %v664, %v888
  %v921 = vmul.f32 %v665, %v889
  %v922 = vmul.f32 %v666, %v890
  %v923 = vmul.f32 %v667, %v891
  %v924 = vmul.f32 %v668, %v892
  %v925 = vmul.f32 %v669, %v893
  %v926 = vmul.f32 %v670, %v894
  %v927 = vmul.f32 %v671, %v895
  %v928 = vmul.f32 %v672, %v896
  %v929 = vmul.f32 %v673, %v897
  %v930 = vmul.f32 %v674, %v898
  %v931 = vmul.f32 %v675, %v899
  %v932 = vmul.f32 %v676, %v900
  %v933 = vmul.f32 %v677, %v901
  %v934 = vmul.f32 %v678, %v902
  %v935 = vmul.f32 %v679, %v903
  %v936 = vmul.f32 %v680, %v904
  %v937 = vmul.f32 %v681, %v905
  %v938 = vmul.f32 %v682, %v906
  %v939 = vmul.f32 %v683, %v907
  %v940 = vmul.f32 %v684, %v908
  %v941 = vmul.f32 %v685, %v909
  %v942 = vmul.f32 %v686, %v910
  %v943 = vmul.f32 %v687, %v911
  %v944 = vmul.f32 %v688, %v912
  %v945 = vmul.f32 %v689, %v913
  %v946 = vmul.f32 %v690, %v914
  %v948 = vlaneseq
  %v949 = vshrl.u32 %v948, 7
  %v950 = vsub.s32 0, %v949
  %v951 = vrot.slane %v69, %v950
  %v953 = vmul.f32 %v915, %v951
  %v954 = vmul.f32 %v916, %v951
  %v955 = vmul.f32 %v917, %v951
  %v956 = vmul.f32 %v918, %v951
  %v957 = vmul.f32 %v919, %v951
  %v958 = vmul.f32 %v920, %v951
  %v959 = vmul.f32 %v921, %v951
  %v960 = vmul.f32 %v922, %v951
  %v961 = vmul.f32 %v923, %v951
  %v962 = vmul.f32 %v924, %v951
  %v963 = vmul.f32 %v925, %v951
  %v964 = vmul.f32 %v926, %v951
  %v965 = vmul.f32 %v927, %v951
  %v966 = vmul.f32 %v928, %v951
  %v967 = vmul.f32 %v929, %v951
  %v968 = vmul.f32 %v930, %v951
  %v969 = vmul.f32 %v931, %v951
  %v970 = vmul.f32 %v932, %v951
  %v971 = vmul.f32 %v933, %v951
  %v972 = vmul.f32 %v934, %v951
  %v973 = vmul.f32 %v935, %v951
  %v974 = vmul.f32 %v936, %v951
  %v975 = vmul.f32 %v937, %v951
  %v976 = vmul.f32 %v938, %v951
  %v977 = vmul.f32 %v939, %v951
  %v978 = vmul.f32 %v940, %v951
  %v979 = vmul.f32 %v941, %v951
  %v980 = vmul.f32 %v942, %v951
  %v981 = vmul.f32 %v943, %v951
  %v982 = vmul.f32 %v944, %v951
  %v983 = vmul.f32 %v945, %v951
  %v984 = vmul.f32 %v946, %v951
  %v986 = vlaneseq
  %v987 = vshrl.u32 %v986, 7
  %v988 = vsub.s32 0, %v987
  %v989 = vrot.slane %v70, %v988
  %v991 = vadd.f32 %v953, %v989
  %v992 = vadd.f32 %v954, %v989
  %v993 = vadd.f32 %v955, %v989
  %v994 = vadd.f32 %v956, %v989
  %v995 = vadd.f32 %v957, %v989
  %v996 = vadd.f32 %v958, %v989
  %v997 = vadd.f32 %v959, %v989
  %v998 = vadd.f32 %v960, %v989
  %v999 = vadd.f32 %v961, %v989
  %v1000 = vadd.f32 %v962, %v989
  %v1001 = vadd.f32 %v963, %v989
  %v1002 = vadd.f32 %v964, %v989
  %v1003 = vadd.f32 %v965, %v989
  %v1004 = vadd.f32 %v966, %v989
  %v1005 = vadd.f32 %v967, %v989
  %v1006 = vadd.f32 %v968, %v989
  %v1007 = vadd.f32 %v969, %v989
  %v1008 = vadd.f32 %v970, %v989
  %v1009 = vadd.f32 %v971, %v989
  %v1010 = vadd.f32 %v972, %v989
  %v1011 = vadd.f32 %v973, %v989
  %v1012 = vadd.f32 %v974, %v989
  %v1013 = vadd.f32 %v975, %v989
  %v1014 = vadd.f32 %v976, %v989
  %v1015 = vadd.f32 %v977, %v989
  %v1016 = vadd.f32 %v978, %v989
  %v1017 = vadd.f32 %v979, %v989
  %v1018 = vadd.f32 %v980, %v989
  %v1019 = vadd.f32 %v981, %v989
  %v1020 = vadd.f32 %v982, %v989
  %v1021 = vadd.f32 %v983, %v989
  %v1022 = vadd.f32 %v984, %v989
  %1023 = vst [vmem:[%s5] sm:$0xff] %v991
  %1024 = vst [vmem:[%s5 + $0x8] sm:$0xff] %v992
  %1025 = vst [vmem:[%s5 + $0x10] sm:$0xff] %v993
  %1026 = vst [vmem:[%s5 + $0x18] sm:$0xff] %v994
  %1027 = vst [vmem:[%s5 + $0x20] sm:$0xff] %v995
  %1028 = vst [vmem:[%s5 + $0x28] sm:$0xff] %v996
  %1029 = vst [vmem:[%s5 + $0x30] sm:$0xff] %v997
  %1030 = vst [vmem:[%s5 + $0x38] sm:$0xff] %v998
  %1031 = vst [vmem:[%s5 + $0x40] sm:$0xff] %v999
  %1032 = vst [vmem:[%s5 + $0x48] sm:$0xff] %v1000
  %1033 = vst [vmem:[%s5 + $0x50] sm:$0xff] %v1001
  %1034 = vst [vmem:[%s5 + $0x58] sm:$0xff] %v1002
  %1035 = vst [vmem:[%s5 + $0x60] sm:$0xff] %v1003
  %1036 = vst [vmem:[%s5 + $0x68] sm:$0xff] %v1004
  %1037 = vst [vmem:[%s5 + $0x70] sm:$0xff] %v1005
  %1038 = vst [vmem:[%s5 + $0x78] sm:$0xff] %v1006
  %1039 = vst [vmem:[%s5 + $0x80] sm:$0xff] %v1007
  %1040 = vst [vmem:[%s5 + $0x88] sm:$0xff] %v1008
  %1041 = vst [vmem:[%s5 + $0x90] sm:$0xff] %v1009
  %1042 = vst [vmem:[%s5 + $0x98] sm:$0xff] %v1010
  %1043 = vst [vmem:[%s5 + $0xa0] sm:$0xff] %v1011
  %1044 = vst [vmem:[%s5 + $0xa8] sm:$0xff] %v1012
  %1045 = vst [vmem:[%s5 + $0xb0] sm:$0xff] %v1013
  %1046 = vst [vmem:[%s5 + $0xb8] sm:$0xff] %v1014
  %1047 = vst [vmem:[%s5 + $0xc0] sm:$0xff] %v1015
  %1048 = vst [vmem:[%s5 + $0xc8] sm:$0xff] %v1016
  %1049 = vst [vmem:[%s5 + $0xd0] sm:$0xff] %v1017
  %1050 = vst [vmem:[%s5 + $0xd8] sm:$0xff] %v1018
  %1051 = vst [vmem:[%s5 + $0xe0] sm:$0xff] %v1019
  %1052 = vst [vmem:[%s5 + $0xe8] sm:$0xff] %v1020
  %1053 = vst [vmem:[%s5 + $0xf0] sm:$0xff] %v1021
  %1054 = vst [vmem:[%s5 + $0xf8] sm:$0xff] %v1022
  // Predicated region
  $region22: #{gnn_encoder_forward.2} parent=0 // pred_check
    _
  $region23: #{gnn_encoder_forward.2} parent=0 // pred_check_branch
    %1056 = sbr.rel (0) target = $region25
  $region24: #{gnn_encoder_forward.2} parent=0 // pred_region
    _
  $region25: #{gnn_encoder_forward.2} parent=0 // pred_fallthru
    _
  // Predicated region
  $region26: #{gnn_encoder_forward.2} parent=0 // pred_check
    _
  $region27: #{gnn_encoder_forward.2} parent=0 // pred_check_branch
    %1058 = sbr.rel (0) target = $region29
  $region28: #{gnn_encoder_forward.2} parent=0 // pred_region
    _
  $region29: #{gnn_encoder_forward.2} parent=0 // pred_fallthru
    _

// kernel: gnn_encoder_forward.3
$region0: #{gnn_encoder_forward.3}
  #allocation0 [shape = 'u32[]', space=smem, size = 0x4, offset = 0x4, fixed_abs, tag = 'smem constant byte address 0x4 - core index']
  #allocation1 [shape = 'u32[144,128]{1,0:T(1,128)}', space=vmem, size = 0x12000, scoped, tag = 'internal scratch']
  #allocation2 [shape = 'bf16[256,128]{1,0:T(8,128)(2,1)}', space=vmem, size = 0x10000, scoped, tag = 'scratch operand']
  %s0 = inlined_call_operand.vmem [shape: f32[256,128], index: 0, kind: input, shape index: {}]
  %s1 = inlined_call_operand.vmem [shape: bf16[256,256], index: 1, kind: input, shape index: {}]
  %s2 = inlined_call_operand.vmem [shape: f32[256,1], index: 2, kind: input, shape index: {}]
  %s3 = inlined_call_operand.vmem [shape: f32[2,128,128], index: 3, kind: input, shape index: {}]
  %s4 = inlined_call_operand.vmem [shape: f32[2,1,128], index: 4, kind: input, shape index: {}]
  %s5 = inlined_call_operand.vmem [shape: f32[2,1,128], index: 5, kind: input, shape index: {}]
  %s6 = inlined_call_operand.vmem [shape: f32[2,1,128], index: 6, kind: input, shape index: {}]
  %s7 = inlined_call_operand.vmem [shape: f32[256,128], index: 7, kind: output, shape index: {}]
  %s8 = sld [smem:[#allocation0]]
  $region73: #{gnn_encoder_forward.3} parent=0
    _
  %s10 = ssub.s32 1, %s8
  %s11 = scalar_select 0, %s10, %s8
  loop: start=0, step=1, limit=6
  $region2: #{gnn_encoder_forward.3} parent=0 // loop_pre_header
    _
  $region3: #{gnn_encoder_forward.3} parent=0 // loop_header
    %s13 = sphi 0, %s17
    %p14 = scmp.ge.s32.totalorder %s13, 6
    %s20 = sphi 0, %s39
    %s21 = sphi 0, %s35
    %s22 = sphi 0, %s31
    %s23 = sphi 0, %s20
    %s24 = sphi 0, %s21
    %s25 = sphi 0, %s22
    %s26 = sphi 0, %s23
    %s27 = sphi 0, %s24
    %s28 = sphi 0, %s25
    %s40 = sphi 0, %s40
    %s42 = sphi 0, %s40
    %s43 = sphi 0, %s42
    %s57 = sphi 0, %s43
    %s61 = sphi 0, %s61
    %s63 = sphi 0, %s61
    %s64 = sphi 0, %s63
    %s78 = sphi 0, %s64
    %s82 = sphi 0, %s82
    %s84 = sphi 0, %s82
    %s85 = sphi 0, %s84
    %s99 = sphi 0, %s85
    %s105 = sphi 0, %s107
    %s108 = sphi 0, %s105
    %s109 = sphi 0, %s108
    %s125 = sphi 0, %s109
    %s131 = sphi 0, %s133
    %s134 = sphi 0, %s131
    %s135 = sphi 0, %s134
    %s151 = sphi 0, %s135
    %s157 = sphi 0, %s159
    %s160 = sphi 0, %s157
    %s161 = sphi 0, %s160
    %s177 = sphi 0, %s161
    %s183 = sphi 0, %s185
    %s186 = sphi 0, %s183
    %s187 = sphi 0, %s186
    %s203 = sphi 0, %s187
    %s207 = sphi 0, %s207
    %s209 = sphi 0, %s207
    %s210 = sphi 0, %s209
    %s224 = sphi 0, %s210
  $region4: #{gnn_encoder_forward.3} parent=0 // loop_header_branch
    %16 = sbr.rel (%p14) target = $region8
  $region5: #{gnn_encoder_forward.3} parent=0 // loop_body
    %s18 = ssub.s32 %s13, 1
    %s19 = ssub.s32 %s13, 2
    %s29 = sadd.s32 1, %s22
    %p30 = scmp.ge.s32.totalorder %s29, 1
    %s31 = scalar_select %p30, 0, %s29
    %s32 = sadd.s32 1, %s21
    %s33 = scalar_select %p30, %s32, %s21
    %p34 = scmp.ge.s32.totalorder %s33, 2
    %s35 = scalar_select %p34, 0, %s33
    %s36 = sadd.s32 1, %s20
    %s37 = scalar_select %p34, %s36, %s20
    %p38 = scmp.ge.s32.totalorder %s37, 2
    %s39 = scalar_select %p38, 0, %s37
    %s41 = sadd.s32 %s40, 1
    %p44 = scmp.eq.s32.totalorder %s13, 3
    %p45 = scmp.ne.s32.totalorder %s40, %s42
    %p46 = scmp.eq.s32.totalorder %s13, 0
    %p47 = por %p45, %p46
    %p48 = scmp.ne.s32.totalorder %s40, %s42
    %p49 = scmp.eq.s32.totalorder %s18, 3
    %p50 = por %p48, %p49
    %p51 = scmp.ne.s32.totalorder %s42, %s43
    %p52 = scmp.eq.s32.totalorder %s18, 0
    %p53 = por %p51, %p52
    %p54 = scmp.ne.s32.totalorder %s42, %s43
    %p55 = scmp.eq.s32.totalorder %s19, 3
    %p56 = por %p54, %p55
    %p58 = scmp.ne.s32.totalorder %s43, %s57
    %p59 = scmp.eq.s32.totalorder %s19, 0
    %p60 = por %p58, %p59
    %s62 = sadd.s32 %s61, 1
    %p65 = scmp.eq.s32.totalorder %s13, 3
    %p66 = scmp.ne.s32.totalorder %s61, %s63
    %p67 = scmp.eq.s32.totalorder %s13, 0
    %p68 = por %p66, %p67
    %p69 = scmp.ne.s32.totalorder %s61, %s63
    %p70 = scmp.eq.s32.totalorder %s18, 3
    %p71 = por %p69, %p70
    %p72 = scmp.ne.s32.totalorder %s63, %s64
    %p73 = scmp.eq.s32.totalorder %s18, 0
    %p74 = por %p72, %p73
    %p75 = scmp.ne.s32.totalorder %s63, %s64
    %p76 = scmp.eq.s32.totalorder %s19, 3
    %p77 = por %p75, %p76
    %p79 = scmp.ne.s32.totalorder %s64, %s78
    %p80 = scmp.eq.s32.totalorder %s19, 0
    %p81 = por %p79, %p80
    %s83 = sadd.s32 %s82, 1
    %p86 = scmp.eq.s32.totalorder %s13, 3
    %p87 = scmp.ne.s32.totalorder %s82, %s84
    %p88 = scmp.eq.s32.totalorder %s13, 0
    %p89 = por %p87, %p88
    %p90 = scmp.ne.s32.totalorder %s82, %s84
    %p91 = scmp.eq.s32.totalorder %s18, 3
    %p92 = por %p90, %p91
    %p93 = scmp.ne.s32.totalorder %s84, %s85
    %p94 = scmp.eq.s32.totalorder %s18, 0
    %p95 = por %p93, %p94
    %p96 = scmp.ne.s32.totalorder %s84, %s85
    %p97 = scmp.eq.s32.totalorder %s19, 3
    %p98 = por %p96, %p97
    %p100 = scmp.ne.s32.totalorder %s85, %s99
    %p101 = scmp.eq.s32.totalorder %s19, 0
    %p102 = por %p100, %p101
    %s103 = ssub.s32 %s20, %s39
    %p104 = scmp.eq.s32.totalorder %s103, 0
    %s106 = sadd.s32 %s105, 1
    %s107 = scalar_select %p104, %s105, %s106
    %p110 = pneg %p104
    %p111 = scmp.eq.s32.totalorder %s13, 3
    %p112 = por %p110, %p111
    %p113 = scmp.ne.s32.totalorder %s105, %s108
    %p114 = scmp.eq.s32.totalorder %s13, 0
    %p115 = por %p113, %p114
    %p116 = scmp.ne.s32.totalorder %s105, %s108
    %p117 = scmp.eq.s32.totalorder %s18, 3
    %p118 = por %p116, %p117
    %p119 = scmp.ne.s32.totalorder %s108, %s109
    %p120 = scmp.eq.s32.totalorder %s18, 0
    %p121 = por %p119, %p120
    %p122 = scmp.ne.s32.totalorder %s108, %s109
    %p123 = scmp.eq.s32.totalorder %s19, 3
    %p124 = por %p122, %p123
    %p126 = scmp.ne.s32.totalorder %s109, %s125
    %p127 = scmp.eq.s32.totalorder %s19, 0
    %p128 = por %p126, %p127
    %s129 = ssub.s32 %s20, %s39
    %p130 = scmp.eq.s32.totalorder %s129, 0
    %s132 = sadd.s32 %s131, 1
    %s133 = scalar_select %p130, %s131, %s132
    %p136 = pneg %p130
    %p137 = scmp.eq.s32.totalorder %s13, 3
    %p138 = por %p136, %p137
    %p139 = scmp.ne.s32.totalorder %s131, %s134
    %p140 = scmp.eq.s32.totalorder %s13, 0
    %p141 = por %p139, %p140
    %p142 = scmp.ne.s32.totalorder %s131, %s134
    %p143 = scmp.eq.s32.totalorder %s18, 3
    %p144 = por %p142, %p143
    %p145 = scmp.ne.s32.totalorder %s134, %s135
    %p146 = scmp.eq.s32.totalorder %s18, 0
    %p147 = por %p145, %p146
    %p148 = scmp.ne.s32.totalorder %s134, %s135
    %p149 = scmp.eq.s32.totalorder %s19, 3
    %p150 = por %p148, %p149
    %p152 = scmp.ne.s32.totalorder %s135, %s151
    %p153 = scmp.eq.s32.totalorder %s19, 0
    %p154 = por %p152, %p153
    %s155 = ssub.s32 %s20, %s39
    %p156 = scmp.eq.s32.totalorder %s155, 0
    %s158 = sadd.s32 %s157, 1
    %s159 = scalar_select %p156, %s157, %s158
    %p162 = pneg %p156
    %p163 = scmp.eq.s32.totalorder %s13, 3
    %p164 = por %p162, %p163
    %p165 = scmp.ne.s32.totalorder %s157, %s160
    %p166 = scmp.eq.s32.totalorder %s13, 0
    %p167 = por %p165, %p166
    %p168 = scmp.ne.s32.totalorder %s157, %s160
    %p169 = scmp.eq.s32.totalorder %s18, 3
    %p170 = por %p168, %p169
    %p171 = scmp.ne.s32.totalorder %s160, %s161
    %p172 = scmp.eq.s32.totalorder %s18, 0
    %p173 = por %p171, %p172
    %p174 = scmp.ne.s32.totalorder %s160, %s161
    %p175 = scmp.eq.s32.totalorder %s19, 3
    %p176 = por %p174, %p175
    %p178 = scmp.ne.s32.totalorder %s161, %s177
    %p179 = scmp.eq.s32.totalorder %s19, 0
    %p180 = por %p178, %p179
    %s181 = ssub.s32 %s20, %s39
    %p182 = scmp.eq.s32.totalorder %s181, 0
    %s184 = sadd.s32 %s183, 1
    %s185 = scalar_select %p182, %s183, %s184
    %p188 = pneg %p182
    %p189 = scmp.eq.s32.totalorder %s13, 3
    %p190 = por %p188, %p189
    %p191 = scmp.ne.s32.totalorder %s183, %s186
    %p192 = scmp.eq.s32.totalorder %s13, 0
    %p193 = por %p191, %p192
    %p194 = scmp.ne.s32.totalorder %s183, %s186
    %p195 = scmp.eq.s32.totalorder %s18, 3
    %p196 = por %p194, %p195
    %p197 = scmp.ne.s32.totalorder %s186, %s187
    %p198 = scmp.eq.s32.totalorder %s18, 0
    %p199 = por %p197, %p198
    %p200 = scmp.ne.s32.totalorder %s186, %s187
    %p201 = scmp.eq.s32.totalorder %s19, 3
    %p202 = por %p200, %p201
    %p204 = scmp.ne.s32.totalorder %s187, %s203
    %p205 = scmp.eq.s32.totalorder %s19, 0
    %p206 = por %p204, %p205
    %s208 = sadd.s32 %s207, 1
    %p211 = scmp.eq.s32.totalorder %s13, 3
    %p212 = scmp.ne.s32.totalorder %s207, %s209
    %p213 = scmp.eq.s32.totalorder %s13, 0
    %p214 = por %p212, %p213
    %p215 = scmp.ne.s32.totalorder %s207, %s209
    %p216 = scmp.eq.s32.totalorder %s18, 3
    %p217 = por %p215, %p216
    %p218 = scmp.ne.s32.totalorder %s209, %s210
    %p219 = scmp.eq.s32.totalorder %s18, 0
    %p220 = por %p218, %p219
    %p221 = scmp.ne.s32.totalorder %s209, %s210
    %p222 = scmp.eq.s32.totalorder %s19, 3
    %p223 = por %p221, %p222
    %p225 = scmp.ne.s32.totalorder %s210, %s224
    %p226 = scmp.eq.s32.totalorder %s19, 0
    %p227 = por %p225, %p226
    %p228 = scmp.le.s32.totalorder 1, %s13
    %p229 = scmp.lt.s32.totalorder %s13, 5
    %p230 = pnand %p228, %p229
    %p231 = pneg %p230
    // Predicated region
    $region9: #{gnn_encoder_forward.3} parent=5 // pred_check
      _
    $region10: #{gnn_encoder_forward.3} parent=5 // pred_check_branch
      %233 = sbr.rel (%p230) target = $region12
    $region11: #{gnn_encoder_forward.3} parent=5 // pred_region
      %s234 = ssub.s32 %s13, 1
      // Predicated region
      $region13: #{gnn_encoder_forward.3} parent=11 // pred_check
        %p235 = pneg %p53
      $region14: #{gnn_encoder_forward.3} parent=11 // pred_check_branch
        %237 = sbr.rel (%p235) target = $region16
      $region15: #{gnn_encoder_forward.3} parent=11 // pred_region
        _
      $region16: #{gnn_encoder_forward.3} parent=11 // pred_fallthru
        _
      // Predicated region
      $region17: #{gnn_encoder_forward.3} parent=11 // pred_check
        %p238 = pneg %p74
      $region18: #{gnn_encoder_forward.3} parent=11 // pred_check_branch
        %240 = sbr.rel (%p238) target = $region20
      $region19: #{gnn_encoder_forward.3} parent=11 // pred_region
        _
      $region20: #{gnn_encoder_forward.3} parent=11 // pred_fallthru
        _
      // Predicated region
      $region21: #{gnn_encoder_forward.3} parent=11 // pred_check
        %p241 = pneg %p95
      $region22: #{gnn_encoder_forward.3} parent=11 // pred_check_branch
        %243 = sbr.rel (%p241) target = $region24
      $region23: #{gnn_encoder_forward.3} parent=11 // pred_region
        _
      $region24: #{gnn_encoder_forward.3} parent=11 // pred_fallthru
        _
    $region12: #{gnn_encoder_forward.3} parent=5 // pred_fallthru
      _
    %p244 = scmp.lt.s32.totalorder %s13, 4
    // Predicated region
    $region25: #{gnn_encoder_forward.3} parent=5 // pred_check
      %p245 = pneg %p244
    $region26: #{gnn_encoder_forward.3} parent=5 // pred_check_branch
      %247 = sbr.rel (%p245) target = $region28
    $region27: #{gnn_encoder_forward.3} parent=5 // pred_region
      // Predicated region
      $region29: #{gnn_encoder_forward.3} parent=27 // pred_check
        %p248 = pneg %p115
      $region30: #{gnn_encoder_forward.3} parent=27 // pred_check_branch
        %250 = sbr.rel (%p248) target = $region32
      $region31: #{gnn_encoder_forward.3} parent=27 // pred_region
        %p251 = scmp.lt.s32.totalorder %s20, 1
        %s252 = scalar_select %p251, %s20, 1
        %s253 = smul.addr %s252, 16
        %s254 = smul.addr %s253, 8
        %s255 = scalar_lea.vmem %s3, %s254
      $region32: #{gnn_encoder_forward.3} parent=27 // pred_fallthru
        _
      // Predicated region
      $region33: #{gnn_encoder_forward.3} parent=27 // pred_check
        %p256 = pneg %p141
      $region34: #{gnn_encoder_forward.3} parent=27 // pred_check_branch
        %258 = sbr.rel (%p256) target = $region36
      $region35: #{gnn_encoder_forward.3} parent=27 // pred_region
        %p259 = scmp.lt.s32.totalorder %s20, 1
        %s260 = scalar_select %p259, %s20, 1
        %s261 = scalar_lea.vmem %s4, %s260
      $region36: #{gnn_encoder_forward.3} parent=27 // pred_fallthru
        _
      // Predicated region
      $region37: #{gnn_encoder_forward.3} parent=27 // pred_check
        %p262 = pneg %p167
      $region38: #{gnn_encoder_forward.3} parent=27 // pred_check_branch
        %264 = sbr.rel (%p262) target = $region40
      $region39: #{gnn_encoder_forward.3} parent=27 // pred_region
        %p265 = scmp.lt.s32.totalorder %s20, 1
        %s266 = scalar_select %p265, %s20, 1
        %s267 = scalar_lea.vmem %s5, %s266
      $region40: #{gnn_encoder_forward.3} parent=27 // pred_fallthru
        _
      // Predicated region
      $region41: #{gnn_encoder_forward.3} parent=27 // pred_check
        %p268 = pneg %p193
      $region42: #{gnn_encoder_forward.3} parent=27 // pred_check_branch
        %270 = sbr.rel (%p268) target = $region44
      $region43: #{gnn_encoder_forward.3} parent=27 // pred_region
        %p271 = scmp.lt.s32.totalorder %s20, 1
        %s272 = scalar_select %p271, %s20, 1
        %s273 = scalar_lea.vmem %s6, %s272
      $region44: #{gnn_encoder_forward.3} parent=27 // pred_fallthru
        _
    $region28: #{gnn_encoder_forward.3} parent=5 // pred_fallthru
      _
    %p274 = scmp.le.s32.totalorder 1, %s13
    %p275 = scmp.lt.s32.totalorder %s13, 5
    %p276 = pnand %p274, %p275
    %p277 = pneg %p276
    // Predicated region
    $region45: #{gnn_encoder_forward.3} parent=5 // pred_check
      _
    $region46: #{gnn_encoder_forward.3} parent=5 // pred_check_branch
      %279 = sbr.rel (%p276) target = $region48
    $region47: #{gnn_encoder_forward.3} parent=5 // pred_region
      %s280 = ssub.s32 %s13, 1
      %p281 = pneg %p53
      %p282 = pneg %p50
      %p283 = pneg %p74
      %p284 = pneg %p71
      %p285 = pneg %p95
      %p286 = pneg %p92
      %p287 = scmp.lt.s32.totalorder %s23, 1
      %s288 = scalar_select %p287, %s23, 1
      %s289 = smul.addr %s288, 16
      %s290 = smul.addr %s289, 8
      %s291 = scalar_lea.vmem %s3, %s290
      %p292 = pneg %p121
      %p293 = pneg %p118
      %p294 = scmp.lt.s32.totalorder %s23, 1
      %s295 = scalar_select %p294, %s23, 1
      %s296 = scalar_lea.vmem %s4, %s295
      %p297 = pneg %p147
      %p298 = pneg %p144
      %p299 = scmp.lt.s32.totalorder %s23, 1
      %s300 = scalar_select %p299, %s23, 1
      %s301 = scalar_lea.vmem %s5, %s300
      %p302 = pneg %p173
      %p303 = pneg %p170
      %p304 = scmp.lt.s32.totalorder %s23, 1
      %s305 = scalar_select %p304, %s23, 1
      %s306 = scalar_lea.vmem %s6, %s305
      %p307 = pneg %p199
      %p308 = pneg %p196
      %p309 = pneg %p220
      %p310 = pneg %p217
      %p311 = scmp.lt.s32.totalorder %s23, 1
      %s312 = scalar_select %p311, %s23, 1
      %s313 = smul.addr %s312, 16
      %s314 = smul.addr %s313, 8
      %s315 = scalar_lea.vmem %s3, %s314
      %p316 = scmp.lt.s32.totalorder %s23, 1
      %s317 = scalar_select %p316, %s23, 1
      %s318 = scalar_lea.vmem %s4, %s317
      %p319 = scmp.lt.s32.totalorder %s23, 1
      %s320 = scalar_select %p319, %s23, 1
      %s321 = scalar_lea.vmem %s5, %s320
      %p322 = scmp.lt.s32.totalorder %s23, 1
      %s323 = scalar_select %p322, %s23, 1
      %s324 = scalar_lea.vmem %s6, %s323
      %s326 = smul.u32 %s25, 256
      %p327 = scmp.eq.s32.totalorder %s23, 0
      %p328 = scmp.eq.s32.totalorder %s24, 0
      %p329 = pnand %p327, %p328
      %p330 = pneg %p329
      %p331 = scmp.eq.s32.totalorder %s25, 0
      %p332 = pnand %p330, %p331
      %p333 = pneg %p332
      // Predicated region
      $region49: #{gnn_encoder_forward.3} parent=47 // pred_check
        _
      $region50: #{gnn_encoder_forward.3} parent=47 // pred_check_branch
        %335 = sbr.rel (%p332) target = $region52
      $region51: #{gnn_encoder_forward.3} parent=47 // pred_region
        %v336 = vld [vmem:[%s0] sm:$0xff]
        %v337 = vld [vmem:[%s0 + $0x8] sm:$0xff]
        %v338 = vld [vmem:[%s0 + $0x10] sm:$0xff]
        %v339 = vld [vmem:[%s0 + $0x18] sm:$0xff]
        %v340 = vld [vmem:[%s0 + $0x20] sm:$0xff]
        %v341 = vld [vmem:[%s0 + $0x28] sm:$0xff]
        %v342 = vld [vmem:[%s0 + $0x30] sm:$0xff]
        %v343 = vld [vmem:[%s0 + $0x38] sm:$0xff]
        %v344 = vld [vmem:[%s0 + $0x40] sm:$0xff]
        %v345 = vld [vmem:[%s0 + $0x48] sm:$0xff]
        %v346 = vld [vmem:[%s0 + $0x50] sm:$0xff]
        %v347 = vld [vmem:[%s0 + $0x58] sm:$0xff]
        %v348 = vld [vmem:[%s0 + $0x60] sm:$0xff]
        %v349 = vld [vmem:[%s0 + $0x68] sm:$0xff]
        %v350 = vld [vmem:[%s0 + $0x70] sm:$0xff]
        %v351 = vld [vmem:[%s0 + $0x78] sm:$0xff]
        %v352 = vld [vmem:[%s0 + $0x80] sm:$0xff]
        %v353 = vld [vmem:[%s0 + $0x88] sm:$0xff]
        %v354 = vld [vmem:[%s0 + $0x90] sm:$0xff]
        %v355 = vld [vmem:[%s0 + $0x98] sm:$0xff]
        %v356 = vld [vmem:[%s0 + $0xa0] sm:$0xff]
        %v357 = vld [vmem:[%s0 + $0xa8] sm:$0xff]
        %v358 = vld [vmem:[%s0 + $0xb0] sm:$0xff]
        %v359 = vld [vmem:[%s0 + $0xb8] sm:$0xff]
        %v360 = vld [vmem:[%s0 + $0xc0] sm:$0xff]
        %v361 = vld [vmem:[%s0 + $0xc8] sm:$0xff]
        %v362 = vld [vmem:[%s0 + $0xd0] sm:$0xff]
        %v363 = vld [vmem:[%s0 + $0xd8] sm:$0xff]
        %v364 = vld [vmem:[%s0 + $0xe0] sm:$0xff]
        %v365 = vld [vmem:[%s0 + $0xe8] sm:$0xff]
        %v366 = vld [vmem:[%s0 + $0xf0] sm:$0xff]
        %v367 = vld [vmem:[%s0 + $0xf8] sm:$0xff]
        %368 = vst [vmem:[%s7] sm:$0xff] %v336
        %369 = vst [vmem:[%s7 + $0x8] sm:$0xff] %v337
        %370 = vst [vmem:[%s7 + $0x10] sm:$0xff] %v338
        %371 = vst [vmem:[%s7 + $0x18] sm:$0xff] %v339
        %372 = vst [vmem:[%s7 + $0x20] sm:$0xff] %v340
        %373 = vst [vmem:[%s7 + $0x28] sm:$0xff] %v341
        %374 = vst [vmem:[%s7 + $0x30] sm:$0xff] %v342
        %375 = vst [vmem:[%s7 + $0x38] sm:$0xff] %v343
        %376 = vst [vmem:[%s7 + $0x40] sm:$0xff] %v344
        %377 = vst [vmem:[%s7 + $0x48] sm:$0xff] %v345
        %378 = vst [vmem:[%s7 + $0x50] sm:$0xff] %v346
        %379 = vst [vmem:[%s7 + $0x58] sm:$0xff] %v347
        %380 = vst [vmem:[%s7 + $0x60] sm:$0xff] %v348
        %381 = vst [vmem:[%s7 + $0x68] sm:$0xff] %v349
        %382 = vst [vmem:[%s7 + $0x70] sm:$0xff] %v350
        %383 = vst [vmem:[%s7 + $0x78] sm:$0xff] %v351
        %384 = vst [vmem:[%s7 + $0x80] sm:$0xff] %v352
        %385 = vst [vmem:[%s7 + $0x88] sm:$0xff] %v353
        %386 = vst [vmem:[%s7 + $0x90] sm:$0xff] %v354
        %387 = vst [vmem:[%s7 + $0x98] sm:$0xff] %v355
        %388 = vst [vmem:[%s7 + $0xa0] sm:$0xff] %v356
        %389 = vst [vmem:[%s7 + $0xa8] sm:$0xff] %v357
        %390 = vst [vmem:[%s7 + $0xb0] sm:$0xff] %v358
        %391 = vst [vmem:[%s7 + $0xb8] sm:$0xff] %v359
        %392 = vst [vmem:[%s7 + $0xc0] sm:$0xff] %v360
        %393 = vst [vmem:[%s7 + $0xc8] sm:$0xff] %v361
        %394 = vst [vmem:[%s7 + $0xd0] sm:$0xff] %v362
        %395 = vst [vmem:[%s7 + $0xd8] sm:$0xff] %v363
        %396 = vst [vmem:[%s7 + $0xe0] sm:$0xff] %v364
        %397 = vst [vmem:[%s7 + $0xe8] sm:$0xff] %v365
        %398 = vst [vmem:[%s7 + $0xf0] sm:$0xff] %v366
        %399 = vst [vmem:[%s7 + $0xf8] sm:$0xff] %v367
      $region52: #{gnn_encoder_forward.3} parent=47 // pred_fallthru
        _
      // Predicated region
      $region53: #{gnn_encoder_forward.3} parent=47 // pred_check
        %p400 = pneg %p328
      $region54: #{gnn_encoder_forward.3} parent=47 // pred_check_branch
        %402 = sbr.rel (%p400) target = $region56
      $region55: #{gnn_encoder_forward.3} parent=47 // pred_region
        %s403 = scalar_lea.vmem %s7, %s326
        %v404 = vld [vmem:[%s403] sm:$0xff]
        %v405 = vld [vmem:[%s403 + $0x8] sm:$0xff]
        %v406 = vld [vmem:[%s403 + $0x10] sm:$0xff]
        %v407 = vld [vmem:[%s403 + $0x18] sm:$0xff]
        %v408 = vld [vmem:[%s403 + $0x20] sm:$0xff]
        %v409 = vld [vmem:[%s403 + $0x28] sm:$0xff]
        %v410 = vld [vmem:[%s403 + $0x30] sm:$0xff]
        %v411 = vld [vmem:[%s403 + $0x38] sm:$0xff]
        %v412 = vld [vmem:[%s403 + $0x40] sm:$0xff]
        %v413 = vld [vmem:[%s403 + $0x48] sm:$0xff]
        %v414 = vld [vmem:[%s403 + $0x50] sm:$0xff]
        %v415 = vld [vmem:[%s403 + $0x58] sm:$0xff]
        %v416 = vld [vmem:[%s403 + $0x60] sm:$0xff]
        %v417 = vld [vmem:[%s403 + $0x68] sm:$0xff]
        %v418 = vld [vmem:[%s403 + $0x70] sm:$0xff]
        %v419 = vld [vmem:[%s403 + $0x78] sm:$0xff]
        %v420 = vld [vmem:[%s403 + $0x80] sm:$0xff]
        %v421 = vld [vmem:[%s403 + $0x88] sm:$0xff]
        %v422 = vld [vmem:[%s403 + $0x90] sm:$0xff]
        %v423 = vld [vmem:[%s403 + $0x98] sm:$0xff]
        %v424 = vld [vmem:[%s403 + $0xa0] sm:$0xff]
        %v425 = vld [vmem:[%s403 + $0xa8] sm:$0xff]
        %v426 = vld [vmem:[%s403 + $0xb0] sm:$0xff]
        %v427 = vld [vmem:[%s403 + $0xb8] sm:$0xff]
        %v428 = vld [vmem:[%s403 + $0xc0] sm:$0xff]
        %v429 = vld [vmem:[%s403 + $0xc8] sm:$0xff]
        %v430 = vld [vmem:[%s403 + $0xd0] sm:$0xff]
        %v431 = vld [vmem:[%s403 + $0xd8] sm:$0xff]
        %v432 = vld [vmem:[%s403 + $0xe0] sm:$0xff]
        %v433 = vld [vmem:[%s403 + $0xe8] sm:$0xff]
        %v434 = vld [vmem:[%s403 + $0xf0] sm:$0xff]
        %v435 = vld [vmem:[%s403 + $0xf8] sm:$0xff]
        %v436 = vld [vmem:[%s315] sm:$0xff]
        %v437 = vld [vmem:[%s315 + $0x8] sm:$0xff]
        %v438 = vld [vmem:[%s315 + $0x10] sm:$0xff]
        %v439 = vld [vmem:[%s315 + $0x18] sm:$0xff]
        %v440 = vld [vmem:[%s315 + $0x20] sm:$0xff]
        %v441 = vld [vmem:[%s315 + $0x28] sm:$0xff]
        %v442 = vld [vmem:[%s315 + $0x30] sm:$0xff]
        %v443 = vld [vmem:[%s315 + $0x38] sm:$0xff]
        %v444 = vld [vmem:[%s315 + $0x40] sm:$0xff]
        %v445 = vld [vmem:[%s315 + $0x48] sm:$0xff]
        %v446 = vld [vmem:[%s315 + $0x50] sm:$0xff]
        %v447 = vld [vmem:[%s315 + $0x58] sm:$0xff]
        %v448 = vld [vmem:[%s315 + $0x60] sm:$0xff]
        %v449 = vld [vmem:[%s315 + $0x68] sm:$0xff]
        %v450 = vld [vmem:[%s315 + $0x70] sm:$0xff]
        %v451 = vld [vmem:[%s315 + $0x78] sm:$0xff]
        %v452 = vld [vmem:[%s318] sm:$0x1]
        %v453 = vld [vmem:[%s321] sm:$0x1]
        %v454 = vld [vmem:[%s324] sm:$0x1]
        %v456 = vlaneseq
        %v457 = vshrl.u32 %v456, 7
        %v458 = vsub.s32 0, %v457
        %v459 = vrot.slane %v452, %v458
        %461 = vmatprep.subr.mxu0 0.0
        %462 = vmatpush1.msra.mxu0 %v451
        %463 = vmatprep.subr.mxu0 0.0
        %464 = vmatpush1.msra.mxu0 %v450
        %465 = vmatprep.subr.mxu0 0.0
        %466 = vmatpush1.msra.mxu0 %v449
        %467 = vmatprep.subr.mxu0 0.0
        %468 = vmatpush1.msra.mxu0 %v448
        %469 = vmatprep.subr.mxu0 0.0
        %470 = vmatpush1.msra.mxu0 %v447
        %471 = vmatprep.subr.mxu0 0.0
        %472 = vmatpush1.msra.mxu0 %v446
        %473 = vmatprep.subr.mxu0 0.0
        %474 = vmatpush1.msra.mxu0 %v445
        %475 = vmatprep.subr.mxu0 0.0
        %476 = vmatpush1.msra.mxu0 %v444
        %477 = vmatprep.subr.mxu0 0.0
        %478 = vmatpush1.msra.mxu0 %v443
        %479 = vmatprep.subr.mxu0 0.0
        %480 = vmatpush1.msra.mxu0 %v442
        %481 = vmatprep.subr.mxu0 0.0
        %482 = vmatpush1.msra.mxu0 %v441
        %483 = vmatprep.subr.mxu0 0.0
        %484 = vmatpush1.msra.mxu0 %v440
        %485 = vmatprep.subr.mxu0 0.0
        %486 = vmatpush1.msra.mxu0 %v439
        %487 = vmatprep.subr.mxu0 0.0
        %488 = vmatpush1.msra.mxu0 %v438
        %489 = vmatprep.subr.mxu0 0.0
        %490 = vmatpush1.msra.mxu0 %v437
        %491 = vmatprep.subr.mxu0 0.0
        %492 = vmatpush1.msra.mxu0 %v436
        %493 = vmatprep.subr.mxu0 0.0
        %494 = vmatpush2.msra.mxu0 0.0
        %495 = vmatprep.subr.mxu0 0.0
        %496 = vmatpush2.msra.mxu0 0.0
        %497 = vmatprep.subr.mxu0 0.0
        %498 = vmatpush2.msra.mxu0 0.0
        %499 = vmatprep.subr.mxu0 0.0
        %500 = vmatpush2.msra.mxu0 0.0
        %501 = vmatprep.subr.mxu0 0.0
        %502 = vmatpush2.msra.mxu0 0.0
        %503 = vmatprep.subr.mxu0 0.0
        %504 = vmatpush2.msra.mxu0 0.0
        %505 = vmatprep.subr.mxu0 0.0
        %506 = vmatpush2.msra.mxu0 0.0
        %507 = vmatprep.subr.mxu0 0.0
        %508 = vmatpush2.msra.mxu0 0.0
        %509 = vmatprep.subr.mxu0 0.0
        %510 = vmatpush2.msra.mxu0 0.0
        %511 = vmatprep.subr.mxu0 0.0
        %512 = vmatpush2.msra.mxu0 0.0
        %513 = vmatprep.subr.mxu0 0.0
        %514 = vmatpush2.msra.mxu0 0.0
        %515 = vmatprep.subr.mxu0 0.0
        %516 = vmatpush2.msra.mxu0 0.0
        %517 = vmatprep.subr.mxu0 0.0
        %518 = vmatpush2.msra.mxu0 0.0
        %519 = vmatprep.subr.mxu0 0.0
        %520 = vmatpush2.msra.mxu0 0.0
        %521 = vmatprep.subr.mxu0 0.0
        %522 = vmatpush2.msra.mxu0 0.0
        %523 = vmatprep.subr.mxu0 0.0
        %524 = vmatpush2.msra.mxu0 0.0
        %525 = vmatprep.mubr.f32.mxu0 0.0
        %526 = vmatmul.mubr.f32.gmra.mxu0 %v404
        %v527 = vpop.f32.mrf.mxu0
        %v528 = vadd.f32 %v459, %v527
        %v529 = vpop.f32.mrf.mxu0
        %530 = vmatprep.mubr.f32.mxu0 0.0
        %531 = vmatmul.mubr.f32.gmra.mxu0 %v405
        %v532 = vpop.f32.mrf.mxu0
        %v533 = vadd.f32 %v459, %v532
        %v534 = vpop.f32.mrf.mxu0
        %535 = vmatprep.mubr.f32.mxu0 0.0
        %536 = vmatmul.mubr.f32.gmra.mxu0 %v406
        %v537 = vpop.f32.mrf.mxu0
        %v538 = vadd.f32 %v459, %v537
        %v539 = vpop.f32.mrf.mxu0
        %540 = vmatprep.mubr.f32.mxu0 0.0
        %541 = vmatmul.mubr.f32.gmra.mxu0 %v407
        %v542 = vpop.f32.mrf.mxu0
        %v543 = vadd.f32 %v459, %v542
        %v544 = vpop.f32.mrf.mxu0
        %545 = vmatprep.mubr.f32.mxu0 0.0
        %546 = vmatmul.mubr.f32.gmra.mxu0 %v408
        %v547 = vpop.f32.mrf.mxu0
        %v548 = vadd.f32 %v459, %v547
        %v549 = vpop.f32.mrf.mxu0
        %550 = vmatprep.mubr.f32.mxu0 0.0
        %551 = vmatmul.mubr.f32.gmra.mxu0 %v409
        %v552 = vpop.f32.mrf.mxu0
        %v553 = vadd.f32 %v459, %v552
        %v554 = vpop.f32.mrf.mxu0
        %555 = vmatprep.mubr.f32.mxu0 0.0
        %556 = vmatmul.mubr.f32.gmra.mxu0 %v410
        %v557 = vpop.f32.mrf.mxu0
        %v558 = vadd.f32 %v459, %v557
        %v559 = vpop.f32.mrf.mxu0
        %560 = vmatprep.mubr.f32.mxu0 0.0
        %561 = vmatmul.mubr.f32.gmra.mxu0 %v411
        %v562 = vpop.f32.mrf.mxu0
        %v563 = vadd.f32 %v459, %v562
        %v564 = vpop.f32.mrf.mxu0
        %565 = vmatprep.mubr.f32.mxu0 0.0
        %566 = vmatmul.mubr.f32.gmra.mxu0 %v412
        %v567 = vpop.f32.mrf.mxu0
        %v568 = vadd.f32 %v459, %v567
        %v569 = vpop.f32.mrf.mxu0
        %570 = vmatprep.mubr.f32.mxu0 0.0
        %571 = vmatmul.mubr.f32.gmra.mxu0 %v413
        %v572 = vpop.f32.mrf.mxu0
        %v573 = vadd.f32 %v459, %v572
        %v574 = vpop.f32.mrf.mxu0
        %575 = vmatprep.mubr.f32.mxu0 0.0
        %576 = vmatmul.mubr.f32.gmra.mxu0 %v414
        %v577 = vpop.f32.mrf.mxu0
        %v578 = vadd.f32 %v459, %v577
        %v579 = vpop.f32.mrf.mxu0
        %580 = vmatprep.mubr.f32.mxu0 0.0
        %581 = vmatmul.mubr.f32.gmra.mxu0 %v415
        %v582 = vpop.f32.mrf.mxu0
        %v583 = vadd.f32 %v459, %v582
        %v584 = vpop.f32.mrf.mxu0
        %585 = vmatprep.mubr.f32.mxu0 0.0
        %586 = vmatmul.mubr.f32.gmra.mxu0 %v416
        %v587 = vpop.f32.mrf.mxu0
        %v588 = vadd.f32 %v459, %v587
        %v589 = vpop.f32.mrf.mxu0
        %590 = vmatprep.mubr.f32.mxu0 0.0
        %591 = vmatmul.mubr.f32.gmra.mxu0 %v417
        %v592 = vpop.f32.mrf.mxu0
        %v593 = vadd.f32 %v459, %v592
        %v594 = vpop.f32.mrf.mxu0
        %595 = vmatprep.mubr.f32.mxu0 0.0
        %596 = vmatmul.mubr.f32.gmra.mxu0 %v418
        %v597 = vpop.f32.mrf.mxu0
        %v598 = vadd.f32 %v459, %v597
        %v599 = vpop.f32.mrf.mxu0
        %600 = vmatprep.mubr.f32.mxu0 0.0
        %601 = vmatmul.mubr.f32.gmra.mxu0 %v419
        %v602 = vpop.f32.mrf.mxu0
        %v603 = vadd.f32 %v459, %v602
        %v604 = vpop.f32.mrf.mxu0
        %605 = vmatprep.mubr.f32.mxu0 0.0
        %606 = vmatmul.mubr.f32.gmra.mxu0 %v420
        %v607 = vpop.f32.mrf.mxu0
        %v608 = vadd.f32 %v459, %v607
        %v609 = vpop.f32.mrf.mxu0
        %610 = vmatprep.mubr.f32.mxu0 0.0
        %611 = vmatmul.mubr.f32.gmra.mxu0 %v421
        %v612 = vpop.f32.mrf.mxu0
        %v613 = vadd.f32 %v459, %v612
        %v614 = vpop.f32.mrf.mxu0
        %615 = vmatprep.mubr.f32.mxu0 0.0
        %616 = vmatmul.mubr.f32.gmra.mxu0 %v422
        %v617 = vpop.f32.mrf.mxu0
        %v618 = vadd.f32 %v459, %v617
        %v619 = vpop.f32.mrf.mxu0
        %620 = vmatprep.mubr.f32.mxu0 0.0
        %621 = vmatmul.mubr.f32.gmra.mxu0 %v423
        %v622 = vpop.f32.mrf.mxu0
        %v623 = vadd.f32 %v459, %v622
        %v624 = vpop.f32.mrf.mxu0
        %625 = vmatprep.mubr.f32.mxu0 0.0
        %626 = vmatmul.mubr.f32.gmra.mxu0 %v424
        %v627 = vpop.f32.mrf.mxu0
        %v628 = vadd.f32 %v459, %v627
        %v629 = vpop.f32.mrf.mxu0
        %630 = vmatprep.mubr.f32.mxu0 0.0
        %631 = vmatmul.mubr.f32.gmra.mxu0 %v425
        %v632 = vpop.f32.mrf.mxu0
        %v633 = vadd.f32 %v459, %v632
        %v634 = vpop.f32.mrf.mxu0
        %635 = vmatprep.mubr.f32.mxu0 0.0
        %636 = vmatmul.mubr.f32.gmra.mxu0 %v426
        %v637 = vpop.f32.mrf.mxu0
        %v638 = vadd.f32 %v459, %v637
        %v639 = vpop.f32.mrf.mxu0
        %640 = vmatprep.mubr.f32.mxu0 0.0
        %641 = vmatmul.mubr.f32.gmra.mxu0 %v427
        %v642 = vpop.f32.mrf.mxu0
        %v643 = vadd.f32 %v459, %v642
        %v644 = vpop.f32.mrf.mxu0
        %645 = vmatprep.mubr.f32.mxu0 0.0
        %646 = vmatmul.mubr.f32.gmra.mxu0 %v428
        %v647 = vpop.f32.mrf.mxu0
        %v648 = vadd.f32 %v459, %v647
        %v649 = vpop.f32.mrf.mxu0
        %650 = vmatprep.mubr.f32.mxu0 0.0
        %651 = vmatmul.mubr.f32.gmra.mxu0 %v429
        %v652 = vpop.f32.mrf.mxu0
        %v653 = vadd.f32 %v459, %v652
        %v654 = vpop.f32.mrf.mxu0
        %655 = vmatprep.mubr.f32.mxu0 0.0
        %656 = vmatmul.mubr.f32.gmra.mxu0 %v430
        %v657 = vpop.f32.mrf.mxu0
        %v658 = vadd.f32 %v459, %v657
        %v659 = vpop.f32.mrf.mxu0
        %660 = vmatprep.mubr.f32.mxu0 0.0
        %661 = vmatmul.mubr.f32.gmra.mxu0 %v431
        %v662 = vpop.f32.mrf.mxu0
        %v663 = vadd.f32 %v459, %v662
        %v664 = vpop.f32.mrf.mxu0
        %665 = vmatprep.mubr.f32.mxu0 0.0
        %666 = vmatmul.mubr.f32.gmra.mxu0 %v432
        %v667 = vpop.f32.mrf.mxu0
        %v668 = vadd.f32 %v459, %v667
        %v669 = vpop.f32.mrf.mxu0
        %670 = vmatprep.mubr.f32.mxu0 0.0
        %671 = vmatmul.mubr.f32.gmra.mxu0 %v433
        %v672 = vpop.f32.mrf.mxu0
        %v673 = vadd.f32 %v459, %v672
        %v674 = vpop.f32.mrf.mxu0
        %675 = vmatprep.mubr.f32.mxu0 0.0
        %676 = vmatmul.mubr.f32.gmra.mxu0 %v434
        %v677 = vpop.f32.mrf.mxu0
        %v678 = vadd.f32 %v459, %v677
        %v679 = vpop.f32.mrf.mxu0
        %680 = vmatprep.mubr.f32.mxu0 0.0
        %681 = vmatmul.mubr.f32.gmra.mxu0 %v435
        %v682 = vpop.f32.mrf.mxu0
        %v683 = vadd.f32 %v459, %v682
        %v684 = vpop.f32.mrf.mxu0
        %685 = vdwg.mxu0
        %v686 = vxor.u32 %v528, 2147483648
        %v687 = vxor.u32 %v533, 2147483648
        %v688 = vxor.u32 %v538, 2147483648
        %v689 = vxor.u32 %v543, 2147483648
        %v690 = vxor.u32 %v548, 2147483648
        %v691 = vxor.u32 %v553, 2147483648
        %v692 = vxor.u32 %v558, 2147483648
        %v693 = vxor.u32 %v563, 2147483648
        %v694 = vxor.u32 %v568, 2147483648
        %v695 = vxor.u32 %v573, 2147483648
        %v696 = vxor.u32 %v578, 2147483648
        %v697 = vxor.u32 %v583, 2147483648
        %v698 = vxor.u32 %v588, 2147483648
        %v699 = vxor.u32 %v593, 2147483648
        %v700 = vxor.u32 %v598, 2147483648
        %v701 = vxor.u32 %v603, 2147483648
        %v702 = vxor.u32 %v608, 2147483648
        %v703 = vxor.u32 %v613, 2147483648
        %v704 = vxor.u32 %v618, 2147483648
        %v705 = vxor.u32 %v623, 2147483648
        %v706 = vxor.u32 %v628, 2147483648
        %v707 = vxor.u32 %v633, 2147483648
        %v708 = vxor.u32 %v638, 2147483648
        %v709 = vxor.u32 %v643, 2147483648
        %v710 = vxor.u32 %v648, 2147483648
        %v711 = vxor.u32 %v653, 2147483648
        %v712 = vxor.u32 %v658, 2147483648
        %v713 = vxor.u32 %v663, 2147483648
        %v714 = vxor.u32 %v668, 2147483648
        %v715 = vxor.u32 %v673, 2147483648
        %v716 = vxor.u32 %v678, 2147483648
        %v717 = vxor.u32 %v683, 2147483648
        %v718 = vmul.f32 %v686, 1.442695
        %v719 = vpow.pop %v718
        %v720 = vmul.f32 %v687, 1.442695
        %v721 = vpow.pop %v720
        %v722 = vmul.f32 %v688, 1.442695
        %v723 = vpow.pop %v722
        %v724 = vmul.f32 %v689, 1.442695
        %v725 = vpow.pop %v724
        %v726 = vmul.f32 %v690, 1.442695
        %v727 = vpow.pop %v726
        %v728 = vmul.f32 %v691, 1.442695
        %v729 = vpow.pop %v728
        %v730 = vmul.f32 %v692, 1.442695
        %v731 = vpow.pop %v730
        %v732 = vmul.f32 %v693, 1.442695
        %v733 = vpow.pop %v732
        %v734 = vmul.f32 %v694, 1.442695
        %v735 = vpow.pop %v734
        %v736 = vmul.f32 %v695, 1.442695
        %v737 = vpow.pop %v736
        %v738 = vmul.f32 %v696, 1.442695
        %v739 = vpow.pop %v738
        %v740 = vmul.f32 %v697, 1.442695
        %v741 = vpow.pop %v740
        %v742 = vmul.f32 %v698, 1.442695
        %v743 = vpow.pop %v742
        %v744 = vmul.f32 %v699, 1.442695
        %v745 = vpow.pop %v744
        %v746 = vmul.f32 %v700, 1.442695
        %v747 = vpow.pop %v746
        %v748 = vmul.f32 %v701, 1.442695
        %v749 = vpow.pop %v748
        %v750 = vmul.f32 %v702, 1.442695
        %v751 = vpow.pop %v750
        %v752 = vmul.f32 %v703, 1.442695
        %v753 = vpow.pop %v752
        %v754 = vmul.f32 %v704, 1.442695
        %v755 = vpow.pop %v754
        %v756 = vmul.f32 %v705, 1.442695
        %v757 = vpow.pop %v756
        %v758 = vmul.f32 %v706, 1.442695
        %v759 = vpow.pop %v758
        %v760 = vmul.f32 %v707, 1.442695
        %v761 = vpow.pop %v760
        %v762 = vmul.f32 %v708, 1.442695
        %v763 = vpow.pop %v762
        %v764 = vmul.f32 %v709, 1.442695
        %v765 = vpow.pop %v764
        %v766 = vmul.f32 %v710, 1.442695
        %v767 = vpow.pop %v766
        %v768 = vmul.f32 %v711, 1.442695
        %v769 = vpow.pop %v768
        %v770 = vmul.f32 %v712, 1.442695
        %v771 = vpow.pop %v770
        %v772 = vmul.f32 %v713, 1.442695
        %v773 = vpow.pop %v772
        %v774 = vmul.f32 %v714, 1.442695
        %v775 = vpow.pop %v774
        %v776 = vmul.f32 %v715, 1.442695
        %v777 = vpow.pop %v776
        %v778 = vmul.f32 %v716, 1.442695
        %v779 = vpow.pop %v778
        %v780 = vmul.f32 %v717, 1.442695
        %v781 = vpow.pop %v780
        %v782 = vadd.f32 %v719, 1.0
        %v783 = vadd.f32 %v721, 1.0
        %v784 = vadd.f32 %v723, 1.0
        %v785 = vadd.f32 %v725, 1.0
        %v786 = vadd.f32 %v727, 1.0
        %v787 = vadd.f32 %v729, 1.0
        %v788 = vadd.f32 %v731, 1.0
        %v789 = vadd.f32 %v733, 1.0
        %v790 = vadd.f32 %v735, 1.0
        %v791 = vadd.f32 %v737, 1.0
        %v792 = vadd.f32 %v739, 1.0
        %v793 = vadd.f32 %v741, 1.0
        %v794 = vadd.f32 %v743, 1.0
        %v795 = vadd.f32 %v745, 1.0
        %v796 = vadd.f32 %v747, 1.0
        %v797 = vadd.f32 %v749, 1.0
        %v798 = vadd.f32 %v751, 1.0
        %v799 = vadd.f32 %v753, 1.0
        %v800 = vadd.f32 %v755, 1.0
        %v801 = vadd.f32 %v757, 1.0
        %v802 = vadd.f32 %v759, 1.0
        %v803 = vadd.f32 %v761, 1.0
        %v804 = vadd.f32 %v763, 1.0
        %v805 = vadd.f32 %v765, 1.0
        %v806 = vadd.f32 %v767, 1.0
        %v807 = vadd.f32 %v769, 1.0
        %v808 = vadd.f32 %v771, 1.0
        %v809 = vadd.f32 %v773, 1.0
        %v810 = vadd.f32 %v775, 1.0
        %v811 = vadd.f32 %v777, 1.0
        %v812 = vadd.f32 %v779, 1.0
        %v813 = vadd.f32 %v781, 1.0
        %v814 = vrcp.pop %v782
        %v815 = vmul.f32 1.0, %v814
        %v816 = vrcp.pop %v783
        %v817 = vmul.f32 1.0, %v816
        %v818 = vrcp.pop %v784
        %v819 = vmul.f32 1.0, %v818
        %v820 = vrcp.pop %v785
        %v821 = vmul.f32 1.0, %v820
        %v822 = vrcp.pop %v786
        %v823 = vmul.f32 1.0, %v822
        %v824 = vrcp.pop %v787
        %v825 = vmul.f32 1.0, %v824
        %v826 = vrcp.pop %v788
        %v827 = vmul.f32 1.0, %v826
        %v828 = vrcp.pop %v789
        %v829 = vmul.f32 1.0, %v828
        %v830 = vrcp.pop %v790
        %v831 = vmul.f32 1.0, %v830
        %v832 = vrcp.pop %v791
        %v833 = vmul.f32 1.0, %v832
        %v834 = vrcp.pop %v792
        %v835 = vmul.f32 1.0, %v834
        %v836 = vrcp.pop %v793
        %v837 = vmul.f32 1.0, %v836
        %v838 = vrcp.pop %v794
        %v839 = vmul.f32 1.0, %v838
        %v840 = vrcp.pop %v795
        %v841 = vmul.f32 1.0, %v840
        %v842 = vrcp.pop %v796
        %v843 = vmul.f32 1.0, %v842
        %v844 = vrcp.pop %v797
        %v845 = vmul.f32 1.0, %v844
        %v846 = vrcp.pop %v798
        %v847 = vmul.f32 1.0, %v846
        %v848 = vrcp.pop %v799
        %v849 = vmul.f32 1.0, %v848
        %v850 = vrcp.pop %v800
        %v851 = vmul.f32 1.0, %v850
        %v852 = vrcp.pop %v801
        %v853 = vmul.f32 1.0, %v852
        %v854 = vrcp.pop %v802
        %v855 = vmul.f32 1.0, %v854
        %v856 = vrcp.pop %v803
        %v857 = vmul.f32 1.0, %v856
        %v858 = vrcp.pop %v804
        %v859 = vmul.f32 1.0, %v858
        %v860 = vrcp.pop %v805
        %v861 = vmul.f32 1.0, %v860
        %v862 = vrcp.pop %v806
        %v863 = vmul.f32 1.0, %v862
        %v864 = vrcp.pop %v807
        %v865 = vmul.f32 1.0, %v864
        %v866 = vrcp.pop %v808
        %v867 = vmul.f32 1.0, %v866
        %v868 = vrcp.pop %v809
        %v869 = vmul.f32 1.0, %v868
        %v870 = vrcp.pop %v810
        %v871 = vmul.f32 1.0, %v870
        %v872 = vrcp.pop %v811
        %v873 = vmul.f32 1.0, %v872
        %v874 = vrcp.pop %v812
        %v875 = vmul.f32 1.0, %v874
        %v876 = vrcp.pop %v813
        %v877 = vmul.f32 1.0, %v876
        %v878 = vmul.f32 %v528, %v815
        %v879 = vmul.f32 %v533, %v817
        %v880 = vmul.f32 %v538, %v819
        %v881 = vmul.f32 %v543, %v821
        %v882 = vmul.f32 %v548, %v823
        %v883 = vmul.f32 %v553, %v825
        %v884 = vmul.f32 %v558, %v827
        %v885 = vmul.f32 %v563, %v829
        %v886 = vmul.f32 %v568, %v831
        %v887 = vmul.f32 %v573, %v833
        %v888 = vmul.f32 %v578, %v835
        %v889 = vmul.f32 %v583, %v837
        %v890 = vmul.f32 %v588, %v839
        %v891 = vmul.f32 %v593, %v841
        %v892 = vmul.f32 %v598, %v843
        %v893 = vmul.f32 %v603, %v845
        %v894 = vmul.f32 %v608, %v847
        %v895 = vmul.f32 %v613, %v849
        %v896 = vmul.f32 %v618, %v851
        %v897 = vmul.f32 %v623, %v853
        %v898 = vmul.f32 %v628, %v855
        %v899 = vmul.f32 %v633, %v857
        %v900 = vmul.f32 %v638, %v859
        %v901 = vmul.f32 %v643, %v861
        %v902 = vmul.f32 %v648, %v863
        %v903 = vmul.f32 %v653, %v865
        %v904 = vmul.f32 %v658, %v867
        %v905 = vmul.f32 %v663, %v869
        %v906 = vmul.f32 %v668, %v871
        %v907 = vmul.f32 %v673, %v873
        %v908 = vmul.f32 %v678, %v875
        %v909 = vmul.f32 %v683, %v877
        %v910 = vlaneseq
        %v911 = vand.u32 %v910, 127
        %vm912 = vcmp.lt.s32.totalorder %v911, 32
        %v913 = vsel %vm912, 1, 0
        %v914 = vcvt.s32.f32 %v913
        %v915 = vmul.f32 %v878, %v914
        %v916 = vmul.f32 %v879, %v914
        %v917 = vmul.f32 %v880, %v914
        %v918 = vmul.f32 %v881, %v914
        %v919 = vmul.f32 %v882, %v914
        %v920 = vmul.f32 %v883, %v914
        %v921 = vmul.f32 %v884, %v914
        %v922 = vmul.f32 %v885, %v914
        %v923 = vmul.f32 %v886, %v914
        %v924 = vmul.f32 %v887, %v914
        %v925 = vmul.f32 %v888, %v914
        %v926 = vmul.f32 %v889, %v914
        %v927 = vmul.f32 %v890, %v914
        %v928 = vmul.f32 %v891, %v914
        %v929 = vmul.f32 %v892, %v914
        %v930 = vmul.f32 %v893, %v914
        %v931 = vmul.f32 %v894, %v914
        %v932 = vmul.f32 %v895, %v914
        %v933 = vmul.f32 %v896, %v914
        %v934 = vmul.f32 %v897, %v914
        %v935 = vmul.f32 %v898, %v914
        %v936 = vmul.f32 %v899, %v914
        %v937 = vmul.f32 %v900, %v914
        %v938 = vmul.f32 %v901, %v914
        %v939 = vmul.f32 %v902, %v914
        %v940 = vmul.f32 %v903, %v914
        %v941 = vmul.f32 %v904, %v914
        %v942 = vmul.f32 %v905, %v914
        %v943 = vmul.f32 %v906, %v914
        %v944 = vmul.f32 %v907, %v914
        %v945 = vmul.f32 %v908, %v914
        %v946 = vmul.f32 %v909, %v914
        %947 = vadd.xlane.f32.xlu0 %v915
        %v948 = vpop.xlane.xlu0 %947
        %949 = vadd.xlane.f32.xlu0 %v916
        %v950 = vpop.xlane.xlu0 %949
        %951 = vadd.xlane.f32.xlu0 %v917
        %v952 = vpop.xlane.xlu0 %951
        %953 = vadd.xlane.f32.xlu0 %v918
        %v954 = vpop.xlane.xlu0 %953
        %955 = vadd.xlane.f32.xlu0 %v919
        %v956 = vpop.xlane.xlu0 %955
        %957 = vadd.xlane.f32.xlu0 %v920
        %v958 = vpop.xlane.xlu0 %957
        %959 = vadd.xlane.f32.xlu0 %v921
        %v960 = vpop.xlane.xlu0 %959
        %961 = vadd.xlane.f32.xlu0 %v922
        %v962 = vpop.xlane.xlu0 %961
        %963 = vadd.xlane.f32.xlu0 %v923
        %v964 = vpop.xlane.xlu0 %963
        %965 = vadd.xlane.f32.xlu0 %v924
        %v966 = vpop.xlane.xlu0 %965
        %967 = vadd.xlane.f32.xlu0 %v925
        %v968 = vpop.xlane.xlu0 %967
        %969 = vadd.xlane.f32.xlu0 %v926
        %v970 = vpop.xlane.xlu0 %969
        %971 = vadd.xlane.f32.xlu0 %v927
        %v972 = vpop.xlane.xlu0 %971
        %973 = vadd.xlane.f32.xlu0 %v928
        %v974 = vpop.xlane.xlu0 %973
        %975 = vadd.xlane.f32.xlu0 %v929
        %v976 = vpop.xlane.xlu0 %975
        %977 = vadd.xlane.f32.xlu0 %v930
        %v978 = vpop.xlane.xlu0 %977
        %979 = vadd.xlane.f32.xlu0 %v931
        %v980 = vpop.xlane.xlu0 %979
        %981 = vadd.xlane.f32.xlu0 %v932
        %v982 = vpop.xlane.xlu0 %981
        %983 = vadd.xlane.f32.xlu0 %v933
        %v984 = vpop.xlane.xlu0 %983
        %985 = vadd.xlane.f32.xlu0 %v934
        %v986 = vpop.xlane.xlu0 %985
        %987 = vadd.xlane.f32.xlu0 %v935
        %v988 = vpop.xlane.xlu0 %987
        %989 = vadd.xlane.f32.xlu0 %v936
        %v990 = vpop.xlane.xlu0 %989
        %991 = vadd.xlane.f32.xlu0 %v937
        %v992 = vpop.xlane.xlu0 %991
        %993 = vadd.xlane.f32.xlu0 %v938
        %v994 = vpop.xlane.xlu0 %993
        %995 = vadd.xlane.f32.xlu0 %v939
        %v996 = vpop.xlane.xlu0 %995
        %997 = vadd.xlane.f32.xlu0 %v940
        %v998 = vpop.xlane.xlu0 %997
        %999 = vadd.xlane.f32.xlu0 %v941
        %v1000 = vpop.xlane.xlu0 %999
        %1001 = vadd.xlane.f32.xlu0 %v942
        %v1002 = vpop.xlane.xlu0 %1001
        %1003 = vadd.xlane.f32.xlu0 %v943
        %v1004 = vpop.xlane.xlu0 %1003
        %1005 = vadd.xlane.f32.xlu0 %v944
        %v1006 = vpop.xlane.xlu0 %1005
        %1007 = vadd.xlane.f32.xlu0 %v945
        %v1008 = vpop.xlane.xlu0 %1007
        %1009 = vadd.xlane.f32.xlu0 %v946
        %v1010 = vpop.xlane.xlu0 %1009
        %v1011 = vmul.f32 %v948, 0.03125
        %v1012 = vmul.f32 %v950, 0.03125
        %v1013 = vmul.f32 %v952, 0.03125
        %v1014 = vmul.f32 %v954, 0.03125
        %v1015 = vmul.f32 %v956, 0.03125
        %v1016 = vmul.f32 %v958, 0.03125
        %v1017 = vmul.f32 %v960, 0.03125
        %v1018 = vmul.f32 %v962, 0.03125
        %v1019 = vmul.f32 %v964, 0.03125
        %v1020 = vmul.f32 %v966, 0.03125
        %v1021 = vmul.f32 %v968, 0.03125
        %v1022 = vmul.f32 %v970, 0.03125
        %v1023 = vmul.f32 %v972, 0.03125
        %v1024 = vmul.f32 %v974, 0.03125
        %v1025 = vmul.f32 %v976, 0.03125
        %v1026 = vmul.f32 %v978, 0.03125
        %v1027 = vmul.f32 %v980, 0.03125
        %v1028 = vmul.f32 %v982, 0.03125
        %v1029 = vmul.f32 %v984, 0.03125
        %v1030 = vmul.f32 %v986, 0.03125
        %v1031 = vmul.f32 %v988, 0.03125
        %v1032 = vmul.f32 %v990, 0.03125
        %v1033 = vmul.f32 %v992, 0.03125
        %v1034 = vmul.f32 %v994, 0.03125
        %v1035 = vmul.f32 %v996, 0.03125
        %v1036 = vmul.f32 %v998, 0.03125
        %v1037 = vmul.f32 %v1000, 0.03125
        %v1038 = vmul.f32 %v1002, 0.03125
        %v1039 = vmul.f32 %v1004, 0.03125
        %v1040 = vmul.f32 %v1006, 0.03125
        %v1041 = vmul.f32 %v1008, 0.03125
        %v1042 = vmul.f32 %v1010, 0.03125
        %v1043 = vsub.f32 %v878, %v1011
        %v1044 = vsub.f32 %v879, %v1012
        %v1045 = vsub.f32 %v880, %v1013
        %v1046 = vsub.f32 %v881, %v1014
        %v1047 = vsub.f32 %v882, %v1015
        %v1048 = vsub.f32 %v883, %v1016
        %v1049 = vsub.f32 %v884, %v1017
        %v1050 = vsub.f32 %v885, %v1018
        %v1051 = vsub.f32 %v886, %v1019
        %v1052 = vsub.f32 %v887, %v1020
        %v1053 = vsub.f32 %v888, %v1021
        %v1054 = vsub.f32 %v889, %v1022
        %v1055 = vsub.f32 %v890, %v1023
        %v1056 = vsub.f32 %v891, %v1024
        %v1057 = vsub.f32 %v892, %v1025
        %v1058 = vsub.f32 %v893, %v1026
        %v1059 = vsub.f32 %v894, %v1027
        %v1060 = vsub.f32 %v895, %v1028
        %v1061 = vsub.f32 %v896, %v1029
        %v1062 = vsub.f32 %v897, %v1030
        %v1063 = vsub.f32 %v898, %v1031
        %v1064 = vsub.f32 %v899, %v1032
        %v1065 = vsub.f32 %v900, %v1033
        %v1066 = vsub.f32 %v901, %v1034
        %v1067 = vsub.f32 %v902, %v1035
        %v1068 = vsub.f32 %v903, %v1036
        %v1069 = vsub.f32 %v904, %v1037
        %v1070 = vsub.f32 %v905, %v1038
        %v1071 = vsub.f32 %v906, %v1039
        %v1072 = vsub.f32 %v907, %v1040
        %v1073 = vsub.f32 %v908, %v1041
        %v1074 = vsub.f32 %v909, %v1042
        %v1075 = vmul.f32 %v1043, %v914
        %v1076 = vmul.f32 %v1044, %v914
        %v1077 = vmul.f32 %v1045, %v914
        %v1078 = vmul.f32 %v1046, %v914
        %v1079 = vmul.f32 %v1047, %v914
        %v1080 = vmul.f32 %v1048, %v914
        %v1081 = vmul.f32 %v1049, %v914
        %v1082 = vmul.f32 %v1050, %v914
        %v1083 = vmul.f32 %v1051, %v914
        %v1084 = vmul.f32 %v1052, %v914
        %v1085 = vmul.f32 %v1053, %v914
        %v1086 = vmul.f32 %v1054, %v914
        %v1087 = vmul.f32 %v1055, %v914
        %v1088 = vmul.f32 %v1056, %v914
        %v1089 = vmul.f32 %v1057, %v914
        %v1090 = vmul.f32 %v1058, %v914
        %v1091 = vmul.f32 %v1059, %v914
        %v1092 = vmul.f32 %v1060, %v914
        %v1093 = vmul.f32 %v1061, %v914
        %v1094 = vmul.f32 %v1062, %v914
        %v1095 = vmul.f32 %v1063, %v914
        %v1096 = vmul.f32 %v1064, %v914
        %v1097 = vmul.f32 %v1065, %v914
        %v1098 = vmul.f32 %v1066, %v914
        %v1099 = vmul.f32 %v1067, %v914
        %v1100 = vmul.f32 %v1068, %v914
        %v1101 = vmul.f32 %v1069, %v914
        %v1102 = vmul.f32 %v1070, %v914
        %v1103 = vmul.f32 %v1071, %v914
        %v1104 = vmul.f32 %v1072, %v914
        %v1105 = vmul.f32 %v1073, %v914
        %v1106 = vmul.f32 %v1074, %v914
        %v1107 = vmul.f32 %v1075, %v1075
        %v1108 = vmul.f32 %v1076, %v1076
        %v1109 = vmul.f32 %v1077, %v1077
        %v1110 = vmul.f32 %v1078, %v1078
        %v1111 = vmul.f32 %v1079, %v1079
        %v1112 = vmul.f32 %v1080, %v1080
        %v1113 = vmul.f32 %v1081, %v1081
        %v1114 = vmul.f32 %v1082, %v1082
        %v1115 = vmul.f32 %v1083, %v1083
        %v1116 = vmul.f32 %v1084, %v1084
        %v1117 = vmul.f32 %v1085, %v1085
        %v1118 = vmul.f32 %v1086, %v1086
        %v1119 = vmul.f32 %v1087, %v1087
        %v1120 = vmul.f32 %v1088, %v1088
        %v1121 = vmul.f32 %v1089, %v1089
        %v1122 = vmul.f32 %v1090, %v1090
        %v1123 = vmul.f32 %v1091, %v1091
        %v1124 = vmul.f32 %v1092, %v1092
        %v1125 = vmul.f32 %v1093, %v1093
        %v1126 = vmul.f32 %v1094, %v1094
        %v1127 = vmul.f32 %v1095, %v1095
        %v1128 = vmul.f32 %v1096, %v1096
        %v1129 = vmul.f32 %v1097, %v1097
        %v1130 = vmul.f32 %v1098, %v1098
        %v1131 = vmul.f32 %v1099, %v1099
        %v1132 = vmul.f32 %v1100, %v1100
        %v1133 = vmul.f32 %v1101, %v1101
        %v1134 = vmul.f32 %v1102, %v1102
        %v1135 = vmul.f32 %v1103, %v1103
        %v1136 = vmul.f32 %v1104, %v1104
        %v1137 = vmul.f32 %v1105, %v1105
        %v1138 = vmul.f32 %v1106, %v1106
        %1139 = vadd.xlane.f32.xlu0 %v1107
        %v1140 = vpop.xlane.xlu0 %1139
        %1141 = vadd.xlane.f32.xlu0 %v1108
        %v1142 = vpop.xlane.xlu0 %1141
        %1143 = vadd.xlane.f32.xlu0 %v1109
        %v1144 = vpop.xlane.xlu0 %1143
        %1145 = vadd.xlane.f32.xlu0 %v1110
        %v1146 = vpop.xlane.xlu0 %1145
        %1147 = vadd.xlane.f32.xlu0 %v1111
        %v1148 = vpop.xlane.xlu0 %1147
        %1149 = vadd.xlane.f32.xlu0 %v1112
        %v1150 = vpop.xlane.xlu0 %1149
        %1151 = vadd.xlane.f32.xlu0 %v1113
        %v1152 = vpop.xlane.xlu0 %1151
        %1153 = vadd.xlane.f32.xlu0 %v1114
        %v1154 = vpop.xlane.xlu0 %1153
        %1155 = vadd.xlane.f32.xlu0 %v1115
        %v1156 = vpop.xlane.xlu0 %1155
        %1157 = vadd.xlane.f32.xlu0 %v1116
        %v1158 = vpop.xlane.xlu0 %1157
        %1159 = vadd.xlane.f32.xlu0 %v1117
        %v1160 = vpop.xlane.xlu0 %1159
        %1161 = vadd.xlane.f32.xlu0 %v1118
        %v1162 = vpop.xlane.xlu0 %1161
        %1163 = vadd.xlane.f32.xlu0 %v1119
        %v1164 = vpop.xlane.xlu0 %1163
        %1165 = vadd.xlane.f32.xlu0 %v1120
        %v1166 = vpop.xlane.xlu0 %1165
        %1167 = vadd.xlane.f32.xlu0 %v1121
        %v1168 = vpop.xlane.xlu0 %1167
        %1169 = vadd.xlane.f32.xlu0 %v1122
        %v1170 = vpop.xlane.xlu0 %1169
        %1171 = vadd.xlane.f32.xlu0 %v1123
        %v1172 = vpop.xlane.xlu0 %1171
        %1173 = vadd.xlane.f32.xlu0 %v1124
        %v1174 = vpop.xlane.xlu0 %1173
        %1175 = vadd.xlane.f32.xlu0 %v1125
        %v1176 = vpop.xlane.xlu0 %1175
        %1177 = vadd.xlane.f32.xlu0 %v1126
        %v1178 = vpop.xlane.xlu0 %1177
        %1179 = vadd.xlane.f32.xlu0 %v1127
        %v1180 = vpop.xlane.xlu0 %1179
        %1181 = vadd.xlane.f32.xlu0 %v1128
        %v1182 = vpop.xlane.xlu0 %1181
        %1183 = vadd.xlane.f32.xlu0 %v1129
        %v1184 = vpop.xlane.xlu0 %1183
        %1185 = vadd.xlane.f32.xlu0 %v1130
        %v1186 = vpop.xlane.xlu0 %1185
        %1187 = vadd.xlane.f32.xlu0 %v1131
        %v1188 = vpop.xlane.xlu0 %1187
        %1189 = vadd.xlane.f32.xlu0 %v1132
        %v1190 = vpop.xlane.xlu0 %1189
        %1191 = vadd.xlane.f32.xlu0 %v1133
        %v1192 = vpop.xlane.xlu0 %1191
        %1193 = vadd.xlane.f32.xlu0 %v1134
        %v1194 = vpop.xlane.xlu0 %1193
        %1195 = vadd.xlane.f32.xlu0 %v1135
        %v1196 = vpop.xlane.xlu0 %1195
        %1197 = vadd.xlane.f32.xlu0 %v1136
        %v1198 = vpop.xlane.xlu0 %1197
        %1199 = vadd.xlane.f32.xlu0 %v1137
        %v1200 = vpop.xlane.xlu0 %1199
        %1201 = vadd.xlane.f32.xlu0 %v1138
        %v1202 = vpop.xlane.xlu0 %1201
        %v1203 = vmul.f32 %v1140, 0.03125
        %v1204 = vmul.f32 %v1142, 0.03125
        %v1205 = vmul.f32 %v1144, 0.03125
        %v1206 = vmul.f32 %v1146, 0.03125
        %v1207 = vmul.f32 %v1148, 0.03125
        %v1208 = vmul.f32 %v1150, 0.03125
        %v1209 = vmul.f32 %v1152, 0.03125
        %v1210 = vmul.f32 %v1154, 0.03125
        %v1211 = vmul.f32 %v1156, 0.03125
        %v1212 = vmul.f32 %v1158, 0.03125
        %v1213 = vmul.f32 %v1160, 0.03125
        %v1214 = vmul.f32 %v1162, 0.03125
        %v1215 = vmul.f32 %v1164, 0.03125
        %v1216 = vmul.f32 %v1166, 0.03125
        %v1217 = vmul.f32 %v1168, 0.03125
        %v1218 = vmul.f32 %v1170, 0.03125
        %v1219 = vmul.f32 %v1172, 0.03125
        %v1220 = vmul.f32 %v1174, 0.03125
        %v1221 = vmul.f32 %v1176, 0.03125
        %v1222 = vmul.f32 %v1178, 0.03125
        %v1223 = vmul.f32 %v1180, 0.03125
        %v1224 = vmul.f32 %v1182, 0.03125
        %v1225 = vmul.f32 %v1184, 0.03125
        %v1226 = vmul.f32 %v1186, 0.03125
        %v1227 = vmul.f32 %v1188, 0.03125
        %v1228 = vmul.f32 %v1190, 0.03125
        %v1229 = vmul.f32 %v1192, 0.03125
        %v1230 = vmul.f32 %v1194, 0.03125
        %v1231 = vmul.f32 %v1196, 0.03125
        %v1232 = vmul.f32 %v1198, 0.03125
        %v1233 = vmul.f32 %v1200, 0.03125
        %v1234 = vmul.f32 %v1202, 0.03125
        %v1235 = vadd.f32 %v1203, 1e-05
        %v1236 = vadd.f32 %v1204, 1e-05
        %v1237 = vadd.f32 %v1205, 1e-05
        %v1238 = vadd.f32 %v1206, 1e-05
        %v1239 = vadd.f32 %v1207, 1e-05
        %v1240 = vadd.f32 %v1208, 1e-05
        %v1241 = vadd.f32 %v1209, 1e-05
        %v1242 = vadd.f32 %v1210, 1e-05
        %v1243 = vadd.f32 %v1211, 1e-05
        %v1244 = vadd.f32 %v1212, 1e-05
        %v1245 = vadd.f32 %v1213, 1e-05
        %v1246 = vadd.f32 %v1214, 1e-05
        %v1247 = vadd.f32 %v1215, 1e-05
        %v1248 = vadd.f32 %v1216, 1e-05
        %v1249 = vadd.f32 %v1217, 1e-05
        %v1250 = vadd.f32 %v1218, 1e-05
        %v1251 = vadd.f32 %v1219, 1e-05
        %v1252 = vadd.f32 %v1220, 1e-05
        %v1253 = vadd.f32 %v1221, 1e-05
        %v1254 = vadd.f32 %v1222, 1e-05
        %v1255 = vadd.f32 %v1223, 1e-05
        %v1256 = vadd.f32 %v1224, 1e-05
        %v1257 = vadd.f32 %v1225, 1e-05
        %v1258 = vadd.f32 %v1226, 1e-05
        %v1259 = vadd.f32 %v1227, 1e-05
        %v1260 = vadd.f32 %v1228, 1e-05
        %v1261 = vadd.f32 %v1229, 1e-05
        %v1262 = vadd.f32 %v1230, 1e-05
        %v1263 = vadd.f32 %v1231, 1e-05
        %v1264 = vadd.f32 %v1232, 1e-05
        %v1265 = vadd.f32 %v1233, 1e-05
        %v1266 = vadd.f32 %v1234, 1e-05
        %v1267 = vrsqrt.pop %v1235
        %v1268 = vrsqrt.pop %v1236
        %v1269 = vrsqrt.pop %v1237
        %v1270 = vrsqrt.pop %v1238
        %v1271 = vrsqrt.pop %v1239
        %v1272 = vrsqrt.pop %v1240
        %v1273 = vrsqrt.pop %v1241
        %v1274 = vrsqrt.pop %v1242
        %v1275 = vrsqrt.pop %v1243
        %v1276 = vrsqrt.pop %v1244
        %v1277 = vrsqrt.pop %v1245
        %v1278 = vrsqrt.pop %v1246
        %v1279 = vrsqrt.pop %v1247
        %v1280 = vrsqrt.pop %v1248
        %v1281 = vrsqrt.pop %v1249
        %v1282 = vrsqrt.pop %v1250
        %v1283 = vrsqrt.pop %v1251
        %v1284 = vrsqrt.pop %v1252
        %v1285 = vrsqrt.pop %v1253
        %v1286 = vrsqrt.pop %v1254
        %v1287 = vrsqrt.pop %v1255
        %v1288 = vrsqrt.pop %v1256
        %v1289 = vrsqrt.pop %v1257
        %v1290 = vrsqrt.pop %v1258
        %v1291 = vrsqrt.pop %v1259
        %v1292 = vrsqrt.pop %v1260
        %v1293 = vrsqrt.pop %v1261
        %v1294 = vrsqrt.pop %v1262
        %v1295 = vrsqrt.pop %v1263
        %v1296 = vrsqrt.pop %v1264
        %v1297 = vrsqrt.pop %v1265
        %v1298 = vrsqrt.pop %v1266
        %v1299 = vmul.f32 %v1043, %v1267
        %v1300 = vmul.f32 %v1044, %v1268
        %v1301 = vmul.f32 %v1045, %v1269
        %v1302 = vmul.f32 %v1046, %v1270
        %v1303 = vmul.f32 %v1047, %v1271
        %v1304 = vmul.f32 %v1048, %v1272
        %v1305 = vmul.f32 %v1049, %v1273
        %v1306 = vmul.f32 %v1050, %v1274
        %v1307 = vmul.f32 %v1051, %v1275
        %v1308 = vmul.f32 %v1052, %v1276
        %v1309 = vmul.f32 %v1053, %v1277
        %v1310 = vmul.f32 %v1054, %v1278
        %v1311 = vmul.f32 %v1055, %v1279
        %v1312 = vmul.f32 %v1056, %v1280
        %v1313 = vmul.f32 %v1057, %v1281
        %v1314 = vmul.f32 %v1058, %v1282
        %v1315 = vmul.f32 %v1059, %v1283
        %v1316 = vmul.f32 %v1060, %v1284
        %v1317 = vmul.f32 %v1061, %v1285
        %v1318 = vmul.f32 %v1062, %v1286
        %v1319 = vmul.f32 %v1063, %v1287
        %v1320 = vmul.f32 %v1064, %v1288
        %v1321 = vmul.f32 %v1065, %v1289
        %v1322 = vmul.f32 %v1066, %v1290
        %v1323 = vmul.f32 %v1067, %v1291
        %v1324 = vmul.f32 %v1068, %v1292
        %v1325 = vmul.f32 %v1069, %v1293
        %v1326 = vmul.f32 %v1070, %v1294
        %v1327 = vmul.f32 %v1071, %v1295
        %v1328 = vmul.f32 %v1072, %v1296
        %v1329 = vmul.f32 %v1073, %v1297
        %v1330 = vmul.f32 %v1074, %v1298
        %v1332 = vlaneseq
        %v1333 = vshrl.u32 %v1332, 7
        %v1334 = vsub.s32 0, %v1333
        %v1335 = vrot.slane %v453, %v1334
        %v1337 = vmul.f32 %v1299, %v1335
        %v1338 = vmul.f32 %v1300, %v1335
        %v1339 = vmul.f32 %v1301, %v1335
        %v1340 = vmul.f32 %v1302, %v1335
        %v1341 = vmul.f32 %v1303, %v1335
        %v1342 = vmul.f32 %v1304, %v1335
        %v1343 = vmul.f32 %v1305, %v1335
        %v1344 = vmul.f32 %v1306, %v1335
        %v1345 = vmul.f32 %v1307, %v1335
        %v1346 = vmul.f32 %v1308, %v1335
        %v1347 = vmul.f32 %v1309, %v1335
        %v1348 = vmul.f32 %v1310, %v1335
        %v1349 = vmul.f32 %v1311, %v1335
        %v1350 = vmul.f32 %v1312, %v1335
        %v1351 = vmul.f32 %v1313, %v1335
        %v1352 = vmul.f32 %v1314, %v1335
        %v1353 = vmul.f32 %v1315, %v1335
        %v1354 = vmul.f32 %v1316, %v1335
        %v1355 = vmul.f32 %v1317, %v1335
        %v1356 = vmul.f32 %v1318, %v1335
        %v1357 = vmul.f32 %v1319, %v1335
        %v1358 = vmul.f32 %v1320, %v1335
        %v1359 = vmul.f32 %v1321, %v1335
        %v1360 = vmul.f32 %v1322, %v1335
        %v1361 = vmul.f32 %v1323, %v1335
        %v1362 = vmul.f32 %v1324, %v1335
        %v1363 = vmul.f32 %v1325, %v1335
        %v1364 = vmul.f32 %v1326, %v1335
        %v1365 = vmul.f32 %v1327, %v1335
        %v1366 = vmul.f32 %v1328, %v1335
        %v1367 = vmul.f32 %v1329, %v1335
        %v1368 = vmul.f32 %v1330, %v1335
        %v1370 = vlaneseq
        %v1371 = vshrl.u32 %v1370, 7
        %v1372 = vsub.s32 0, %v1371
        %v1373 = vrot.slane %v454, %v1372
        %v1375 = vadd.f32 %v1337, %v1373
        %v1376 = vadd.f32 %v1338, %v1373
        %v1377 = vadd.f32 %v1339, %v1373
        %v1378 = vadd.f32 %v1340, %v1373
        %v1379 = vadd.f32 %v1341, %v1373
        %v1380 = vadd.f32 %v1342, %v1373
        %v1381 = vadd.f32 %v1343, %v1373
        %v1382 = vadd.f32 %v1344, %v1373
        %v1383 = vadd.f32 %v1345, %v1373
        %v1384 = vadd.f32 %v1346, %v1373
        %v1385 = vadd.f32 %v1347, %v1373
        %v1386 = vadd.f32 %v1348, %v1373
        %v1387 = vadd.f32 %v1349, %v1373
        %v1388 = vadd.f32 %v1350, %v1373
        %v1389 = vadd.f32 %v1351, %v1373
        %v1390 = vadd.f32 %v1352, %v1373
        %v1391 = vadd.f32 %v1353, %v1373
        %v1392 = vadd.f32 %v1354, %v1373
        %v1393 = vadd.f32 %v1355, %v1373
        %v1394 = vadd.f32 %v1356, %v1373
        %v1395 = vadd.f32 %v1357, %v1373
        %v1396 = vadd.f32 %v1358, %v1373
        %v1397 = vadd.f32 %v1359, %v1373
        %v1398 = vadd.f32 %v1360, %v1373
        %v1399 = vadd.f32 %v1361, %v1373
        %v1400 = vadd.f32 %v1362, %v1373
        %v1401 = vadd.f32 %v1363, %v1373
        %v1402 = vadd.f32 %v1364, %v1373
        %v1403 = vadd.f32 %v1365, %v1373
        %v1404 = vadd.f32 %v1366, %v1373
        %v1405 = vadd.f32 %v1367, %v1373
        %v1406 = vadd.f32 %v1368, %v1373
        %v1407 = vpack.c.bf16 %v1376, %v1375
        %v1408 = vpack.c.bf16 %v1378, %v1377
        %v1409 = vpack.c.bf16 %v1380, %v1379
        %v1410 = vpack.c.bf16 %v1382, %v1381
        %v1411 = vpack.c.bf16 %v1384, %v1383
        %v1412 = vpack.c.bf16 %v1386, %v1385
        %v1413 = vpack.c.bf16 %v1388, %v1387
        %v1414 = vpack.c.bf16 %v1390, %v1389
        %v1415 = vpack.c.bf16 %v1392, %v1391
        %v1416 = vpack.c.bf16 %v1394, %v1393
        %v1417 = vpack.c.bf16 %v1396, %v1395
        %v1418 = vpack.c.bf16 %v1398, %v1397
        %v1419 = vpack.c.bf16 %v1400, %v1399
        %v1420 = vpack.c.bf16 %v1402, %v1401
        %v1421 = vpack.c.bf16 %v1404, %v1403
        %v1422 = vpack.c.bf16 %v1406, %v1405
        %v1439 = vunpack.c.l.b16 %v1407
        %v1440 = vunpack.c.h.b16 %v1407
        %v1441 = vunpack.c.l.b16 %v1408
        %v1442 = vunpack.c.h.b16 %v1408
        %v1443 = vunpack.c.l.b16 %v1409
        %v1444 = vunpack.c.h.b16 %v1409
        %v1445 = vunpack.c.l.b16 %v1410
        %v1446 = vunpack.c.h.b16 %v1410
        %v1447 = vunpack.c.l.b16 %v1411
        %v1448 = vunpack.c.h.b16 %v1411
        %v1449 = vunpack.c.l.b16 %v1412
        %v1450 = vunpack.c.h.b16 %v1412
        %v1451 = vunpack.c.l.b16 %v1413
        %v1452 = vunpack.c.h.b16 %v1413
        %v1453 = vunpack.c.l.b16 %v1414
        %v1454 = vunpack.c.h.b16 %v1414
        %v1455 = vunpack.c.l.b16 %v1415
        %v1456 = vunpack.c.h.b16 %v1415
        %v1457 = vunpack.c.l.b16 %v1416
        %v1458 = vunpack.c.h.b16 %v1416
        %v1459 = vunpack.c.l.b16 %v1417
        %v1460 = vunpack.c.h.b16 %v1417
        %v1461 = vunpack.c.l.b16 %v1418
        %v1462 = vunpack.c.h.b16 %v1418
        %v1463 = vunpack.c.l.b16 %v1419
        %v1464 = vunpack.c.h.b16 %v1419
        %v1465 = vunpack.c.l.b16 %v1420
        %v1466 = vunpack.c.h.b16 %v1420
        %v1467 = vunpack.c.l.b16 %v1421
        %v1468 = vunpack.c.h.b16 %v1421
        %v1469 = vunpack.c.l.b16 %v1422
        %v1470 = vunpack.c.h.b16 %v1422
        %v1471 = vpack.c.b16 %v1439, %v1439
        %v1472 = vpack.c.b16 %v1440, %v1440
        %v1473 = vpack.c.b16 %v1441, %v1441
        %v1474 = vpack.c.b16 %v1442, %v1442
        %v1475 = vpack.c.b16 %v1443, %v1443
        %v1476 = vpack.c.b16 %v1444, %v1444
        %v1477 = vpack.c.b16 %v1445, %v1445
        %v1478 = vpack.c.b16 %v1446, %v1446
        %v1479 = vpack.c.b16 %v1447, %v1447
        %v1480 = vpack.c.b16 %v1448, %v1448
        %v1481 = vpack.c.b16 %v1449, %v1449
        %v1482 = vpack.c.b16 %v1450, %v1450
        %v1483 = vpack.c.b16 %v1451, %v1451
        %v1484 = vpack.c.b16 %v1452, %v1452
        %v1485 = vpack.c.b16 %v1453, %v1453
        %v1486 = vpack.c.b16 %v1454, %v1454
        %v1487 = vpack.c.b16 %v1455, %v1455
        %v1488 = vpack.c.b16 %v1456, %v1456
        %v1489 = vpack.c.b16 %v1457, %v1457
        %v1490 = vpack.c.b16 %v1458, %v1458
        %v1491 = vpack.c.b16 %v1459, %v1459
        %v1492 = vpack.c.b16 %v1460, %v1460
        %v1493 = vpack.c.b16 %v1461, %v1461
        %v1494 = vpack.c.b16 %v1462, %v1462
        %v1495 = vpack.c.b16 %v1463, %v1463
        %v1496 = vpack.c.b16 %v1464, %v1464
        %v1497 = vpack.c.b16 %v1465, %v1465
        %v1498 = vpack.c.b16 %v1466, %v1466
        %v1499 = vpack.c.b16 %v1467, %v1467
        %v1500 = vpack.c.b16 %v1468, %v1468
        %v1501 = vpack.c.b16 %v1469, %v1469
        %v1502 = vpack.c.b16 %v1470, %v1470
        %s1535 = sshra.s32 %s326, 3
        %s1536 = sand.u32 %s326, 7
        %s1537 = smul.addr %s1535, 4
        %s1538 = scalar_lea.vmem [#allocation2], %s1537
        %1539 = vst [vmem:[%s1538] sm:$0xf] %v1471
        %1540 = vst [vmem:[%s1538 + $0x4] sm:$0xf] %v1472
        %1541 = vst [vmem:[%s1538 + $0x8] sm:$0xf] %v1473
        %1542 = vst [vmem:[%s1538 + $0xc] sm:$0xf] %v1474
        %1543 = vst [vmem:[%s1538 + $0x10] sm:$0xf] %v1475
        %1544 = vst [vmem:[%s1538 + $0x14] sm:$0xf] %v1476
        %1545 = vst [vmem:[%s1538 + $0x18] sm:$0xf] %v1477
        %1546 = vst [vmem:[%s1538 + $0x1c] sm:$0xf] %v1478
        %1547 = vst [vmem:[%s1538 + $0x20] sm:$0xf] %v1479
        %1548 = vst [vmem:[%s1538 + $0x24] sm:$0xf] %v1480
        %1549 = vst [vmem:[%s1538 + $0x28] sm:$0xf] %v1481
        %1550 = vst [vmem:[%s1538 + $0x2c] sm:$0xf] %v1482
        %1551 = vst [vmem:[%s1538 + $0x30] sm:$0xf] %v1483
        %1552 = vst [vmem:[%s1538 + $0x34] sm:$0xf] %v1484
        %1553 = vst [vmem:[%s1538 + $0x38] sm:$0xf] %v1485
        %1554 = vst [vmem:[%s1538 + $0x3c] sm:$0xf] %v1486
        %1555 = vst [vmem:[%s1538 + $0x40] sm:$0xf] %v1487
        %1556 = vst [vmem:[%s1538 + $0x44] sm:$0xf] %v1488
        %1557 = vst [vmem:[%s1538 + $0x48] sm:$0xf] %v1489
        %1558 = vst [vmem:[%s1538 + $0x4c] sm:$0xf] %v1490
        %1559 = vst [vmem:[%s1538 + $0x50] sm:$0xf] %v1491
        %1560 = vst [vmem:[%s1538 + $0x54] sm:$0xf] %v1492
        %1561 = vst [vmem:[%s1538 + $0x58] sm:$0xf] %v1493
        %1562 = vst [vmem:[%s1538 + $0x5c] sm:$0xf] %v1494
        %1563 = vst [vmem:[%s1538 + $0x60] sm:$0xf] %v1495
        %1564 = vst [vmem:[%s1538 + $0x64] sm:$0xf] %v1496
        %1565 = vst [vmem:[%s1538 + $0x68] sm:$0xf] %v1497
        %1566 = vst [vmem:[%s1538 + $0x6c] sm:$0xf] %v1498
        %1567 = vst [vmem:[%s1538 + $0x70] sm:$0xf] %v1499
        %1568 = vst [vmem:[%s1538 + $0x74] sm:$0xf] %v1500
        %1569 = vst [vmem:[%s1538 + $0x78] sm:$0xf] %v1501
        %1570 = vst [vmem:[%s1538 + $0x7c] sm:$0xf] %v1502
      $region56: #{gnn_encoder_forward.3} parent=47 // pred_fallthru
        _
      %p1571 = scmp.eq.s32.totalorder %s24, 1
      // Predicated region
      $region57: #{gnn_encoder_forward.3} parent=47 // pred_check
        %p1572 = pneg %p1571
      $region58: #{gnn_encoder_forward.3} parent=47 // pred_check_branch
        %1574 = sbr.rel (%p1572) target = $region60
      $region59: #{gnn_encoder_forward.3} parent=47 // pred_region
        %s1575 = sshra.s32 %s326, 3
        %s1576 = sand.u32 %s326, 7
        %s1577 = smul.u32 %s1575, 2
        %s1578 = smul.addr %s1577, 4
        %s1579 = scalar_lea.vmem %s1, %s1578
        %v1580 = vld [vmem:[%s1579] sm:$0xff]
        %v1581 = vld [vmem:[%s1579 + $0x8] sm:$0xff]
        %v1582 = vld [vmem:[%s1579 + $0x10] sm:$0xff]
        %v1583 = vld [vmem:[%s1579 + $0x18] sm:$0xff]
        %v1584 = vld [vmem:[%s1579 + $0x20] sm:$0xff]
        %v1585 = vld [vmem:[%s1579 + $0x28] sm:$0xff]
        %v1586 = vld [vmem:[%s1579 + $0x30] sm:$0xff]
        %v1587 = vld [vmem:[%s1579 + $0x38] sm:$0xff]
        %v1588 = vld [vmem:[%s1579 + $0x40] sm:$0xff]
        %v1589 = vld [vmem:[%s1579 + $0x48] sm:$0xff]
        %v1590 = vld [vmem:[%s1579 + $0x50] sm:$0xff]
        %v1591 = vld [vmem:[%s1579 + $0x58] sm:$0xff]
        %v1592 = vld [vmem:[%s1579 + $0x60] sm:$0xff]
        %v1593 = vld [vmem:[%s1579 + $0x68] sm:$0xff]
        %v1594 = vld [vmem:[%s1579 + $0x70] sm:$0xff]
        %v1595 = vld [vmem:[%s1579 + $0x78] sm:$0xff]
        %v1596 = vld [vmem:[%s1579 + $0x80] sm:$0xff]
        %v1597 = vld [vmem:[%s1579 + $0x88] sm:$0xff]
        %v1598 = vld [vmem:[%s1579 + $0x90] sm:$0xff]
        %v1599 = vld [vmem:[%s1579 + $0x98] sm:$0xff]
        %v1600 = vld [vmem:[%s1579 + $0xa0] sm:$0xff]
        %v1601 = vld [vmem:[%s1579 + $0xa8] sm:$0xff]
        %v1602 = vld [vmem:[%s1579 + $0xb0] sm:$0xff]
        %v1603 = vld [vmem:[%s1579 + $0xb8] sm:$0xff]
        %v1604 = vld [vmem:[%s1579 + $0xc0] sm:$0xff]
        %v1605 = vld [vmem:[%s1579 + $0xc8] sm:$0xff]
        %v1606 = vld [vmem:[%s1579 + $0xd0] sm:$0xff]
        %v1607 = vld [vmem:[%s1579 + $0xd8] sm:$0xff]
        %v1608 = vld [vmem:[%s1579 + $0xe0] sm:$0xff]
        %v1609 = vld [vmem:[%s1579 + $0xe8] sm:$0xff]
        %v1610 = vld [vmem:[%s1579 + $0xf0] sm:$0xff]
        %v1611 = vld [vmem:[%s1579 + $0xf8] sm:$0xff]
        %v1612 = vld [vmem:[#allocation2] sm:$0xf]
        %v1613 = vld [vmem:[#allocation2 + $0x4] sm:$0xf]
        %v1614 = vld [vmem:[#allocation2 + $0x8] sm:$0xf]
        %v1615 = vld [vmem:[#allocation2 + $0xc] sm:$0xf]
        %v1616 = vld [vmem:[#allocation2 + $0x10] sm:$0xf]
        %v1617 = vld [vmem:[#allocation2 + $0x14] sm:$0xf]
        %v1618 = vld [vmem:[#allocation2 + $0x18] sm:$0xf]
        %v1619 = vld [vmem:[#allocation2 + $0x1c] sm:$0xf]
        %v1620 = vld [vmem:[#allocation2 + $0x20] sm:$0xf]
        %v1621 = vld [vmem:[#allocation2 + $0x24] sm:$0xf]
        %v1622 = vld [vmem:[#allocation2 + $0x28] sm:$0xf]
        %v1623 = vld [vmem:[#allocation2 + $0x2c] sm:$0xf]
        %v1624 = vld [vmem:[#allocation2 + $0x30] sm:$0xf]
        %v1625 = vld [vmem:[#allocation2 + $0x34] sm:$0xf]
        %v1626 = vld [vmem:[#allocation2 + $0x38] sm:$0xf]
        %v1627 = vld [vmem:[#allocation2 + $0x3c] sm:$0xf]
        %v1628 = vld [vmem:[#allocation2 + $0x40] sm:$0xf]
        %v1629 = vld [vmem:[#allocation2 + $0x44] sm:$0xf]
        %v1630 = vld [vmem:[#allocation2 + $0x48] sm:$0xf]
        %v1631 = vld [vmem:[#allocation2 + $0x4c] sm:$0xf]
        %v1632 = vld [vmem:[#allocation2 + $0x50] sm:$0xf]
        %v1633 = vld [vmem:[#allocation2 + $0x54] sm:$0xf]
        %v1634 = vld [vmem:[#allocation2 + $0x58] sm:$0xf]
        %v1635 = vld [vmem:[#allocation2 + $0x5c] sm:$0xf]
        %v1636 = vld [vmem:[#allocation2 + $0x60] sm:$0xf]
        %v1637 = vld [vmem:[#allocation2 + $0x64] sm:$0xf]
        %v1638 = vld [vmem:[#allocation2 + $0x68] sm:$0xf]
        %v1639 = vld [vmem:[#allocation2 + $0x6c] sm:$0xf]
        %v1640 = vld [vmem:[#allocation2 + $0x70] sm:$0xf]
        %v1641 = vld [vmem:[#allocation2 + $0x74] sm:$0xf]
        %v1642 = vld [vmem:[#allocation2 + $0x78] sm:$0xf]
        %v1643 = vld [vmem:[#allocation2 + $0x7c] sm:$0xf]
        %v1676 = vunpack.c.l.b16 %v1580
        %v1677 = vunpack.c.h.b16 %v1580
        %v1678 = vunpack.c.l.b16 %v1581
        %v1679 = vunpack.c.h.b16 %v1581
        %v1680 = vunpack.c.l.b16 %v1582
        %v1681 = vunpack.c.h.b16 %v1582
        %v1682 = vunpack.c.l.b16 %v1583
        %v1683 = vunpack.c.h.b16 %v1583
        %v1684 = vunpack.c.l.b16 %v1584
        %v1685 = vunpack.c.h.b16 %v1584
        %v1686 = vunpack.c.l.b16 %v1585
        %v1687 = vunpack.c.h.b16 %v1585
        %v1688 = vunpack.c.l.b16 %v1586
        %v1689 = vunpack.c.h.b16 %v1586
        %v1690 = vunpack.c.l.b16 %v1587
        %v1691 = vunpack.c.h.b16 %v1587
        %v1692 = vunpack.c.l.b16 %v1588
        %v1693 = vunpack.c.h.b16 %v1588
        %v1694 = vunpack.c.l.b16 %v1589
        %v1695 = vunpack.c.h.b16 %v1589
        %v1696 = vunpack.c.l.b16 %v1590
        %v1697 = vunpack.c.h.b16 %v1590
        %v1698 = vunpack.c.l.b16 %v1591
        %v1699 = vunpack.c.h.b16 %v1591
        %v1700 = vunpack.c.l.b16 %v1592
        %v1701 = vunpack.c.h.b16 %v1592
        %v1702 = vunpack.c.l.b16 %v1593
        %v1703 = vunpack.c.h.b16 %v1593
        %v1704 = vunpack.c.l.b16 %v1594
        %v1705 = vunpack.c.h.b16 %v1594
        %v1706 = vunpack.c.l.b16 %v1595
        %v1707 = vunpack.c.h.b16 %v1595
        %v1708 = vunpack.c.l.b16 %v1596
        %v1709 = vunpack.c.h.b16 %v1596
        %v1710 = vunpack.c.l.b16 %v1597
        %v1711 = vunpack.c.h.b16 %v1597
        %v1712 = vunpack.c.l.b16 %v1598
        %v1713 = vunpack.c.h.b16 %v1598
        %v1714 = vunpack.c.l.b16 %v1599
        %v1715 = vunpack.c.h.b16 %v1599
        %v1716 = vunpack.c.l.b16 %v1600
        %v1717 = vunpack.c.h.b16 %v1600
        %v1718 = vunpack.c.l.b16 %v1601
        %v1719 = vunpack.c.h.b16 %v1601
        %v1720 = vunpack.c.l.b16 %v1602
        %v1721 = vunpack.c.h.b16 %v1602
        %v1722 = vunpack.c.l.b16 %v1603
        %v1723 = vunpack.c.h.b16 %v1603
        %v1724 = vunpack.c.l.b16 %v1604
        %v1725 = vunpack.c.h.b16 %v1604
        %v1726 = vunpack.c.l.b16 %v1605
        %v1727 = vunpack.c.h.b16 %v1605
        %v1728 = vunpack.c.l.b16 %v1606
        %v1729 = vunpack.c.h.b16 %v1606
        %v1730 = vunpack.c.l.b16 %v1607
        %v1731 = vunpack.c.h.b16 %v1607
        %v1732 = vunpack.c.l.b16 %v1608
        %v1733 = vunpack.c.h.b16 %v1608
        %v1734 = vunpack.c.l.b16 %v1609
        %v1735 = vunpack.c.h.b16 %v1609
        %v1736 = vunpack.c.l.b16 %v1610
        %v1737 = vunpack.c.h.b16 %v1610
        %v1738 = vunpack.c.l.b16 %v1611
        %v1739 = vunpack.c.h.b16 %v1611
        %v1740 = vpack.c.b16 %v1678, %v1676
        %v1741 = vpack.c.b16 %v1679, %v1677
        %v1742 = vpack.c.b16 %v1682, %v1680
        %v1743 = vpack.c.b16 %v1683, %v1681
        %v1744 = vpack.c.b16 %v1686, %v1684
        %v1745 = vpack.c.b16 %v1687, %v1685
        %v1746 = vpack.c.b16 %v1690, %v1688
        %v1747 = vpack.c.b16 %v1691, %v1689
        %v1748 = vpack.c.b16 %v1694, %v1692
        %v1749 = vpack.c.b16 %v1695, %v1693
        %v1750 = vpack.c.b16 %v1698, %v1696
        %v1751 = vpack.c.b16 %v1699, %v1697
        %v1752 = vpack.c.b16 %v1702, %v1700
        %v1753 = vpack.c.b16 %v1703, %v1701
        %v1754 = vpack.c.b16 %v1706, %v1704
        %v1755 = vpack.c.b16 %v1707, %v1705
        %v1756 = vpack.c.b16 %v1710, %v1708
        %v1757 = vpack.c.b16 %v1711, %v1709
        %v1758 = vpack.c.b16 %v1714, %v1712
        %v1759 = vpack.c.b16 %v1715, %v1713
        %v1760 = vpack.c.b16 %v1718, %v1716
        %v1761 = vpack.c.b16 %v1719, %v1717
        %v1762 = vpack.c.b16 %v1722, %v1720
        %v1763 = vpack.c.b16 %v1723, %v1721
        %v1764 = vpack.c.b16 %v1726, %v1724
        %v1765 = vpack.c.b16 %v1727, %v1725
        %v1766 = vpack.c.b16 %v1730, %v1728
        %v1767 = vpack.c.b16 %v1731, %v1729
        %v1768 = vpack.c.b16 %v1734, %v1732
        %v1769 = vpack.c.b16 %v1735, %v1733
        %v1770 = vpack.c.b16 %v1738, %v1736
        %v1771 = vpack.c.b16 %v1739, %v1737
        %v1836 = vunpack.c.l.b16 %v1612
        %v1837 = vunpack.c.l.b16 %v1613
        %v1838 = vunpack.c.l.b16 %v1614
        %v1839 = vunpack.c.l.b16 %v1615
        %v1840 = vunpack.c.l.b16 %v1616
        %v1841 = vunpack.c.l.b16 %v1617
        %v1842 = vunpack.c.l.b16 %v1618
        %v1843 = vunpack.c.l.b16 %v1619
        %v1844 = vunpack.c.l.b16 %v1620
        %v1845 = vunpack.c.l.b16 %v1621
        %v1846 = vunpack.c.l.b16 %v1622
        %v1847 = vunpack.c.l.b16 %v1623
        %v1848 = vunpack.c.l.b16 %v1624
        %v1849 = vunpack.c.l.b16 %v1625
        %v1850 = vunpack.c.l.b16 %v1626
        %v1851 = vunpack.c.l.b16 %v1627
        %v1852 = vunpack.c.l.b16 %v1628
        %v1853 = vunpack.c.l.b16 %v1629
        %v1854 = vunpack.c.l.b16 %v1630
        %v1855 = vunpack.c.l.b16 %v1631
        %v1856 = vunpack.c.l.b16 %v1632
        %v1857 = vunpack.c.l.b16 %v1633
        %v1858 = vunpack.c.l.b16 %v1634
        %v1859 = vunpack.c.l.b16 %v1635
        %v1860 = vunpack.c.l.b16 %v1636
        %v1861 = vunpack.c.l.b16 %v1637
        %v1862 = vunpack.c.l.b16 %v1638
        %v1863 = vunpack.c.l.b16 %v1639
        %v1864 = vunpack.c.l.b16 %v1640
        %v1865 = vunpack.c.l.b16 %v1641
        %v1866 = vunpack.c.l.b16 %v1642
        %v1867 = vunpack.c.l.b16 %v1643
        %v1868 = vpack.c.b16 %v1837, %v1836
        %v1869 = vpack.c.b16 %v1839, %v1838
        %v1870 = vpack.c.b16 %v1841, %v1840
        %v1871 = vpack.c.b16 %v1843, %v1842
        %v1872 = vpack.c.b16 %v1845, %v1844
        %v1873 = vpack.c.b16 %v1847, %v1846
        %v1874 = vpack.c.b16 %v1849, %v1848
        %v1875 = vpack.c.b16 %v1851, %v1850
        %v1876 = vpack.c.b16 %v1853, %v1852
        %v1877 = vpack.c.b16 %v1855, %v1854
        %v1878 = vpack.c.b16 %v1857, %v1856
        %v1879 = vpack.c.b16 %v1859, %v1858
        %v1880 = vpack.c.b16 %v1861, %v1860
        %v1881 = vpack.c.b16 %v1863, %v1862
        %v1882 = vpack.c.b16 %v1865, %v1864
        %v1883 = vpack.c.b16 %v1867, %v1866
        %1900 = vmatprep.subr.bf16.mxu0 0
        %1901 = vmatpush1.bf16.msra.mxu0 %v1875
        %1902 = vmatprep.subr.bf16.mxu0 0
        %1903 = vmatpush1.bf16.msra.mxu0 %v1874
        %1904 = vmatprep.subr.bf16.mxu0 0
        %1905 = vmatpush1.bf16.msra.mxu0 %v1873
        %1906 = vmatprep.subr.bf16.mxu0 0
        %1907 = vmatpush1.bf16.msra.mxu0 %v1872
        %1908 = vmatprep.subr.bf16.mxu0 0
        %1909 = vmatpush1.bf16.msra.mxu0 %v1871
        %1910 = vmatprep.subr.bf16.mxu0 0
        %1911 = vmatpush1.bf16.msra.mxu0 %v1870
        %1912 = vmatprep.subr.bf16.mxu0 0
        %1913 = vmatpush1.bf16.msra.mxu0 %v1869
        %1914 = vmatprep.subr.bf16.mxu0 0
        %1915 = vmatpush1.bf16.msra.mxu0 %v1868
        %1916 = vmatprep.subr.bf16.mxu0 0
        %1917 = vmatpush2.bf16.msra.mxu0 %v1883
        %1918 = vmatprep.subr.bf16.mxu0 0
        %1919 = vmatpush2.bf16.msra.mxu0 %v1882
        %1920 = vmatprep.subr.bf16.mxu0 0
        %1921 = vmatpush2.bf16.msra.mxu0 %v1881
        %1922 = vmatprep.subr.bf16.mxu0 0
        %1923 = vmatpush2.bf16.msra.mxu0 %v1880
        %1924 = vmatprep.subr.bf16.mxu0 0
        %1925 = vmatpush2.bf16.msra.mxu0 %v1879
        %1926 = vmatprep.subr.bf16.mxu0 0
        %1927 = vmatpush2.bf16.msra.mxu0 %v1878
        %1928 = vmatprep.subr.bf16.mxu0 0
        %1929 = vmatpush2.bf16.msra.mxu0 %v1877
        %1930 = vmatprep.subr.bf16.mxu0 0
        %1931 = vmatpush2.bf16.msra.mxu0 %v1876
        %1932 = vmatprep.mubr.bf16.mxu0 %v1741
        %1933 = vmatmul.mubr.bf16.gmra.mxu0 %v1740
        %v1934 = vpop.f32.mrf.mxu0
        %v1935 = vadd.f32 0.0, %v1934
        %v1936 = vpop.f32.mrf.mxu0
        %v1937 = vpop.f32.mrf.mxu0
        %v1938 = vadd.f32 0.0, %v1937
        %v1939 = vpop.f32.mrf.mxu0
        %1940 = vmatprep.mubr.bf16.mxu0 %v1743
        %1941 = vmatmul.mubr.bf16.gmra.mxu0 %v1742
        %v1942 = vpop.f32.mrf.mxu0
        %v1943 = vadd.f32 0.0, %v1942
        %v1944 = vpop.f32.mrf.mxu0
        %v1945 = vpop.f32.mrf.mxu0
        %v1946 = vadd.f32 0.0, %v1945
        %v1947 = vpop.f32.mrf.mxu0
        %1948 = vmatprep.mubr.bf16.mxu0 %v1745
        %1949 = vmatmul.mubr.bf16.gmra.mxu0 %v1744
        %v1950 = vpop.f32.mrf.mxu0
        %v1951 = vadd.f32 0.0, %v1950
        %v1952 = vpop.f32.mrf.mxu0
        %v1953 = vpop.f32.mrf.mxu0
        %v1954 = vadd.f32 0.0, %v1953
        %v1955 = vpop.f32.mrf.mxu0
        %1956 = vmatprep.mubr.bf16.mxu0 %v1747
        %1957 = vmatmul.mubr.bf16.gmra.mxu0 %v1746
        %v1958 = vpop.f32.mrf.mxu0
        %v1959 = vadd.f32 0.0, %v1958
        %v1960 = vpop.f32.mrf.mxu0
        %v1961 = vpop.f32.mrf.mxu0
        %v1962 = vadd.f32 0.0, %v1961
        %v1963 = vpop.f32.mrf.mxu0
        %1964 = vmatprep.mubr.bf16.mxu0 %v1749
        %1965 = vmatmul.mubr.bf16.gmra.mxu0 %v1748
        %v1966 = vpop.f32.mrf.mxu0
        %v1967 = vadd.f32 0.0, %v1966
        %v1968 = vpop.f32.mrf.mxu0
        %v1969 = vpop.f32.mrf.mxu0
        %v1970 = vadd.f32 0.0, %v1969
        %v1971 = vpop.f32.mrf.mxu0
        %1972 = vmatprep.mubr.bf16.mxu0 %v1751
        %1973 = vmatmul.mubr.bf16.gmra.mxu0 %v1750
        %v1974 = vpop.f32.mrf.mxu0
        %v1975 = vadd.f32 0.0, %v1974
        %v1976 = vpop.f32.mrf.mxu0
        %v1977 = vpop.f32.mrf.mxu0
        %v1978 = vadd.f32 0.0, %v1977
        %v1979 = vpop.f32.mrf.mxu0
        %1980 = vmatprep.mubr.bf16.mxu0 %v1753
        %1981 = vmatmul.mubr.bf16.gmra.mxu0 %v1752
        %v1982 = vpop.f32.mrf.mxu0
        %v1983 = vadd.f32 0.0, %v1982
        %v1984 = vpop.f32.mrf.mxu0
        %v1985 = vpop.f32.mrf.mxu0
        %v1986 = vadd.f32 0.0, %v1985
        %v1987 = vpop.f32.mrf.mxu0
        %1988 = vmatprep.mubr.bf16.mxu0 %v1755
        %1989 = vmatmul.mubr.bf16.gmra.mxu0 %v1754
        %v1990 = vpop.f32.mrf.mxu0
        %v1991 = vadd.f32 0.0, %v1990
        %v1992 = vpop.f32.mrf.mxu0
        %v1993 = vpop.f32.mrf.mxu0
        %v1994 = vadd.f32 0.0, %v1993
        %v1995 = vpop.f32.mrf.mxu0
        %1996 = vmatprep.mubr.bf16.mxu0 %v1757
        %1997 = vmatmul.mubr.bf16.gmra.mxu0 %v1756
        %v1998 = vpop.f32.mrf.mxu0
        %v1999 = vadd.f32 0.0, %v1998
        %v2000 = vpop.f32.mrf.mxu0
        %v2001 = vpop.f32.mrf.mxu0
        %v2002 = vadd.f32 0.0, %v2001
        %v2003 = vpop.f32.mrf.mxu0
        %2004 = vmatprep.mubr.bf16.mxu0 %v1759
        %2005 = vmatmul.mubr.bf16.gmra.mxu0 %v1758
        %v2006 = vpop.f32.mrf.mxu0
        %v2007 = vadd.f32 0.0, %v2006
        %v2008 = vpop.f32.mrf.mxu0
        %v2009 = vpop.f32.mrf.mxu0
        %v2010 = vadd.f32 0.0, %v2009
        %v2011 = vpop.f32.mrf.mxu0
        %2012 = vmatprep.mubr.bf16.mxu0 %v1761
        %2013 = vmatmul.mubr.bf16.gmra.mxu0 %v1760
        %v2014 = vpop.f32.mrf.mxu0
        %v2015 = vadd.f32 0.0, %v2014
        %v2016 = vpop.f32.mrf.mxu0
        %v2017 = vpop.f32.mrf.mxu0
        %v2018 = vadd.f32 0.0, %v2017
        %v2019 = vpop.f32.mrf.mxu0
        %2020 = vmatprep.mubr.bf16.mxu0 %v1763
        %2021 = vmatmul.mubr.bf16.gmra.mxu0 %v1762
        %v2022 = vpop.f32.mrf.mxu0
        %v2023 = vadd.f32 0.0, %v2022
        %v2024 = vpop.f32.mrf.mxu0
        %v2025 = vpop.f32.mrf.mxu0
        %v2026 = vadd.f32 0.0, %v2025
        %v2027 = vpop.f32.mrf.mxu0
        %2028 = vmatprep.mubr.bf16.mxu0 %v1765
        %2029 = vmatmul.mubr.bf16.gmra.mxu0 %v1764
        %v2030 = vpop.f32.mrf.mxu0
        %v2031 = vadd.f32 0.0, %v2030
        %v2032 = vpop.f32.mrf.mxu0
        %v2033 = vpop.f32.mrf.mxu0
        %v2034 = vadd.f32 0.0, %v2033
        %v2035 = vpop.f32.mrf.mxu0
        %2036 = vmatprep.mubr.bf16.mxu0 %v1767
        %2037 = vmatmul.mubr.bf16.gmra.mxu0 %v1766
        %v2038 = vpop.f32.mrf.mxu0
        %v2039 = vadd.f32 0.0, %v2038
        %v2040 = vpop.f32.mrf.mxu0
        %v2041 = vpop.f32.mrf.mxu0
        %v2042 = vadd.f32 0.0, %v2041
        %v2043 = vpop.f32.mrf.mxu0
        %2044 = vmatprep.mubr.bf16.mxu0 %v1769
        %2045 = vmatmul.mubr.bf16.gmra.mxu0 %v1768
        %v2046 = vpop.f32.mrf.mxu0
        %v2047 = vadd.f32 0.0, %v2046
        %v2048 = vpop.f32.mrf.mxu0
        %v2049 = vpop.f32.mrf.mxu0
        %v2050 = vadd.f32 0.0, %v2049
        %v2051 = vpop.f32.mrf.mxu0
        %2052 = vmatprep.mubr.bf16.mxu0 %v1771
        %2053 = vmatmul.mubr.bf16.gmra.mxu0 %v1770
        %v2054 = vpop.f32.mrf.mxu0
        %v2055 = vadd.f32 0.0, %v2054
        %v2056 = vpop.f32.mrf.mxu0
        %v2057 = vpop.f32.mrf.mxu0
        %v2058 = vadd.f32 0.0, %v2057
        %v2059 = vpop.f32.mrf.mxu0
        %2060 = vdwg.mxu0
        %s2061 = scalar_lea.vmem %s2, %s326
        %v2062 = vld [vmem:[%s2061] sm:$0xff]
        %v2063 = vld [vmem:[%s2061 + $0x8] sm:$0xff]
        %v2064 = vld [vmem:[%s2061 + $0x10] sm:$0xff]
        %v2065 = vld [vmem:[%s2061 + $0x18] sm:$0xff]
        %v2066 = vld [vmem:[%s2061 + $0x20] sm:$0xff]
        %v2067 = vld [vmem:[%s2061 + $0x28] sm:$0xff]
        %v2068 = vld [vmem:[%s2061 + $0x30] sm:$0xff]
        %v2069 = vld [vmem:[%s2061 + $0x38] sm:$0xff]
        %v2070 = vld [vmem:[%s2061 + $0x40] sm:$0xff]
        %v2071 = vld [vmem:[%s2061 + $0x48] sm:$0xff]
        %v2072 = vld [vmem:[%s2061 + $0x50] sm:$0xff]
        %v2073 = vld [vmem:[%s2061 + $0x58] sm:$0xff]
        %v2074 = vld [vmem:[%s2061 + $0x60] sm:$0xff]
        %v2075 = vld [vmem:[%s2061 + $0x68] sm:$0xff]
        %v2076 = vld [vmem:[%s2061 + $0x70] sm:$0xff]
        %v2077 = vld [vmem:[%s2061 + $0x78] sm:$0xff]
        %v2078 = vld [vmem:[%s2061 + $0x80] sm:$0xff]
        %v2079 = vld [vmem:[%s2061 + $0x88] sm:$0xff]
        %v2080 = vld [vmem:[%s2061 + $0x90] sm:$0xff]
        %v2081 = vld [vmem:[%s2061 + $0x98] sm:$0xff]
        %v2082 = vld [vmem:[%s2061 + $0xa0] sm:$0xff]
        %v2083 = vld [vmem:[%s2061 + $0xa8] sm:$0xff]
        %v2084 = vld [vmem:[%s2061 + $0xb0] sm:$0xff]
        %v2085 = vld [vmem:[%s2061 + $0xb8] sm:$0xff]
        %v2086 = vld [vmem:[%s2061 + $0xc0] sm:$0xff]
        %v2087 = vld [vmem:[%s2061 + $0xc8] sm:$0xff]
        %v2088 = vld [vmem:[%s2061 + $0xd0] sm:$0xff]
        %v2089 = vld [vmem:[%s2061 + $0xd8] sm:$0xff]
        %v2090 = vld [vmem:[%s2061 + $0xe0] sm:$0xff]
        %v2091 = vld [vmem:[%s2061 + $0xe8] sm:$0xff]
        %v2092 = vld [vmem:[%s2061 + $0xf0] sm:$0xff]
        %v2093 = vld [vmem:[%s2061 + $0xf8] sm:$0xff]
        %2095 = vset.pattern.permute.xlu0 0
        %2096 = vperm.xlu0 %2095, %v2062
        %v2097 = vpop.permute.xlu0 %2096
        %2100 = vset.pattern.permute.xlu0 0
        %2101 = vperm.xlu0 %2100, %v2063
        %v2102 = vpop.permute.xlu0 %2101
        %2105 = vset.pattern.permute.xlu0 0
        %2106 = vperm.xlu0 %2105, %v2064
        %v2107 = vpop.permute.xlu0 %2106
        %2110 = vset.pattern.permute.xlu0 0
        %2111 = vperm.xlu0 %2110, %v2065
        %v2112 = vpop.permute.xlu0 %2111
        %2115 = vset.pattern.permute.xlu0 0
        %2116 = vperm.xlu0 %2115, %v2066
        %v2117 = vpop.permute.xlu0 %2116
        %2120 = vset.pattern.permute.xlu0 0
        %2121 = vperm.xlu0 %2120, %v2067
        %v2122 = vpop.permute.xlu0 %2121
        %2125 = vset.pattern.permute.xlu0 0
        %2126 = vperm.xlu0 %2125, %v2068
        %v2127 = vpop.permute.xlu0 %2126
        %2130 = vset.pattern.permute.xlu0 0
        %2131 = vperm.xlu0 %2130, %v2069
        %v2132 = vpop.permute.xlu0 %2131
        %2135 = vset.pattern.permute.xlu0 0
        %2136 = vperm.xlu0 %2135, %v2070
        %v2137 = vpop.permute.xlu0 %2136
        %2140 = vset.pattern.permute.xlu0 0
        %2141 = vperm.xlu0 %2140, %v2071
        %v2142 = vpop.permute.xlu0 %2141
        %2145 = vset.pattern.permute.xlu0 0
        %2146 = vperm.xlu0 %2145, %v2072
        %v2147 = vpop.permute.xlu0 %2146
        %2150 = vset.pattern.permute.xlu0 0
        %2151 = vperm.xlu0 %2150, %v2073
        %v2152 = vpop.permute.xlu0 %2151
        %2155 = vset.pattern.permute.xlu0 0
        %2156 = vperm.xlu0 %2155, %v2074
        %v2157 = vpop.permute.xlu0 %2156
        %2160 = vset.pattern.permute.xlu0 0
        %2161 = vperm.xlu0 %2160, %v2075
        %v2162 = vpop.permute.xlu0 %2161
        %2165 = vset.pattern.permute.xlu0 0
        %2166 = vperm.xlu0 %2165, %v2076
        %v2167 = vpop.permute.xlu0 %2166
        %2170 = vset.pattern.permute.xlu0 0
        %2171 = vperm.xlu0 %2170, %v2077
        %v2172 = vpop.permute.xlu0 %2171
        %2175 = vset.pattern.permute.xlu0 0
        %2176 = vperm.xlu0 %2175, %v2078
        %v2177 = vpop.permute.xlu0 %2176
        %2180 = vset.pattern.permute.xlu0 0
        %2181 = vperm.xlu0 %2180, %v2079
        %v2182 = vpop.permute.xlu0 %2181
        %2185 = vset.pattern.permute.xlu0 0
        %2186 = vperm.xlu0 %2185, %v2080
        %v2187 = vpop.permute.xlu0 %2186
        %2190 = vset.pattern.permute.xlu0 0
        %2191 = vperm.xlu0 %2190, %v2081
        %v2192 = vpop.permute.xlu0 %2191
        %2195 = vset.pattern.permute.xlu0 0
        %2196 = vperm.xlu0 %2195, %v2082
        %v2197 = vpop.permute.xlu0 %2196
        %2200 = vset.pattern.permute.xlu0 0
        %2201 = vperm.xlu0 %2200, %v2083
        %v2202 = vpop.permute.xlu0 %2201
        %2205 = vset.pattern.permute.xlu0 0
        %2206 = vperm.xlu0 %2205, %v2084
        %v2207 = vpop.permute.xlu0 %2206
        %2210 = vset.pattern.permute.xlu0 0
        %2211 = vperm.xlu0 %2210, %v2085
        %v2212 = vpop.permute.xlu0 %2211
        %2215 = vset.pattern.permute.xlu0 0
        %2216 = vperm.xlu0 %2215, %v2086
        %v2217 = vpop.permute.xlu0 %2216
        %2220 = vset.pattern.permute.xlu0 0
        %2221 = vperm.xlu0 %2220, %v2087
        %v2222 = vpop.permute.xlu0 %2221
        %2225 = vset.pattern.permute.xlu0 0
        %2226 = vperm.xlu0 %2225, %v2088
        %v2227 = vpop.permute.xlu0 %2226
        %2230 = vset.pattern.permute.xlu0 0
        %2231 = vperm.xlu0 %2230, %v2089
        %v2232 = vpop.permute.xlu0 %2231
        %2235 = vset.pattern.permute.xlu0 0
        %2236 = vperm.xlu0 %2235, %v2090
        %v2237 = vpop.permute.xlu0 %2236
        %2240 = vset.pattern.permute.xlu0 0
        %2241 = vperm.xlu0 %2240, %v2091
        %v2242 = vpop.permute.xlu0 %2241
        %2245 = vset.pattern.permute.xlu0 0
        %2246 = vperm.xlu0 %2245, %v2092
        %v2247 = vpop.permute.xlu0 %2246
        %2250 = vset.pattern.permute.xlu0 0
        %2251 = vperm.xlu0 %2250, %v2093
        %v2252 = vpop.permute.xlu0 %2251
        %v2254 = vmul.f32 %v1935, %v2097
        %v2255 = vmul.f32 %v1938, %v2102
        %v2256 = vmul.f32 %v1943, %v2107
        %v2257 = vmul.f32 %v1946, %v2112
        %v2258 = vmul.f32 %v1951, %v2117
        %v2259 = vmul.f32 %v1954, %v2122
        %v2260 = vmul.f32 %v1959, %v2127
        %v2261 = vmul.f32 %v1962, %v2132
        %v2262 = vmul.f32 %v1967, %v2137
        %v2263 = vmul.f32 %v1970, %v2142
        %v2264 = vmul.f32 %v1975, %v2147
        %v2265 = vmul.f32 %v1978, %v2152
        %v2266 = vmul.f32 %v1983, %v2157
        %v2267 = vmul.f32 %v1986, %v2162
        %v2268 = vmul.f32 %v1991, %v2167
        %v2269 = vmul.f32 %v1994, %v2172
        %v2270 = vmul.f32 %v1999, %v2177
        %v2271 = vmul.f32 %v2002, %v2182
        %v2272 = vmul.f32 %v2007, %v2187
        %v2273 = vmul.f32 %v2010, %v2192
        %v2274 = vmul.f32 %v2015, %v2197
        %v2275 = vmul.f32 %v2018, %v2202
        %v2276 = vmul.f32 %v2023, %v2207
        %v2277 = vmul.f32 %v2026, %v2212
        %v2278 = vmul.f32 %v2031, %v2217
        %v2279 = vmul.f32 %v2034, %v2222
        %v2280 = vmul.f32 %v2039, %v2227
        %v2281 = vmul.f32 %v2042, %v2232
        %v2282 = vmul.f32 %v2047, %v2237
        %v2283 = vmul.f32 %v2050, %v2242
        %v2284 = vmul.f32 %v2055, %v2247
        %v2285 = vmul.f32 %v2058, %v2252
        %s2286 = scalar_lea.vmem %s7, %s326
        %v2287 = vld [vmem:[%s2286] sm:$0xff]
        %v2288 = vld [vmem:[%s2286 + $0x8] sm:$0xff]
        %v2289 = vld [vmem:[%s2286 + $0x10] sm:$0xff]
        %v2290 = vld [vmem:[%s2286 + $0x18] sm:$0xff]
        %v2291 = vld [vmem:[%s2286 + $0x20] sm:$0xff]
        %v2292 = vld [vmem:[%s2286 + $0x28] sm:$0xff]
        %v2293 = vld [vmem:[%s2286 + $0x30] sm:$0xff]
        %v2294 = vld [vmem:[%s2286 + $0x38] sm:$0xff]
        %v2295 = vld [vmem:[%s2286 + $0x40] sm:$0xff]
        %v2296 = vld [vmem:[%s2286 + $0x48] sm:$0xff]
        %v2297 = vld [vmem:[%s2286 + $0x50] sm:$0xff]
        %v2298 = vld [vmem:[%s2286 + $0x58] sm:$0xff]
        %v2299 = vld [vmem:[%s2286 + $0x60] sm:$0xff]
        %v2300 = vld [vmem:[%s2286 + $0x68] sm:$0xff]
        %v2301 = vld [vmem:[%s2286 + $0x70] sm:$0xff]
        %v2302 = vld [vmem:[%s2286 + $0x78] sm:$0xff]
        %v2303 = vld [vmem:[%s2286 + $0x80] sm:$0xff]
        %v2304 = vld [vmem:[%s2286 + $0x88] sm:$0xff]
        %v2305 = vld [vmem:[%s2286 + $0x90] sm:$0xff]
        %v2306 = vld [vmem:[%s2286 + $0x98] sm:$0xff]
        %v2307 = vld [vmem:[%s2286 + $0xa0] sm:$0xff]
        %v2308 = vld [vmem:[%s2286 + $0xa8] sm:$0xff]
        %v2309 = vld [vmem:[%s2286 + $0xb0] sm:$0xff]
        %v2310 = vld [vmem:[%s2286 + $0xb8] sm:$0xff]
        %v2311 = vld [vmem:[%s2286 + $0xc0] sm:$0xff]
        %v2312 = vld [vmem:[%s2286 + $0xc8] sm:$0xff]
        %v2313 = vld [vmem:[%s2286 + $0xd0] sm:$0xff]
        %v2314 = vld [vmem:[%s2286 + $0xd8] sm:$0xff]
        %v2315 = vld [vmem:[%s2286 + $0xe0] sm:$0xff]
        %v2316 = vld [vmem:[%s2286 + $0xe8] sm:$0xff]
        %v2317 = vld [vmem:[%s2286 + $0xf0] sm:$0xff]
        %v2318 = vld [vmem:[%s2286 + $0xf8] sm:$0xff]
        %v2319 = vadd.f32 %v2254, %v2287
        %v2320 = vadd.f32 %v2255, %v2288
        %v2321 = vadd.f32 %v2256, %v2289
        %v2322 = vadd.f32 %v2257, %v2290
        %v2323 = vadd.f32 %v2258, %v2291
        %v2324 = vadd.f32 %v2259, %v2292
        %v2325 = vadd.f32 %v2260, %v2293
        %v2326 = vadd.f32 %v2261, %v2294
        %v2327 = vadd.f32 %v2262, %v2295
        %v2328 = vadd.f32 %v2263, %v2296
        %v2329 = vadd.f32 %v2264, %v2297
        %v2330 = vadd.f32 %v2265, %v2298
        %v2331 = vadd.f32 %v2266, %v2299
        %v2332 = vadd.f32 %v2267, %v2300
        %v2333 = vadd.f32 %v2268, %v2301
        %v2334 = vadd.f32 %v2269, %v2302
        %v2335 = vadd.f32 %v2270, %v2303
        %v2336 = vadd.f32 %v2271, %v2304
        %v2337 = vadd.f32 %v2272, %v2305
        %v2338 = vadd.f32 %v2273, %v2306
        %v2339 = vadd.f32 %v2274, %v2307
        %v2340 = vadd.f32 %v2275, %v2308
        %v2341 = vadd.f32 %v2276, %v2309
        %v2342 = vadd.f32 %v2277, %v2310
        %v2343 = vadd.f32 %v2278, %v2311
        %v2344 = vadd.f32 %v2279, %v2312
        %v2345 = vadd.f32 %v2280, %v2313
        %v2346 = vadd.f32 %v2281, %v2314
        %v2347 = vadd.f32 %v2282, %v2315
        %v2348 = vadd.f32 %v2283, %v2316
        %v2349 = vadd.f32 %v2284, %v2317
        %v2350 = vadd.f32 %v2285, %v2318
        %2351 = vst [vmem:[%s2286] sm:$0xff] %v2319
        %2352 = vst [vmem:[%s2286 + $0x8] sm:$0xff] %v2320
        %2353 = vst [vmem:[%s2286 + $0x10] sm:$0xff] %v2321
        %2354 = vst [vmem:[%s2286 + $0x18] sm:$0xff] %v2322
        %2355 = vst [vmem:[%s2286 + $0x20] sm:$0xff] %v2323
        %2356 = vst [vmem:[%s2286 + $0x28] sm:$0xff] %v2324
        %2357 = vst [vmem:[%s2286 + $0x30] sm:$0xff] %v2325
        %2358 = vst [vmem:[%s2286 + $0x38] sm:$0xff] %v2326
        %2359 = vst [vmem:[%s2286 + $0x40] sm:$0xff] %v2327
        %2360 = vst [vmem:[%s2286 + $0x48] sm:$0xff] %v2328
        %2361 = vst [vmem:[%s2286 + $0x50] sm:$0xff] %v2329
        %2362 = vst [vmem:[%s2286 + $0x58] sm:$0xff] %v2330
        %2363 = vst [vmem:[%s2286 + $0x60] sm:$0xff] %v2331
        %2364 = vst [vmem:[%s2286 + $0x68] sm:$0xff] %v2332
        %2365 = vst [vmem:[%s2286 + $0x70] sm:$0xff] %v2333
        %2366 = vst [vmem:[%s2286 + $0x78] sm:$0xff] %v2334
        %2367 = vst [vmem:[%s2286 + $0x80] sm:$0xff] %v2335
        %2368 = vst [vmem:[%s2286 + $0x88] sm:$0xff] %v2336
        %2369 = vst [vmem:[%s2286 + $0x90] sm:$0xff] %v2337
        %2370 = vst [vmem:[%s2286 + $0x98] sm:$0xff] %v2338
        %2371 = vst [vmem:[%s2286 + $0xa0] sm:$0xff] %v2339
        %2372 = vst [vmem:[%s2286 + $0xa8] sm:$0xff] %v2340
        %2373 = vst [vmem:[%s2286 + $0xb0] sm:$0xff] %v2341
        %2374 = vst [vmem:[%s2286 + $0xb8] sm:$0xff] %v2342
        %2375 = vst [vmem:[%s2286 + $0xc0] sm:$0xff] %v2343
        %2376 = vst [vmem:[%s2286 + $0xc8] sm:$0xff] %v2344
        %2377 = vst [vmem:[%s2286 + $0xd0] sm:$0xff] %v2345
        %2378 = vst [vmem:[%s2286 + $0xd8] sm:$0xff] %v2346
        %2379 = vst [vmem:[%s2286 + $0xe0] sm:$0xff] %v2347
        %2380 = vst [vmem:[%s2286 + $0xe8] sm:$0xff] %v2348
        %2381 = vst [vmem:[%s2286 + $0xf0] sm:$0xff] %v2349
        %2382 = vst [vmem:[%s2286 + $0xf8] sm:$0xff] %v2350
      $region60: #{gnn_encoder_forward.3} parent=47 // pred_fallthru
        _
      // Predicated region
      $region61: #{gnn_encoder_forward.3} parent=47 // pred_check
        %p2383 = pneg %p217
      $region62: #{gnn_encoder_forward.3} parent=47 // pred_check_branch
        %2385 = sbr.rel (%p2383) target = $region64
      $region63: #{gnn_encoder_forward.3} parent=47 // pred_region
        _
      $region64: #{gnn_encoder_forward.3} parent=47 // pred_fallthru
        _
      // Predicated region
      $region65: #{gnn_encoder_forward.3} parent=47 // pred_check
        %p2386 = pneg %p217
      $region66: #{gnn_encoder_forward.3} parent=47 // pred_check_branch
        %2388 = sbr.rel (%p2386) target = $region68
      $region67: #{gnn_encoder_forward.3} parent=47 // pred_region
        _
      $region68: #{gnn_encoder_forward.3} parent=47 // pred_fallthru
        _
    $region48: #{gnn_encoder_forward.3} parent=5 // pred_fallthru
      _
    %p2389 = scmp.le.s32.totalorder 2, %s13
    // Predicated region
    $region69: #{gnn_encoder_forward.3} parent=5 // pred_check
      %p2390 = pneg %p2389
    $region70: #{gnn_encoder_forward.3} parent=5 // pred_check_branch
      %2392 = sbr.rel (%p2390) target = $region72
    $region71: #{gnn_encoder_forward.3} parent=5 // pred_region
      %s2393 = ssub.s32 %s13, 2
    $region72: #{gnn_encoder_forward.3} parent=5 // pred_fallthru
      _
  $region6: #{gnn_encoder_forward.3} parent=0 // loop_footer
    %s17 = sadd.s32 1, %s13
  $region7: #{gnn_encoder_forward.3} parent=0 // loop_footer_branch
    %12 = sbr.rel target = $region3
  $region8: #{gnn_encoder_forward.3} parent=0 // loop_exit
    _

</llo_original>
